<compile_context>
chip_gen: v6e
topology: v6e:2x2x1
jax: 0.10.0
libtpu: 0.0.40
codegen_flags: <defaults>
</compile_context>

<pallas_src>
import numpy as np

import jax
import jax.numpy as jnp
from jax.experimental import pallas as pl
from jax.experimental.pallas import tpu as pltpu


# ---------------------------------------------------------------------------
# Fixed shapes (from the torch module)
# ---------------------------------------------------------------------------
_C1_IN, _C1_OUT, _K = 3, 6, 5
_H_IN = _W_IN = 32
_H1 = _W1 = 28            # conv1 output (32 - 5 + 1)
_H1P = _W1P = 14          # after 2x2/2 pool
_C2_OUT = 16
_H2 = _W2 = 10            # conv2 output (14 - 5 + 1)
_H2P = _W2P = 5
_PAD = 128                # lane-dense padding for the FC path

_L1 = _W1 * _C1_OUT       # 168  conv1 lanes   (w*6 + o)
_L1P = _W1P * _C1_OUT     # 84   pool1 lanes   (wp*6 + c)
_L2 = _W2 * _C2_OUT       # 160  conv2 lanes   (w*16 + o)
_L2P = _W2P * _C2_OUT     # 80   pool2 lanes   (wp*16 + o)
_K1 = _K * _C1_IN * _W_IN  # 480  conv1 contraction dim (tap, channel, column)

B_TILE = 8                # images per grid step (multiple of 8 for (8,128) tiling)


# ---------------------------------------------------------------------------
# Parameter construction (deterministic, synthetic, PyTorch layouts)
# ---------------------------------------------------------------------------
def init_params(key):
    ks = jax.random.split(key, 10)
    p = {}
    p["conv1_w"] = 0.1 * jax.random.normal(ks[0], (6, 3, 5, 5), jnp.float32)
    p["conv1_b"] = 0.1 * jax.random.normal(ks[1], (6,), jnp.float32)
    p["conv2_w"] = 0.1 * jax.random.normal(ks[2], (16, 6, 5, 5), jnp.float32)
    p["conv2_b"] = 0.1 * jax.random.normal(ks[3], (16,), jnp.float32)
    p["fc1_w"] = 0.05 * jax.random.normal(ks[4], (120, 400), jnp.float32)  # (out, in)
    p["fc1_b"] = 0.05 * jax.random.normal(ks[5], (120,), jnp.float32)
    p["fc2_w"] = 0.05 * jax.random.normal(ks[6], (84, 120), jnp.float32)
    p["fc2_b"] = 0.05 * jax.random.normal(ks[7], (84,), jnp.float32)
    p["fc3_w"] = 0.05 * jax.random.normal(ks[8], (10, 84), jnp.float32)
    p["fc3_b"] = 0.05 * jax.random.normal(ks[9], (10,), jnp.float32)
    return p


def prepare_kernel_params(p):
    """Fold conv weights into banded matrices, W-pooling into 0/1 selection
    matrices, the NCHW flatten + FC weights into pre-transposed 128-lane padded
    matrices, and consolidate everything into 5 slabs.  Runs ONCE on the host."""
    w1 = np.asarray(p["conv1_w"], np.float32)
    b1 = np.asarray(p["conv1_b"], np.float32)
    w2 = np.asarray(p["conv2_w"], np.float32)
    b2 = np.asarray(p["conv2_b"], np.float32)
    f1w = np.asarray(p["fc1_w"], np.float32)
    f1b = np.asarray(p["fc1_b"], np.float32)
    f2w = np.asarray(p["fc2_w"], np.float32)
    f2b = np.asarray(p["fc2_b"], np.float32)
    f3w = np.asarray(p["fc3_w"], np.float32)
    f3b = np.asarray(p["fc3_b"], np.float32)

    # conv1 folded to a single (480, 168) matrix (taps + channels in K):
    #   W1[i*96 + c*32 + win, w*6 + o] = w1[o, c, i, win - w]  for 0 <= win - w < 5
    W1 = np.zeros((_K1, _L1), np.float32)
    for i in range(_K):
        for c in range(_C1_IN):
            for o in range(_C1_OUT):
                for j in range(_K):
                    for w in range(_W1):
                        W1[i * (_C1_IN * _W_IN) + c * _W_IN + w + j,
                           w * _C1_OUT + o] = w1[o, c, i, j]

    # pool1 W-direction 0/1 selection matrices (even / odd column of each pair).
    e1a = np.zeros((_L1, _L1P), np.float32)
    e1b = np.zeros((_L1, _L1P), np.float32)
    for wp in range(_W1P):
        for o in range(_C1_OUT):
            e1a[(2 * wp) * _C1_OUT + o, wp * _C1_OUT + o] = 1.0
            e1b[(2 * wp + 1) * _C1_OUT + o, wp * _C1_OUT + o] = 1.0

    # conv2 banded matrices (one per kernel-row tap) on the pooled lane layout.
    #   m2[i][(w+j)*6 + c, w*16 + o] = w2[o, c, i, j]
    m2 = np.zeros((_K, _L1P, _L2), np.float32)
    for i in range(_K):
        for o in range(_C2_OUT):
            for c in range(_C1_OUT):
                for j in range(_K):
                    for w in range(_W2):
                        m2[i, (w + j) * _C1_OUT + c, w * _C2_OUT + o] = w2[o, c, i, j]

    # pool2 W-direction selection matrices.
    e2a = np.zeros((_L2, _L2P), np.float32)
    e2b = np.zeros((_L2, _L2P), np.float32)
    for wp in range(_W2P):
        for o in range(_C2_OUT):
            e2a[(2 * wp) * _C2_OUT + o, wp * _C2_OUT + o] = 1.0
            e2b[(2 * wp + 1) * _C2_OUT + o, wp * _C2_OUT + o] = 1.0

    # fc1 with torch's x.view(-1, 16*5*5) (C,H,W order) folded in, per pooled row.
    #   g1[hp][wp*16 + o, m] = fc1_w[m, o*25 + hp*5 + wp]
    g1 = np.zeros((_H2P, _L2P, _PAD), np.float32)
    for hp in range(_H2P):
        for wp in range(_W2P):
            for o in range(_C2_OUT):
                g1[hp, wp * _C2_OUT + o, :120] = f1w[:, o * 25 + hp * 5 + wp]

    # fc2 / fc3 pre-transposed to (in, out) and zero-padded to 128x128.
    f2m = np.zeros((_PAD, _PAD), np.float32)
    f2m[:120, :84] = f2w.T
    f3m = np.zeros((_PAD, _PAD), np.float32)
    f3m[:84, :10] = f3w.T

    # --- consolidate into a few pre-padded slabs (static in-kernel slices) ---
    bias = np.zeros((8, 256), np.float32)
    bias[0, :_L1] = np.tile(b1, _W1)     # conv1 bias, lane = w*6 + o
    bias[1, :_L2] = np.tile(b2, _W2)     # conv2 bias, lane = w*16 + o
    bias[2, :120] = f1b
    bias[3, :84] = f2b
    bias[4, :10] = f3b

    wa = np.zeros((_K1 + 2 * _L1, _L1), np.float32)      # (816, 168)
    wa[0:_K1, :] = W1
    wa[_K1:_K1 + _L1, :_L1P] = e1a
    wa[_K1 + _L1:_K1 + 2 * _L1, :_L1P] = e1b

    wc = np.zeros((2 * _L2 + 2 * _PAD, _PAD), np.float32)  # (576, 128)
    wc[0:_L2, :_L2P] = e2a
    wc[_L2:2 * _L2, :_L2P] = e2b
    wc[2 * _L2:2 * _L2 + _PAD, :] = f2m
    wc[2 * _L2 + _PAD:, :] = f3m

    return {
        "bias": jnp.asarray(bias, jnp.float32),       # biases stay f32
        "wa": jnp.asarray(wa, jnp.bfloat16),          # conv1 W + pool1 selectors
        "m2": jnp.asarray(m2, jnp.bfloat16),          # conv2 banded taps
        "wc": jnp.asarray(wc, jnp.bfloat16),          # pool2 selectors + fc2 + fc3
        "g1": jnp.asarray(g1, jnp.bfloat16),          # fc1 (flatten folded in)
    }


# ---------------------------------------------------------------------------
# The fused kernel: one batch tile (B_TILE images) per grid program
# ---------------------------------------------------------------------------
def _lenet_fused_kernel(x_ref, bias_ref, wa_ref, m2_ref, wc_ref, g1_ref,
                        o_ref, s_ref):
    """
    x_ref   : (B_TILE*28, 480) bf16  rows = b*28 + h ; lanes = tap*96 + c*32 + w_in
    bias_ref: (8, 256)          f32  row0=conv1, row1=conv2, rows 2..4 = fc1..fc3
    wa_ref  : (816, 168)       bf16  [0:480]=conv1 W, [480:648]/[648:816]=pool1 sel
    m2_ref  : (5, 84, 160)     bf16  conv2 banded weights per kernel-row tap
    wc_ref  : (576, 128)       bf16  [0:160]/[160:320]=pool2 sel, [320:448]=fc2,
                                     [448:576]=fc3
    g1_ref  : (5, 80, 128)     bf16  fc1 weights per pooled row
    o_ref   : (B_TILE, 128)     f32  logits in lanes [0:10]
    s_ref   : (B_TILE*28, 84)   f32  VMEM staging scratch (q1 -> p1 -> q2)
    """
    bf16 = jnp.bfloat16
    nb = B_TILE

    def mm(a, b):
        return jnp.dot(a, b, preferred_element_type=jnp.float32)

    # ---- conv1 + bias + relu: ONE matmul, K = 480 (tap x channel x column) ----
    y1 = mm(x_ref[...], wa_ref[0:_K1, :]) + bias_ref[0:1, 0:_L1]     # (224, 168) f32
    y1 = jnp.maximum(y1, 0.0).astype(bf16)

    # ---- pool1, W direction: 0/1 selection matmuls (right-multiply, batch safe) --
    q1 = jnp.maximum(mm(y1, wa_ref[_K1:_K1 + _L1, 0:_L1P]),
                     mm(y1, wa_ref[_K1 + _L1:_K1 + 2 * _L1, 0:_L1P]))  # (224, 84)
    s_ref[...] = q1

    # ---- pool1, H direction on the VPU: even/odd strided sublane loads + max ----
    p1 = jnp.maximum(s_ref[pl.ds(0, nb * _H1P, stride=2), :],
                     s_ref[pl.ds(1, nb * _H1P, stride=2), :])          # (112, 84)
    s_ref[0:nb * _H1P, :] = p1
    # Rows [112:116) of s_ref keep finite stale q1 data from this iteration; they
    # only feed the per-image garbage output rows h = 10..13 below, never read.

    # ---- conv2 + bias + relu: 5 tap matmuls at M = 112 (14 rows/image kept) ----
    acc2 = jnp.zeros((nb * _H1P, _L2), jnp.float32)
    for i in range(_K):
        acc2 = acc2 + mm(s_ref[pl.ds(i, nb * _H1P), :].astype(bf16), m2_ref[i])
    y2 = jnp.maximum(acc2 + bias_ref[1:2, 0:_L2], 0.0).astype(bf16)    # (112, 160)

    # ---- pool2, W direction: selection matmuls ----
    q2 = jnp.maximum(mm(y2, wc_ref[0:_L2, 0:_L2P]),
                     mm(y2, wc_ref[_L2:2 * _L2, 0:_L2P]))              # (112, 80)
    s_ref[0:nb * _H1P, 0:_L2P] = q2

    # ---- pool2-H fused with fc1: per pooled row hp, gather each image's row pair
    #      (stride 14 rows/image), max on the VPU, one M=B_TILE matmul ----
    z = bias_ref[2:3, 0:_PAD]                                          # (1, 128)
    for hp in range(_H2P):
        re = s_ref[pl.ds(2 * hp, nb, stride=_H1P), 0:_L2P]             # (8, 80)
        ro = s_ref[pl.ds(2 * hp + 1, nb, stride=_H1P), 0:_L2P]
        z = z + mm(jnp.maximum(re, ro).astype(bf16), g1_ref[hp])       # (8, 128)
    z = jnp.maximum(z, 0.0).astype(bf16)

    # ---- fc2 + relu, fc3 (padded lanes stay exactly zero) ----
    z = jnp.maximum(mm(z, wc_ref[2 * _L2:2 * _L2 + _PAD, :])
                    + bias_ref[3:4, 0:_PAD], 0.0).astype(bf16)
    o_ref[...] = (mm(z, wc_ref[2 * _L2 + _PAD:2 * _L2 + 2 * _PAD, :])
                  + bias_ref[4:5, 0:_PAD])                             # (8, 128) f32


# ---------------------------------------------------------------------------
# Forward pass (mirrors Net.forward), single pallas_call over batch tiles
# ---------------------------------------------------------------------------
@jax.jit
def net_forward(kparams, x_nchw):
    B = x_nchw.shape[0]
    assert x_nchw.shape[1:] == (_C1_IN, _H_IN, _W_IN)
    B_pad = ((B + B_TILE - 1) // B_TILE) * B_TILE

    x = x_nchw.astype(jnp.float32)
    if B_pad != B:
        x = jnp.concatenate(
            [x, jnp.zeros((B_pad - B,) + x.shape[1:], jnp.float32)], axis=0)

    # NCHW -> (B, H, C*W) (tiny transpose), then concatenate the 5 kernel-row taps
    # along lanes so conv1 is a single K=480 matmul per tile (bf16 for the MXU).
    x_rows = x.transpose(0, 2, 1, 3).reshape(B_pad, _H_IN, _C1_IN * _W_IN)
    x1 = jnp.concatenate([x_rows[:, i:i + _H1, :] for i in range(_K)], axis=-1)
    x1 = x1.reshape(B_pad * _H1, _K1).astype(jnp.bfloat16)

    grid = (B_pad // B_TILE,)
    out_pad = pl.pallas_call(
        _lenet_fused_kernel,
        out_shape=jax.ShapeDtypeStruct((B_pad, _PAD), jnp.float32),
        grid=grid,
        in_specs=[
            pl.BlockSpec((B_TILE * _H1, _K1), lambda g: (g, 0)),
            pl.BlockSpec((8, 256), lambda g: (0, 0)),
            pl.BlockSpec((_K1 + 2 * _L1, _L1), lambda g: (0, 0)),
            pl.BlockSpec((_K, _L1P, _L2), lambda g: (0, 0, 0)),
            pl.BlockSpec((2 * _L2 + 2 * _PAD, _PAD), lambda g: (0, 0)),
            pl.BlockSpec((_H2P, _L2P, _PAD), lambda g: (0, 0, 0)),
        ],
        out_specs=pl.BlockSpec((B_TILE, _PAD), lambda g: (g, 0)),
        scratch_shapes=[pltpu.VMEM((B_TILE * _H1, _L1P), jnp.float32)],
        compiler_params=pltpu.CompilerParams(
            dimension_semantics=("parallel",)),
    )(x1, kparams["bias"], kparams["wa"], kparams["m2"], kparams["wc"],
      kparams["g1"])
    return out_pad[:B, :10]


# ---------------------------------------------------------------------------
# Pure-JAX reference (for correctness check only)
# ---------------------------------------------------------------------------
def net_forward_reference(p, x_nchw):
    x = x_nchw.astype(jnp.float32)

    def conv_valid(x, w, b):
        y = jax.lax.conv_general_dilated(
            x, w, window_strides=(1, 1), padding="VALID",
            dimension_numbers=("NCHW", "OIHW", "NCHW"))
        return y + b[None, :, None, None]

    def pool2x2(x):
        B, C, H, W = x.shape
        return x.reshape(B, C, H // 2, 2, W // 2, 2).max(axis=(3, 5))

    y = pool2x2(jax.nn.relu(conv_valid(x, p["conv1_w"], p["conv1_b"])))
    y = pool2x2(jax.nn.relu(conv_valid(y, p["conv2_w"], p["conv2_b"])))
    v = y.reshape(y.shape[0], 16 * 5 * 5)
    v = jax.nn.relu(v @ p["fc1_w"].T + p["fc1_b"])
    v = jax.nn.relu(v @ p["fc2_w"].T + p["fc2_b"])
    return v @ p["fc3_w"].T + p["fc3_b"]


if __name__ == "__main__":
    key = jax.random.PRNGKey(0)
    pkey, xkey = jax.random.split(key)
    torch_params = init_params(pkey)
    kparams = prepare_kernel_params(torch_params)

    # batch 12 (pads to 16 -> grid of 2 parallel steps), CIFAR-sized images.
    x = jax.random.normal(xkey, (12, 3, 32, 32), jnp.float32)

    out = jax.block_until_ready(net_forward(kparams, x))
    assert out.shape == (12, 10), out.shape
    assert bool(jnp.all(jnp.isfinite(out)))

    ref = jax.block_until_ready(net_forward_reference(torch_params, x))
    err = float(jnp.max(jnp.abs(out - ref)))
    # Tolerance intentionally accounts for bf16 matmul operands (f32 accumulation);
    # typical observed error is ~1e-2.
    assert err < 5e-2, f"max abs error vs reference: {err}"

    print("KERNEL_OK")
</pallas_src>

<mosaic_0001>
module attributes {stable_mosaic.version = 11 : i64} {
  func.func @_lenet_fused_kernel(%arg0: i32, %arg1: memref<224x480xbf16, #tpu.memory_space<vmem>>, %arg2: memref<8x256xf32, #tpu.memory_space<vmem>>, %arg3: memref<816x168xbf16, #tpu.memory_space<vmem>>, %arg4: memref<5x84x160xbf16, #tpu.memory_space<vmem>>, %arg5: memref<576x128xbf16, #tpu.memory_space<vmem>>, %arg6: memref<5x80x128xbf16, #tpu.memory_space<vmem>>, %arg7: memref<8x128xf32, #tpu.memory_space<vmem>>, %arg8: memref<224x84xf32, #tpu.memory_space<vmem>>) attributes {dimension_semantics = [#tpu.dimension_semantics<parallel>], iteration_bounds = array<i64: 2>, scalar_prefetch = 0 : i64, scratch_operands = 1 : i64, tpu.core_type = #tpu.core_type<tc>, window_params = [{transform_indices = @transform_0, window_bounds = array<i64: 224, 480>}, {pipeline_mode = #tpu.pipeline_mode<synchronous>, transform_indices = @transform_1, window_bounds = array<i64: 8, 256>}, {pipeline_mode = #tpu.pipeline_mode<synchronous>, transform_indices = @transform_2, window_bounds = array<i64: 816, 168>}, {pipeline_mode = #tpu.pipeline_mode<synchronous>, transform_indices = @transform_3, window_bounds = array<i64: 5, 84, 160>}, {pipeline_mode = #tpu.pipeline_mode<synchronous>, transform_indices = @transform_4, window_bounds = array<i64: 576, 128>}, {pipeline_mode = #tpu.pipeline_mode<synchronous>, transform_indices = @transform_5, window_bounds = array<i64: 5, 80, 128>}, {transform_indices = @transform_6, window_bounds = array<i64: 8, 128>}]} {
    %c0 = arith.constant 0 : index
    %c0_0 = arith.constant 0 : index
    %0 = vector.load %arg1[%c0, %c0_0] : memref<224x480xbf16, #tpu.memory_space<vmem>>, vector<224x480xbf16>
    %c0_1 = arith.constant 0 : index
    %c0_2 = arith.constant 0 : index
    %1 = vector.load %arg3[%c0_1, %c0_2] : memref<816x168xbf16, #tpu.memory_space<vmem>>, vector<480x168xbf16>
    %cst = arith.constant dense<0.000000e+00> : vector<224x168xf32>
    %2 = tpu.matmul %0, %1, %cst {dimension_numbers = #tpu.dot_dimension_numbers<[1], [0], [0], [1], [0, 0, 1, 1], [], []>} : vector<224x480xbf16>, vector<480x168xbf16>, vector<224x168xf32> -> vector<224x168xf32>
    %c0_3 = arith.constant 0 : index
    %c0_4 = arith.constant 0 : index
    %3 = vector.load %arg2[%c0_3, %c0_4] : memref<8x256xf32, #tpu.memory_space<vmem>>, vector<1x168xf32>
    %4 = vector.broadcast %3 : vector<1x168xf32> to vector<224x168xf32>
    %5 = arith.addf %2, %4 : vector<224x168xf32>
    %cst_5 = arith.constant 0.000000e+00 : f32
    %6 = vector.broadcast %cst_5 : f32 to vector<224x168xf32>
    %7 = arith.maximumf %5, %6 : vector<224x168xf32>
    %8 = arith.truncf %7 : vector<224x168xf32> to vector<224x168xbf16>
    %c480 = arith.constant 480 : index
    %c0_6 = arith.constant 0 : index
    %9 = vector.load %arg3[%c480, %c0_6] : memref<816x168xbf16, #tpu.memory_space<vmem>>, vector<168x84xbf16>
    %cst_7 = arith.constant dense<0.000000e+00> : vector<224x84xf32>
    %10 = tpu.matmul %8, %9, %cst_7 {dimension_numbers = #tpu.dot_dimension_numbers<[1], [0], [0], [1], [0, 0, 1, 1], [], []>} : vector<224x168xbf16>, vector<168x84xbf16>, vector<224x84xf32> -> vector<224x84xf32>
    %c648 = arith.constant 648 : index
    %c0_8 = arith.constant 0 : index
    %11 = vector.load %arg3[%c648, %c0_8] : memref<816x168xbf16, #tpu.memory_space<vmem>>, vector<168x84xbf16>
    %cst_9 = arith.constant dense<0.000000e+00> : vector<224x84xf32>
    %12 = tpu.matmul %8, %11, %cst_9 {dimension_numbers = #tpu.dot_dimension_numbers<[1], [0], [0], [1], [0, 0, 1, 1], [], []>} : vector<224x168xbf16>, vector<168x84xbf16>, vector<224x84xf32> -> vector<224x84xf32>
    %13 = arith.maximumf %10, %12 : vector<224x84xf32>
    %c0_10 = arith.constant 0 : index
    %c0_11 = arith.constant 0 : index
    %14 = vector.load %arg8[%c0_10, %c0_11] : memref<224x84xf32, #tpu.memory_space<vmem>>, vector<224x84xf32>
    tpu.vector_store %arg8[%c0_10, %c0_11], %13 {strides = array<i32>} : memref<224x84xf32, #tpu.memory_space<vmem>>, vector<224x84xf32>,
    %c0_12 = arith.constant 0 : index
    %c0_13 = arith.constant 0 : index
    %15 = tpu.strided_load %arg8[%c0_12, %c0_13] {strides = array<i32: 2, 1>} : memref<224x84xf32, #tpu.memory_space<vmem>>, vector<112x84xf32>
    %c1 = arith.constant 1 : index
    %c0_14 = arith.constant 0 : index
    %16 = tpu.strided_load %arg8[%c1, %c0_14] {strides = array<i32: 2, 1>} : memref<224x84xf32, #tpu.memory_space<vmem>>, vector<112x84xf32>
    %17 = arith.maximumf %15, %16 : vector<112x84xf32>
    %c0_15 = arith.constant 0 : index
    %c0_16 = arith.constant 0 : index
    %18 = vector.load %arg8[%c0_15, %c0_16] : memref<224x84xf32, #tpu.memory_space<vmem>>, vector<112x84xf32>
    tpu.vector_store %arg8[%c0_15, %c0_16], %17 {strides = array<i32>} : memref<224x84xf32, #tpu.memory_space<vmem>>, vector<112x84xf32>,
    %cst_17 = arith.constant 0.000000e+00 : f32
    %19 = vector.broadcast %cst_17 : f32 to vector<112x160xf32>
    %c0_18 = arith.constant 0 : index
    %c0_19 = arith.constant 0 : index
    %20 = vector.load %arg8[%c0_18, %c0_19] : memref<224x84xf32, #tpu.memory_space<vmem>>, vector<112x84xf32>
    %21 = arith.truncf %20 : vector<112x84xf32> to vector<112x84xbf16>
    %c0_20 = arith.constant 0 : index
    %c0_21 = arith.constant 0 : index
    %c0_22 = arith.constant 0 : index
    %22 = vector.load %arg4[%c0_20, %c0_21, %c0_22] : memref<5x84x160xbf16, #tpu.memory_space<vmem>>, vector<1x84x160xbf16>
    %23 = vector.shape_cast %22 : vector<1x84x160xbf16> to vector<84x160xbf16>
    %cst_23 = arith.constant dense<0.000000e+00> : vector<112x160xf32>
    %24 = tpu.matmul %21, %23, %cst_23 {dimension_numbers = #tpu.dot_dimension_numbers<[1], [0], [0], [1], [0, 0, 1, 1], [], []>} : vector<112x84xbf16>, vector<84x160xbf16>, vector<112x160xf32> -> vector<112x160xf32>
    %25 = arith.addf %19, %24 : vector<112x160xf32>
    %c1_24 = arith.constant 1 : index
    %c0_25 = arith.constant 0 : index
    %26 = vector.load %arg8[%c1_24, %c0_25] : memref<224x84xf32, #tpu.memory_space<vmem>>, vector<112x84xf32>
    %27 = arith.truncf %26 : vector<112x84xf32> to vector<112x84xbf16>
    %c1_26 = arith.constant 1 : index
    %c0_27 = arith.constant 0 : index
    %c0_28 = arith.constant 0 : index
    %28 = vector.load %arg4[%c1_26, %c0_27, %c0_28] : memref<5x84x160xbf16, #tpu.memory_space<vmem>>, vector<1x84x160xbf16>
    %29 = vector.shape_cast %28 : vector<1x84x160xbf16> to vector<84x160xbf16>
    %cst_29 = arith.constant dense<0.000000e+00> : vector<112x160xf32>
    %30 = tpu.matmul %27, %29, %cst_29 {dimension_numbers = #tpu.dot_dimension_numbers<[1], [0], [0], [1], [0, 0, 1, 1], [], []>} : vector<112x84xbf16>, vector<84x160xbf16>, vector<112x160xf32> -> vector<112x160xf32>
    %31 = arith.addf %25, %30 : vector<112x160xf32>
    %c2 = arith.constant 2 : index
    %c0_30 = arith.constant 0 : index
    %32 = vector.load %arg8[%c2, %c0_30] : memref<224x84xf32, #tpu.memory_space<vmem>>, vector<112x84xf32>
    %33 = arith.truncf %32 : vector<112x84xf32> to vector<112x84xbf16>
    %c2_31 = arith.constant 2 : index
    %c0_32 = arith.constant 0 : index
    %c0_33 = arith.constant 0 : index
    %34 = vector.load %arg4[%c2_31, %c0_32, %c0_33] : memref<5x84x160xbf16, #tpu.memory_space<vmem>>, vector<1x84x160xbf16>
    %35 = vector.shape_cast %34 : vector<1x84x160xbf16> to vector<84x160xbf16>
    %cst_34 = arith.constant dense<0.000000e+00> : vector<112x160xf32>
    %36 = tpu.matmul %33, %35, %cst_34 {dimension_numbers = #tpu.dot_dimension_numbers<[1], [0], [0], [1], [0, 0, 1, 1], [], []>} : vector<112x84xbf16>, vector<84x160xbf16>, vector<112x160xf32> -> vector<112x160xf32>
    %37 = arith.addf %31, %36 : vector<112x160xf32>
    %c3 = arith.constant 3 : index
    %c0_35 = arith.constant 0 : index
    %38 = vector.load %arg8[%c3, %c0_35] : memref<224x84xf32, #tpu.memory_space<vmem>>, vector<112x84xf32>
    %39 = arith.truncf %38 : vector<112x84xf32> to vector<112x84xbf16>
    %c3_36 = arith.constant 3 : index
    %c0_37 = arith.constant 0 : index
    %c0_38 = arith.constant 0 : index
    %40 = vector.load %arg4[%c3_36, %c0_37, %c0_38] : memref<5x84x160xbf16, #tpu.memory_space<vmem>>, vector<1x84x160xbf16>
    %41 = vector.shape_cast %40 : vector<1x84x160xbf16> to vector<84x160xbf16>
    %cst_39 = arith.constant dense<0.000000e+00> : vector<112x160xf32>
    %42 = tpu.matmul %39, %41, %cst_39 {dimension_numbers = #tpu.dot_dimension_numbers<[1], [0], [0], [1], [0, 0, 1, 1], [], []>} : vector<112x84xbf16>, vector<84x160xbf16>, vector<112x160xf32> -> vector<112x160xf32>
    %43 = arith.addf %37, %42 : vector<112x160xf32>
    %c4 = arith.constant 4 : index
    %c0_40 = arith.constant 0 : index
    %44 = vector.load %arg8[%c4, %c0_40] : memref<224x84xf32, #tpu.memory_space<vmem>>, vector<112x84xf32>
    %45 = arith.truncf %44 : vector<112x84xf32> to vector<112x84xbf16>
    %c4_41 = arith.constant 4 : index
    %c0_42 = arith.constant 0 : index
    %c0_43 = arith.constant 0 : index
    %46 = vector.load %arg4[%c4_41, %c0_42, %c0_43] : memref<5x84x160xbf16, #tpu.memory_space<vmem>>, vector<1x84x160xbf16>
    %47 = vector.shape_cast %46 : vector<1x84x160xbf16> to vector<84x160xbf16>
    %cst_44 = arith.constant dense<0.000000e+00> : vector<112x160xf32>
    %48 = tpu.matmul %45, %47, %cst_44 {dimension_numbers = #tpu.dot_dimension_numbers<[1], [0], [0], [1], [0, 0, 1, 1], [], []>} : vector<112x84xbf16>, vector<84x160xbf16>, vector<112x160xf32> -> vector<112x160xf32>
    %49 = arith.addf %43, %48 : vector<112x160xf32>
    %c1_45 = arith.constant 1 : index
    %c0_46 = arith.constant 0 : index
    %50 = vector.load %arg2[%c1_45, %c0_46] : memref<8x256xf32, #tpu.memory_space<vmem>>, vector<1x160xf32>
    %51 = vector.broadcast %50 : vector<1x160xf32> to vector<112x160xf32>
    %52 = arith.addf %49, %51 : vector<112x160xf32>
    %cst_47 = arith.constant 0.000000e+00 : f32
    %53 = vector.broadcast %cst_47 : f32 to vector<112x160xf32>
    %54 = arith.maximumf %52, %53 : vector<112x160xf32>
    %55 = arith.truncf %54 : vector<112x160xf32> to vector<112x160xbf16>
    %c0_48 = arith.constant 0 : index
    %c0_49 = arith.constant 0 : index
    %56 = vector.load %arg5[%c0_48, %c0_49] : memref<576x128xbf16, #tpu.memory_space<vmem>>, vector<160x80xbf16>
    %cst_50 = arith.constant dense<0.000000e+00> : vector<112x80xf32>
    %57 = tpu.matmul %55, %56, %cst_50 {dimension_numbers = #tpu.dot_dimension_numbers<[1], [0], [0], [1], [0, 0, 1, 1], [], []>} : vector<112x160xbf16>, vector<160x80xbf16>, vector<112x80xf32> -> vector<112x80xf32>
    %c160 = arith.constant 160 : index
    %c0_51 = arith.constant 0 : index
    %58 = vector.load %arg5[%c160, %c0_51] : memref<576x128xbf16, #tpu.memory_space<vmem>>, vector<160x80xbf16>
    %cst_52 = arith.constant dense<0.000000e+00> : vector<112x80xf32>
    %59 = tpu.matmul %55, %58, %cst_52 {dimension_numbers = #tpu.dot_dimension_numbers<[1], [0], [0], [1], [0, 0, 1, 1], [], []>} : vector<112x160xbf16>, vector<160x80xbf16>, vector<112x80xf32> -> vector<112x80xf32>
    %60 = arith.maximumf %57, %59 : vector<112x80xf32>
    %c0_53 = arith.constant 0 : index
    %c0_54 = arith.constant 0 : index
    %61 = vector.load %arg8[%c0_53, %c0_54] : memref<224x84xf32, #tpu.memory_space<vmem>>, vector<112x80xf32>
    tpu.vector_store %arg8[%c0_53, %c0_54], %60 {strides = array<i32>} : memref<224x84xf32, #tpu.memory_space<vmem>>, vector<112x80xf32>,
    %c2_55 = arith.constant 2 : index
    %c0_56 = arith.constant 0 : index
    %62 = vector.load %arg2[%c2_55, %c0_56] : memref<8x256xf32, #tpu.memory_space<vmem>>, vector<1x128xf32>
    %c0_57 = arith.constant 0 : index
    %c0_58 = arith.constant 0 : index
    %63 = tpu.strided_load %arg8[%c0_57, %c0_58] {strides = array<i32: 14, 1>} : memref<224x84xf32, #tpu.memory_space<vmem>>, vector<8x80xf32>
    %c1_59 = arith.constant 1 : index
    %c0_60 = arith.constant 0 : index
    %64 = tpu.strided_load %arg8[%c1_59, %c0_60] {strides = array<i32: 14, 1>} : memref<224x84xf32, #tpu.memory_space<vmem>>, vector<8x80xf32>
    %65 = arith.maximumf %63, %64 : vector<8x80xf32>
    %66 = arith.truncf %65 : vector<8x80xf32> to vector<8x80xbf16>
    %c0_61 = arith.constant 0 : index
    %c0_62 = arith.constant 0 : index
    %c0_63 = arith.constant 0 : index
    %67 = vector.load %arg6[%c0_61, %c0_62, %c0_63] : memref<5x80x128xbf16, #tpu.memory_space<vmem>>, vector<1x80x128xbf16>
    %68 = vector.shape_cast %67 : vector<1x80x128xbf16> to vector<80x128xbf16>
    %cst_64 = arith.constant dense<0.000000e+00> : vector<8x128xf32>
    %69 = tpu.matmul %66, %68, %cst_64 {dimension_numbers = #tpu.dot_dimension_numbers<[1], [0], [0], [1], [0, 0, 1, 1], [], []>} : vector<8x80xbf16>, vector<80x128xbf16>, vector<8x128xf32> -> vector<8x128xf32>
    %70 = vector.broadcast %62 : vector<1x128xf32> to vector<8x128xf32>
    %71 = arith.addf %70, %69 : vector<8x128xf32>
    %c2_65 = arith.constant 2 : index
    %c0_66 = arith.constant 0 : index
    %72 = tpu.strided_load %arg8[%c2_65, %c0_66] {strides = array<i32: 14, 1>} : memref<224x84xf32, #tpu.memory_space<vmem>>, vector<8x80xf32>
    %c3_67 = arith.constant 3 : index
    %c0_68 = arith.constant 0 : index
    %73 = tpu.strided_load %arg8[%c3_67, %c0_68] {strides = array<i32: 14, 1>} : memref<224x84xf32, #tpu.memory_space<vmem>>, vector<8x80xf32>
    %74 = arith.maximumf %72, %73 : vector<8x80xf32>
    %75 = arith.truncf %74 : vector<8x80xf32> to vector<8x80xbf16>
    %c1_69 = arith.constant 1 : index
    %c0_70 = arith.constant 0 : index
    %c0_71 = arith.constant 0 : index
    %76 = vector.load %arg6[%c1_69, %c0_70, %c0_71] : memref<5x80x128xbf16, #tpu.memory_space<vmem>>, vector<1x80x128xbf16>
    %77 = vector.shape_cast %76 : vector<1x80x128xbf16> to vector<80x128xbf16>
    %cst_72 = arith.constant dense<0.000000e+00> : vector<8x128xf32>
    %78 = tpu.matmul %75, %77, %cst_72 {dimension_numbers = #tpu.dot_dimension_numbers<[1], [0], [0], [1], [0, 0, 1, 1], [], []>} : vector<8x80xbf16>, vector<80x128xbf16>, vector<8x128xf32> -> vector<8x128xf32>
    %79 = arith.addf %71, %78 : vector<8x128xf32>
    %c4_73 = arith.constant 4 : index
    %c0_74 = arith.constant 0 : index
    %80 = tpu.strided_load %arg8[%c4_73, %c0_74] {strides = array<i32: 14, 1>} : memref<224x84xf32, #tpu.memory_space<vmem>>, vector<8x80xf32>
    %c5 = arith.constant 5 : index
    %c0_75 = arith.constant 0 : index
    %81 = tpu.strided_load %arg8[%c5, %c0_75] {strides = array<i32: 14, 1>} : memref<224x84xf32, #tpu.memory_space<vmem>>, vector<8x80xf32>
    %82 = arith.maximumf %80, %81 : vector<8x80xf32>
    %83 = arith.truncf %82 : vector<8x80xf32> to vector<8x80xbf16>
    %c2_76 = arith.constant 2 : index
    %c0_77 = arith.constant 0 : index
    %c0_78 = arith.constant 0 : index
    %84 = vector.load %arg6[%c2_76, %c0_77, %c0_78] : memref<5x80x128xbf16, #tpu.memory_space<vmem>>, vector<1x80x128xbf16>
    %85 = vector.shape_cast %84 : vector<1x80x128xbf16> to vector<80x128xbf16>
    %cst_79 = arith.constant dense<0.000000e+00> : vector<8x128xf32>
    %86 = tpu.matmul %83, %85, %cst_79 {dimension_numbers = #tpu.dot_dimension_numbers<[1], [0], [0], [1], [0, 0, 1, 1], [], []>} : vector<8x80xbf16>, vector<80x128xbf16>, vector<8x128xf32> -> vector<8x128xf32>
    %87 = arith.addf %79, %86 : vector<8x128xf32>
    %c6 = arith.constant 6 : index
    %c0_80 = arith.constant 0 : index
    %88 = tpu.strided_load %arg8[%c6, %c0_80] {strides = array<i32: 14, 1>} : memref<224x84xf32, #tpu.memory_space<vmem>>, vector<8x80xf32>
    %c7 = arith.constant 7 : index
    %c0_81 = arith.constant 0 : index
    %89 = tpu.strided_load %arg8[%c7, %c0_81] {strides = array<i32: 14, 1>} : memref<224x84xf32, #tpu.memory_space<vmem>>, vector<8x80xf32>
    %90 = arith.maximumf %88, %89 : vector<8x80xf32>
    %91 = arith.truncf %90 : vector<8x80xf32> to vector<8x80xbf16>
    %c3_82 = arith.constant 3 : index
    %c0_83 = arith.constant 0 : index
    %c0_84 = arith.constant 0 : index
    %92 = vector.load %arg6[%c3_82, %c0_83, %c0_84] : memref<5x80x128xbf16, #tpu.memory_space<vmem>>, vector<1x80x128xbf16>
    %93 = vector.shape_cast %92 : vector<1x80x128xbf16> to vector<80x128xbf16>
    %cst_85 = arith.constant dense<0.000000e+00> : vector<8x128xf32>
    %94 = tpu.matmul %91, %93, %cst_85 {dimension_numbers = #tpu.dot_dimension_numbers<[1], [0], [0], [1], [0, 0, 1, 1], [], []>} : vector<8x80xbf16>, vector<80x128xbf16>, vector<8x128xf32> -> vector<8x128xf32>
    %95 = arith.addf %87, %94 : vector<8x128xf32>
    %c8 = arith.constant 8 : index
    %c0_86 = arith.constant 0 : index
    %96 = tpu.strided_load %arg8[%c8, %c0_86] {strides = array<i32: 14, 1>} : memref<224x84xf32, #tpu.memory_space<vmem>>, vector<8x80xf32>
    %c9 = arith.constant 9 : index
    %c0_87 = arith.constant 0 : index
    %97 = tpu.strided_load %arg8[%c9, %c0_87] {strides = array<i32: 14, 1>} : memref<224x84xf32, #tpu.memory_space<vmem>>, vector<8x80xf32>
    %98 = arith.maximumf %96, %97 : vector<8x80xf32>
    %99 = arith.truncf %98 : vector<8x80xf32> to vector<8x80xbf16>
    %c4_88 = arith.constant 4 : index
    %c0_89 = arith.constant 0 : index
    %c0_90 = arith.constant 0 : index
    %100 = vector.load %arg6[%c4_88, %c0_89, %c0_90] : memref<5x80x128xbf16, #tpu.memory_space<vmem>>, vector<1x80x128xbf16>
    %101 = vector.shape_cast %100 : vector<1x80x128xbf16> to vector<80x128xbf16>
    %cst_91 = arith.constant dense<0.000000e+00> : vector<8x128xf32>
    %102 = tpu.matmul %99, %101, %cst_91 {dimension_numbers = #tpu.dot_dimension_numbers<[1], [0], [0], [1], [0, 0, 1, 1], [], []>} : vector<8x80xbf16>, vector<80x128xbf16>, vector<8x128xf32> -> vector<8x128xf32>
    %103 = arith.addf %95, %102 : vector<8x128xf32>
    %cst_92 = arith.constant 0.000000e+00 : f32
    %104 = vector.broadcast %cst_92 : f32 to vector<8x128xf32>
    %105 = arith.maximumf %103, %104 : vector<8x128xf32>
    %106 = arith.truncf %105 : vector<8x128xf32> to vector<8x128xbf16>
    %c320 = arith.constant 320 : index
    %c0_93 = arith.constant 0 : index
    %107 = vector.load %arg5[%c320, %c0_93] : memref<576x128xbf16, #tpu.memory_space<vmem>>, vector<128x128xbf16>
    %cst_94 = arith.constant dense<0.000000e+00> : vector<8x128xf32>
    %108 = tpu.matmul %106, %107, %cst_94 {dimension_numbers = #tpu.dot_dimension_numbers<[1], [0], [0], [1], [0, 0, 1, 1], [], []>} : vector<8x128xbf16>, vector<128x128xbf16>, vector<8x128xf32> -> vector<8x128xf32>
    %c3_95 = arith.constant 3 : index
    %c0_96 = arith.constant 0 : index
    %109 = vector.load %arg2[%c3_95, %c0_96] : memref<8x256xf32, #tpu.memory_space<vmem>>, vector<1x128xf32>
    %110 = vector.broadcast %109 : vector<1x128xf32> to vector<8x128xf32>
    %111 = arith.addf %108, %110 : vector<8x128xf32>
    %cst_97 = arith.constant 0.000000e+00 : f32
    %112 = vector.broadcast %cst_97 : f32 to vector<8x128xf32>
    %113 = arith.maximumf %111, %112 : vector<8x128xf32>
    %114 = arith.truncf %113 : vector<8x128xf32> to vector<8x128xbf16>
    %c448 = arith.constant 448 : index
    %c0_98 = arith.constant 0 : index
    %115 = vector.load %arg5[%c448, %c0_98] : memref<576x128xbf16, #tpu.memory_space<vmem>>, vector<128x128xbf16>
    %cst_99 = arith.constant dense<0.000000e+00> : vector<8x128xf32>
    %116 = tpu.matmul %114, %115, %cst_99 {dimension_numbers = #tpu.dot_dimension_numbers<[1], [0], [0], [1], [0, 0, 1, 1], [], []>} : vector<8x128xbf16>, vector<128x128xbf16>, vector<8x128xf32> -> vector<8x128xf32>
    %c4_100 = arith.constant 4 : index
    %c0_101 = arith.constant 0 : index
    %117 = vector.load %arg2[%c4_100, %c0_101] : memref<8x256xf32, #tpu.memory_space<vmem>>, vector<1x128xf32>
    %118 = vector.broadcast %117 : vector<1x128xf32> to vector<8x128xf32>
    %119 = arith.addf %116, %118 : vector<8x128xf32>
    %c0_102 = arith.constant 0 : index
    %c0_103 = arith.constant 0 : index
    %120 = vector.load %arg7[%c0_102, %c0_103] : memref<8x128xf32, #tpu.memory_space<vmem>>, vector<8x128xf32>
    tpu.vector_store %arg7[%c0_102, %c0_103], %119 {strides = array<i32>} : memref<8x128xf32, #tpu.memory_space<vmem>>, vector<8x128xf32>,
    return
  }
  func.func @transform_0(%arg0: i32) -> (i32, i32) {
    %c0_i32 = arith.constant 0 : i32
    %c0_i32_0 = arith.constant 0 : i32
    return %arg0, %c0_i32 : i32, i32
  }
  func.func @transform_1(%arg0: i32) -> (i32, i32) {
    %c0_i32 = arith.constant 0 : i32
    %c0_i32_0 = arith.constant 0 : i32
    %c0_i32_1 = arith.constant 0 : i32
    return %c0_i32, %c0_i32_0 : i32, i32
  }
  func.func @transform_2(%arg0: i32) -> (i32, i32) {
    %c0_i32 = arith.constant 0 : i32
    %c0_i32_0 = arith.constant 0 : i32
    %c0_i32_1 = arith.constant 0 : i32
    return %c0_i32, %c0_i32_0 : i32, i32
  }
  func.func @transform_3(%arg0: i32) -> (i32, i32, i32) {
    %c0_i32 = arith.constant 0 : i32
    %c0_i32_0 = arith.constant 0 : i32
    %c0_i32_1 = arith.constant 0 : i32
    %c0_i32_2 = arith.constant 0 : i32
    return %c0_i32, %c0_i32_0, %c0_i32_1 : i32, i32, i32
  }
  func.func @transform_4(%arg0: i32) -> (i32, i32) {
    %c0_i32 = arith.constant 0 : i32
    %c0_i32_0 = arith.constant 0 : i32
    %c0_i32_1 = arith.constant 0 : i32
    return %c0_i32, %c0_i32_0 : i32, i32
  }
  func.func @transform_5(%arg0: i32) -> (i32, i32, i32) {
    %c0_i32 = arith.constant 0 : i32
    %c0_i32_0 = arith.constant 0 : i32
    %c0_i32_1 = arith.constant 0 : i32
    %c0_i32_2 = arith.constant 0 : i32
    return %c0_i32, %c0_i32_0, %c0_i32_1 : i32, i32, i32
  }
  func.func @transform_6(%arg0: i32) -> (i32, i32) {
    %c0_i32 = arith.constant 0 : i32
    %c0_i32_0 = arith.constant 0 : i32
    return %arg0, %c0_i32 : i32, i32
  }
}

</mosaic_0001>

<llo_original>
// kernel: net_forward.1
$region0: #{net_forward.1}
  #allocation0 [shape = 'u32[]', space=smem, size = 0x4, offset = 0x4, fixed_abs, tag = 'smem constant byte address 0x4 - core index']
  #allocation1 [shape = 'u32[144,128]{1,0:T(1,128)}', space=vmem, size = 0x12000, scoped, tag = 'internal scratch']
  #allocation2 [shape = 'f32[224,84]{1,0:T(8,128)}', space=vmem, size = 0x1c000, scoped, tag = 'scratch operand']
  %s0 = inlined_call_operand.vmem [shape: bf16[448,480], index: 0, kind: input, shape index: {}]
  %s1 = inlined_call_operand.vmem [shape: f32[8,256], index: 1, kind: input, shape index: {}]
  %s2 = inlined_call_operand.vmem [shape: bf16[816,168], index: 2, kind: input, shape index: {}]
  %s3 = inlined_call_operand.vmem [shape: bf16[5,84,160], index: 3, kind: input, shape index: {}]
  %s4 = inlined_call_operand.vmem [shape: bf16[576,128], index: 4, kind: input, shape index: {}]
  %s5 = inlined_call_operand.vmem [shape: bf16[5,80,128], index: 5, kind: input, shape index: {}]
  %s6 = inlined_call_operand.hbm [shape: f32[16,128], index: 6, kind: output, shape index: {}]
  %s7 = sld [smem:[#allocation0]]
  $region57: #{net_forward.1} parent=0
    _
  %s9 = ssub.s32 1, %s7
  %s10 = scalar_select 0, %s9, %s7
  $region1: #{net_forward.1} parent=0
    #allocation3 [shape = 'u8[8192]{0}', space=vmem, size = 0x2000, scoped, tag = 'output window, operand 0']
    #allocation4 [shape = 's32[2]{0}', space=sflag, size = 0x8, scoped, tag = 'scoped memory for net_forward.1']
    %11 = vsyncpa [#allocation4], 0
    %s12 = scalar_lea.sflag [#allocation4], 1
    %13 = vsyncpa %s12, 0
    loop: start=0, step=1, limit=4
    $region2: #{net_forward.1} parent=1 // loop_pre_header
      _
    $region3: #{net_forward.1} parent=1 // loop_header
      %s15 = sphi 0, %s19
      %p16 = scmp.ge.s32.totalorder %s15, 4
      %s25 = sphi 0, %s27
      %s28 = sphi 0, %s25
      %s29 = sphi 0, %s28
      %s45 = sphi 0, %s29
      %s49 = sphi 0, %s49
      %s51 = sphi 0, %s49
      %s52 = sphi 0, %s51
      %s66 = sphi 0, %s52
      %s70 = sphi 0, %s70
      %s72 = sphi 0, %s70
      %s73 = sphi 0, %s72
      %s87 = sphi 0, %s73
      %s91 = sphi 0, %s91
      %s93 = sphi 0, %s91
      %s94 = sphi 0, %s93
      %s108 = sphi 0, %s94
      %s112 = sphi 0, %s112
      %s114 = sphi 0, %s112
      %s115 = sphi 0, %s114
      %s129 = sphi 0, %s115
      %s133 = sphi 0, %s133
      %s135 = sphi 0, %s133
      %s136 = sphi 0, %s135
      %s150 = sphi 0, %s136
      %s156 = sphi 0, %s158
      %s159 = sphi 0, %s156
      %s160 = sphi 0, %s159
      %s176 = sphi 0, %s160
    $region4: #{net_forward.1} parent=1 // loop_header_branch
      %18 = sbr.rel (%p16) target = $region8
    $region5: #{net_forward.1} parent=1 // loop_body
      %s20 = ssub.s32 %s15, 1
      %s21 = ssub.s32 %s15, 2
      %s22 = sadd.s32 %s15, 1
      %s23 = ssub.s32 %s15, %s22
      %p24 = scmp.eq.s32.totalorder %s23, 0
      %s26 = sadd.s32 %s25, 1
      %s27 = scalar_select %p24, %s25, %s26
      %p30 = pneg %p24
      %p31 = scmp.eq.s32.totalorder %s15, 1
      %p32 = por %p30, %p31
      %p33 = scmp.ne.s32.totalorder %s25, %s28
      %p34 = scmp.eq.s32.totalorder %s15, 0
      %p35 = por %p33, %p34
      %p36 = scmp.ne.s32.totalorder %s25, %s28
      %p37 = scmp.eq.s32.totalorder %s20, 1
      %p38 = por %p36, %p37
      %p39 = scmp.ne.s32.totalorder %s28, %s29
      %p40 = scmp.eq.s32.totalorder %s20, 0
      %p41 = por %p39, %p40
      %p42 = scmp.ne.s32.totalorder %s28, %s29
      %p43 = scmp.eq.s32.totalorder %s21, 1
      %p44 = por %p42, %p43
      %p46 = scmp.ne.s32.totalorder %s29, %s45
      %p47 = scmp.eq.s32.totalorder %s21, 0
      %p48 = por %p46, %p47
      %s50 = sadd.s32 %s49, 1
      %p53 = scmp.eq.s32.totalorder %s15, 1
      %p54 = scmp.ne.s32.totalorder %s49, %s51
      %p55 = scmp.eq.s32.totalorder %s15, 0
      %p56 = por %p54, %p55
      %p57 = scmp.ne.s32.totalorder %s49, %s51
      %p58 = scmp.eq.s32.totalorder %s20, 1
      %p59 = por %p57, %p58
      %p60 = scmp.ne.s32.totalorder %s51, %s52
      %p61 = scmp.eq.s32.totalorder %s20, 0
      %p62 = por %p60, %p61
      %p63 = scmp.ne.s32.totalorder %s51, %s52
      %p64 = scmp.eq.s32.totalorder %s21, 1
      %p65 = por %p63, %p64
      %p67 = scmp.ne.s32.totalorder %s52, %s66
      %p68 = scmp.eq.s32.totalorder %s21, 0
      %p69 = por %p67, %p68
      %s71 = sadd.s32 %s70, 1
      %p74 = scmp.eq.s32.totalorder %s15, 1
      %p75 = scmp.ne.s32.totalorder %s70, %s72
      %p76 = scmp.eq.s32.totalorder %s15, 0
      %p77 = por %p75, %p76
      %p78 = scmp.ne.s32.totalorder %s70, %s72
      %p79 = scmp.eq.s32.totalorder %s20, 1
      %p80 = por %p78, %p79
      %p81 = scmp.ne.s32.totalorder %s72, %s73
      %p82 = scmp.eq.s32.totalorder %s20, 0
      %p83 = por %p81, %p82
      %p84 = scmp.ne.s32.totalorder %s72, %s73
      %p85 = scmp.eq.s32.totalorder %s21, 1
      %p86 = por %p84, %p85
      %p88 = scmp.ne.s32.totalorder %s73, %s87
      %p89 = scmp.eq.s32.totalorder %s21, 0
      %p90 = por %p88, %p89
      %s92 = sadd.s32 %s91, 1
      %p95 = scmp.eq.s32.totalorder %s15, 1
      %p96 = scmp.ne.s32.totalorder %s91, %s93
      %p97 = scmp.eq.s32.totalorder %s15, 0
      %p98 = por %p96, %p97
      %p99 = scmp.ne.s32.totalorder %s91, %s93
      %p100 = scmp.eq.s32.totalorder %s20, 1
      %p101 = por %p99, %p100
      %p102 = scmp.ne.s32.totalorder %s93, %s94
      %p103 = scmp.eq.s32.totalorder %s20, 0
      %p104 = por %p102, %p103
      %p105 = scmp.ne.s32.totalorder %s93, %s94
      %p106 = scmp.eq.s32.totalorder %s21, 1
      %p107 = por %p105, %p106
      %p109 = scmp.ne.s32.totalorder %s94, %s108
      %p110 = scmp.eq.s32.totalorder %s21, 0
      %p111 = por %p109, %p110
      %s113 = sadd.s32 %s112, 1
      %p116 = scmp.eq.s32.totalorder %s15, 1
      %p117 = scmp.ne.s32.totalorder %s112, %s114
      %p118 = scmp.eq.s32.totalorder %s15, 0
      %p119 = por %p117, %p118
      %p120 = scmp.ne.s32.totalorder %s112, %s114
      %p121 = scmp.eq.s32.totalorder %s20, 1
      %p122 = por %p120, %p121
      %p123 = scmp.ne.s32.totalorder %s114, %s115
      %p124 = scmp.eq.s32.totalorder %s20, 0
      %p125 = por %p123, %p124
      %p126 = scmp.ne.s32.totalorder %s114, %s115
      %p127 = scmp.eq.s32.totalorder %s21, 1
      %p128 = por %p126, %p127
      %p130 = scmp.ne.s32.totalorder %s115, %s129
      %p131 = scmp.eq.s32.totalorder %s21, 0
      %p132 = por %p130, %p131
      %s134 = sadd.s32 %s133, 1
      %p137 = scmp.eq.s32.totalorder %s15, 1
      %p138 = scmp.ne.s32.totalorder %s133, %s135
      %p139 = scmp.eq.s32.totalorder %s15, 0
      %p140 = por %p138, %p139
      %p141 = scmp.ne.s32.totalorder %s133, %s135
      %p142 = scmp.eq.s32.totalorder %s20, 1
      %p143 = por %p141, %p142
      %p144 = scmp.ne.s32.totalorder %s135, %s136
      %p145 = scmp.eq.s32.totalorder %s20, 0
      %p146 = por %p144, %p145
      %p147 = scmp.ne.s32.totalorder %s135, %s136
      %p148 = scmp.eq.s32.totalorder %s21, 1
      %p149 = por %p147, %p148
      %p151 = scmp.ne.s32.totalorder %s136, %s150
      %p152 = scmp.eq.s32.totalorder %s21, 0
      %p153 = por %p151, %p152
      %s154 = ssub.s32 %s15, %s22
      %p155 = scmp.eq.s32.totalorder %s154, 0
      %s157 = sadd.s32 %s156, 1
      %s158 = scalar_select %p155, %s156, %s157
      %p161 = pneg %p155
      %p162 = scmp.eq.s32.totalorder %s15, 1
      %p163 = por %p161, %p162
      %p164 = scmp.ne.s32.totalorder %s156, %s159
      %p165 = scmp.eq.s32.totalorder %s15, 0
      %p166 = por %p164, %p165
      %p167 = scmp.ne.s32.totalorder %s156, %s159
      %p168 = scmp.eq.s32.totalorder %s20, 1
      %p169 = por %p167, %p168
      %p170 = scmp.ne.s32.totalorder %s159, %s160
      %p171 = scmp.eq.s32.totalorder %s20, 0
      %p172 = por %p170, %p171
      %p173 = scmp.ne.s32.totalorder %s159, %s160
      %p174 = scmp.eq.s32.totalorder %s21, 1
      %p175 = por %p173, %p174
      %p177 = scmp.ne.s32.totalorder %s160, %s176
      %p178 = scmp.eq.s32.totalorder %s21, 0
      %p179 = por %p177, %p178
      %p180 = scmp.le.s32.totalorder 1, %s15
      %p181 = scmp.lt.s32.totalorder %s15, 3
      %p182 = pnand %p180, %p181
      %p183 = pneg %p182
      // Predicated region
      $region9: #{net_forward.1} parent=5 // pred_check
        _
      $region10: #{net_forward.1} parent=5 // pred_check_branch
        %185 = sbr.rel (%p182) target = $region12
      $region11: #{net_forward.1} parent=5 // pred_region
        %s186 = ssub.s32 %s15, 1
        // Predicated region
        $region13: #{net_forward.1} parent=11 // pred_check
          %p187 = pneg %p62
        $region14: #{net_forward.1} parent=11 // pred_check_branch
          %189 = sbr.rel (%p187) target = $region16
        $region15: #{net_forward.1} parent=11 // pred_region
          _
        $region16: #{net_forward.1} parent=11 // pred_fallthru
          _
        // Predicated region
        $region17: #{net_forward.1} parent=11 // pred_check
          %p190 = pneg %p83
        $region18: #{net_forward.1} parent=11 // pred_check_branch
          %192 = sbr.rel (%p190) target = $region20
        $region19: #{net_forward.1} parent=11 // pred_region
          _
        $region20: #{net_forward.1} parent=11 // pred_fallthru
          _
        // Predicated region
        $region21: #{net_forward.1} parent=11 // pred_check
          %p193 = pneg %p104
        $region22: #{net_forward.1} parent=11 // pred_check_branch
          %195 = sbr.rel (%p193) target = $region24
        $region23: #{net_forward.1} parent=11 // pred_region
          _
        $region24: #{net_forward.1} parent=11 // pred_fallthru
          _
        // Predicated region
        $region25: #{net_forward.1} parent=11 // pred_check
          %p196 = pneg %p125
        $region26: #{net_forward.1} parent=11 // pred_check_branch
          %198 = sbr.rel (%p196) target = $region28
        $region27: #{net_forward.1} parent=11 // pred_region
          _
        $region28: #{net_forward.1} parent=11 // pred_fallthru
          _
        // Predicated region
        $region29: #{net_forward.1} parent=11 // pred_check
          %p199 = pneg %p146
        $region30: #{net_forward.1} parent=11 // pred_check_branch
          %201 = sbr.rel (%p199) target = $region32
        $region31: #{net_forward.1} parent=11 // pred_region
          _
        $region32: #{net_forward.1} parent=11 // pred_fallthru
          _
      $region12: #{net_forward.1} parent=5 // pred_fallthru
        _
      %p202 = scmp.lt.s32.totalorder %s15, 2
      // Predicated region
      $region33: #{net_forward.1} parent=5 // pred_check
        %p203 = pneg %p202
      $region34: #{net_forward.1} parent=5 // pred_check_branch
        %205 = sbr.rel (%p203) target = $region36
      $region35: #{net_forward.1} parent=5 // pred_region
        // Predicated region
        $region37: #{net_forward.1} parent=35 // pred_check
          %p206 = pneg %p35
        $region38: #{net_forward.1} parent=35 // pred_check_branch
          %208 = sbr.rel (%p206) target = $region40
        $region39: #{net_forward.1} parent=35 // pred_region
          %s209 = smul.u32 28, %s15
          %p210 = scmp.lt.s32.totalorder %s209, 55
          %s211 = scalar_select %p210, %s209, 55
          %s212 = smul.addr %s211, 4
          %s213 = smul.addr %s212, 4
          %s214 = scalar_lea.vmem %s0, %s213
          %s215 = smul.u32 28, %s15
        $region40: #{net_forward.1} parent=35 // pred_fallthru
          _
      $region36: #{net_forward.1} parent=5 // pred_fallthru
        _
      %p216 = scmp.le.s32.totalorder 1, %s15
      %p217 = scmp.lt.s32.totalorder %s15, 3
      %p218 = pnand %p216, %p217
      %p219 = pneg %p218
      // Predicated region
      $region41: #{net_forward.1} parent=5 // pred_check
        _
      $region42: #{net_forward.1} parent=5 // pred_check_branch
        %221 = sbr.rel (%p218) target = $region44
      $region43: #{net_forward.1} parent=5 // pred_region
        %s222 = ssub.s32 %s15, 1
        %s223 = smul.u32 28, %s20
        %p224 = scmp.lt.s32.totalorder %s223, 55
        %s225 = scalar_select %p224, %s223, 55
        %s226 = smul.addr %s225, 4
        %s227 = smul.addr %s226, 4
        %s228 = scalar_lea.vmem %s0, %s227
        %p229 = pneg %p41
        %p230 = pneg %p38
        %p231 = pneg %p62
        %p232 = pneg %p59
        %p233 = pneg %p83
        %p234 = pneg %p80
        %p235 = pneg %p104
        %p236 = pneg %p101
        %p237 = pneg %p125
        %p238 = pneg %p122
        %p239 = pneg %p146
        %p240 = pneg %p143
        %p241 = pneg %p172
        %p242 = pneg %p169
        %s243 = sand.u32 %s159, 1
        %s244 = scalar_lea.sflag [#allocation4], %s243
        %s245 = sand.u32 %s159, 1
        %s246 = smul.addr %s245, 8
        %s247 = scalar_lea.vmem [#allocation3], %s246
        %s248 = smul.u32 28, %s20
        %p249 = scmp.lt.s32.totalorder %s248, 55
        %s250 = scalar_select %p249, %s248, 55
        %s251 = smul.addr %s250, 4
        %s252 = smul.addr %s251, 4
        %s253 = scalar_lea.vmem %s0, %s252
        %s254 = smul.u32 28, %s20
        %v256 = vld [vmem:[%s253] sm:$0xff]
        %v257 = vld [vmem:[%s253 + $0x8] sm:$0xff]
        %v258 = vld [vmem:[%s253 + $0x10] sm:$0xff]
        %v259 = vld [vmem:[%s253 + $0x18] sm:$0xff]
        %v260 = vld [vmem:[%s253 + $0x20] sm:$0xff]
        %v261 = vld [vmem:[%s253 + $0x28] sm:$0xff]
        %v262 = vld [vmem:[%s253 + $0x30] sm:$0xff]
        %v263 = vld [vmem:[%s253 + $0x38] sm:$0xff]
        %v264 = vld [vmem:[%s253 + $0x40] sm:$0xff]
        %v265 = vld [vmem:[%s253 + $0x48] sm:$0xff]
        %v266 = vld [vmem:[%s253 + $0x50] sm:$0xff]
        %v267 = vld [vmem:[%s253 + $0x58] sm:$0xff]
        %v268 = vld [vmem:[%s253 + $0x60] sm:$0xff]
        %v269 = vld [vmem:[%s253 + $0x68] sm:$0xff]
        %v270 = vld [vmem:[%s253 + $0x70] sm:$0xff]
        %v271 = vld [vmem:[%s253 + $0x78] sm:$0xff]
        %v272 = vld [vmem:[%s253 + $0x80] sm:$0xff]
        %v273 = vld [vmem:[%s253 + $0x88] sm:$0xff]
        %v274 = vld [vmem:[%s253 + $0x90] sm:$0xff]
        %v275 = vld [vmem:[%s253 + $0x98] sm:$0xff]
        %v276 = vld [vmem:[%s253 + $0xa0] sm:$0xff]
        %v277 = vld [vmem:[%s253 + $0xa8] sm:$0xff]
        %v278 = vld [vmem:[%s253 + $0xb0] sm:$0xff]
        %v279 = vld [vmem:[%s253 + $0xb8] sm:$0xff]
        %v280 = vld [vmem:[%s253 + $0xc0] sm:$0xff]
        %v281 = vld [vmem:[%s253 + $0xc8] sm:$0xff]
        %v282 = vld [vmem:[%s253 + $0xd0] sm:$0xff]
        %v283 = vld [vmem:[%s253 + $0xd8] sm:$0xff]
        %v284 = vld [vmem:[%s253 + $0xe0] sm:$0xff]
        %v285 = vld [vmem:[%s253 + $0xe8] sm:$0xff]
        %v286 = vld [vmem:[%s253 + $0xf0] sm:$0xff]
        %v287 = vld [vmem:[%s253 + $0xf8] sm:$0xff]
        %v288 = vld [vmem:[%s253 + $0x100] sm:$0xff]
        %v289 = vld [vmem:[%s253 + $0x108] sm:$0xff]
        %v290 = vld [vmem:[%s253 + $0x110] sm:$0xff]
        %v291 = vld [vmem:[%s253 + $0x118] sm:$0xff]
        %v292 = vld [vmem:[%s253 + $0x120] sm:$0xff]
        %v293 = vld [vmem:[%s253 + $0x128] sm:$0xff]
        %v294 = vld [vmem:[%s253 + $0x130] sm:$0xff]
        %v295 = vld [vmem:[%s253 + $0x138] sm:$0xff]
        %v296 = vld [vmem:[%s253 + $0x140] sm:$0xff]
        %v297 = vld [vmem:[%s253 + $0x148] sm:$0xff]
        %v298 = vld [vmem:[%s253 + $0x150] sm:$0xff]
        %v299 = vld [vmem:[%s253 + $0x158] sm:$0xff]
        %v300 = vld [vmem:[%s253 + $0x160] sm:$0xff]
        %v301 = vld [vmem:[%s253 + $0x168] sm:$0xff]
        %v302 = vld [vmem:[%s253 + $0x170] sm:$0xff]
        %v303 = vld [vmem:[%s253 + $0x178] sm:$0xff]
        %v304 = vld [vmem:[%s253 + $0x180] sm:$0xff]
        %v305 = vld [vmem:[%s253 + $0x188] sm:$0xff]
        %v306 = vld [vmem:[%s253 + $0x190] sm:$0xff]
        %v307 = vld [vmem:[%s253 + $0x198] sm:$0xff]
        %v308 = vld [vmem:[%s253 + $0x1a0] sm:$0xff]
        %v309 = vld [vmem:[%s253 + $0x1a8] sm:$0xff]
        %v310 = vld [vmem:[%s253 + $0x1b0] sm:$0xff]
        %v311 = vld [vmem:[%s253 + $0x1b8] sm:$0xff]
        %v312 = vld [vmem:[%s2] sm:$0xff]
        %v313 = vld [vmem:[%s2 + $0x8] sm:$0xff]
        %v314 = vld [vmem:[%s2 + $0x10] sm:$0xff]
        %v315 = vld [vmem:[%s2 + $0x18] sm:$0xff]
        %v316 = vld [vmem:[%s2 + $0x20] sm:$0xff]
        %v317 = vld [vmem:[%s2 + $0x28] sm:$0xff]
        %v318 = vld [vmem:[%s2 + $0x30] sm:$0xff]
        %v319 = vld [vmem:[%s2 + $0x38] sm:$0xff]
        %v320 = vld [vmem:[%s2 + $0x40] sm:$0xff]
        %v321 = vld [vmem:[%s2 + $0x48] sm:$0xff]
        %v322 = vld [vmem:[%s2 + $0x50] sm:$0xff]
        %v323 = vld [vmem:[%s2 + $0x58] sm:$0xff]
        %v324 = vld [vmem:[%s2 + $0x60] sm:$0xff]
        %v325 = vld [vmem:[%s2 + $0x68] sm:$0xff]
        %v326 = vld [vmem:[%s2 + $0x70] sm:$0xff]
        %v327 = vld [vmem:[%s2 + $0x78] sm:$0xff]
        %v328 = vld [vmem:[%s2 + $0x80] sm:$0xff]
        %v329 = vld [vmem:[%s2 + $0x88] sm:$0xff]
        %v330 = vld [vmem:[%s2 + $0x90] sm:$0xff]
        %v331 = vld [vmem:[%s2 + $0x98] sm:$0xff]
        %v332 = vld [vmem:[%s2 + $0xa0] sm:$0xff]
        %v333 = vld [vmem:[%s2 + $0xa8] sm:$0xff]
        %v334 = vld [vmem:[%s2 + $0xb0] sm:$0xff]
        %v335 = vld [vmem:[%s2 + $0xb8] sm:$0xff]
        %v336 = vld [vmem:[%s2 + $0xc0] sm:$0xff]
        %v337 = vld [vmem:[%s2 + $0xc8] sm:$0xff]
        %v338 = vld [vmem:[%s2 + $0xd0] sm:$0xff]
        %v339 = vld [vmem:[%s2 + $0xd8] sm:$0xff]
        %v340 = vld [vmem:[%s2 + $0xe0] sm:$0xff]
        %v341 = vld [vmem:[%s2 + $0xe8] sm:$0xff]
        %v342 = vld [vmem:[%s2 + $0xf0] sm:$0xff]
        %v343 = vld [vmem:[%s2 + $0xf8] sm:$0xff]
        %v344 = vld [vmem:[%s2 + $0x100] sm:$0xff]
        %v345 = vld [vmem:[%s2 + $0x108] sm:$0xff]
        %v346 = vld [vmem:[%s2 + $0x110] sm:$0xff]
        %v347 = vld [vmem:[%s2 + $0x118] sm:$0xff]
        %v348 = vld [vmem:[%s2 + $0x120] sm:$0xff]
        %v349 = vld [vmem:[%s2 + $0x128] sm:$0xff]
        %v350 = vld [vmem:[%s2 + $0x130] sm:$0xff]
        %v351 = vld [vmem:[%s2 + $0x138] sm:$0xff]
        %v352 = vld [vmem:[%s2 + $0x140] sm:$0xff]
        %v353 = vld [vmem:[%s2 + $0x148] sm:$0xff]
        %v354 = vld [vmem:[%s2 + $0x150] sm:$0xff]
        %v355 = vld [vmem:[%s2 + $0x158] sm:$0xff]
        %v356 = vld [vmem:[%s2 + $0x160] sm:$0xff]
        %v357 = vld [vmem:[%s2 + $0x168] sm:$0xff]
        %v358 = vld [vmem:[%s2 + $0x170] sm:$0xff]
        %v359 = vld [vmem:[%s2 + $0x178] sm:$0xff]
        %v360 = vld [vmem:[%s2 + $0x180] sm:$0xff]
        %v361 = vld [vmem:[%s2 + $0x188] sm:$0xff]
        %v362 = vld [vmem:[%s2 + $0x190] sm:$0xff]
        %v363 = vld [vmem:[%s2 + $0x198] sm:$0xff]
        %v364 = vld [vmem:[%s2 + $0x1a0] sm:$0xff]
        %v365 = vld [vmem:[%s2 + $0x1a8] sm:$0xff]
        %v366 = vld [vmem:[%s2 + $0x1b0] sm:$0xff]
        %v367 = vld [vmem:[%s2 + $0x1b8] sm:$0xff]
        %v368 = vld [vmem:[%s2 + $0x1c0] sm:$0xff]
        %v369 = vld [vmem:[%s2 + $0x1c8] sm:$0xff]
        %v370 = vld [vmem:[%s2 + $0x1d0] sm:$0xff]
        %v371 = vld [vmem:[%s2 + $0x1d8] sm:$0xff]
        %v372 = vld [vmem:[%s1] ss:$8 sm:$0x3]
        %v374 = vlaneseq
        %v375 = vshrl.u32 %v374, 7
        %v376 = vsub.s32 0, %v375
        %v377 = vrot.slane %v372, %v376
        %v378 = vlaneseq
        %v379 = vshrl.u32 %v378, 7
        %v380 = vsub.s32 1, %v379
        %v381 = vrot.slane %v372, %v380
        %v440 = vunpack.c.l.b16 %v256
        %v441 = vunpack.c.h.b16 %v256
        %v442 = vunpack.c.l.b16 %v257
        %v443 = vunpack.c.h.b16 %v257
        %v444 = vunpack.c.l.b16 %v258
        %v445 = vunpack.c.h.b16 %v258
        %v446 = vunpack.c.l.b16 %v259
        %v447 = vunpack.c.h.b16 %v259
        %v448 = vunpack.c.l.b16 %v260
        %v449 = vunpack.c.h.b16 %v260
        %v450 = vunpack.c.l.b16 %v261
        %v451 = vunpack.c.h.b16 %v261
        %v452 = vunpack.c.l.b16 %v262
        %v453 = vunpack.c.h.b16 %v262
        %v454 = vunpack.c.l.b16 %v263
        %v455 = vunpack.c.h.b16 %v263
        %v456 = vunpack.c.l.b16 %v264
        %v457 = vunpack.c.h.b16 %v264
        %v458 = vunpack.c.l.b16 %v265
        %v459 = vunpack.c.h.b16 %v265
        %v460 = vunpack.c.l.b16 %v266
        %v461 = vunpack.c.h.b16 %v266
        %v462 = vunpack.c.l.b16 %v267
        %v463 = vunpack.c.h.b16 %v267
        %v464 = vunpack.c.l.b16 %v268
        %v465 = vunpack.c.h.b16 %v268
        %v466 = vunpack.c.l.b16 %v269
        %v467 = vunpack.c.h.b16 %v269
        %v468 = vunpack.c.l.b16 %v270
        %v469 = vunpack.c.h.b16 %v270
        %v470 = vunpack.c.l.b16 %v271
        %v471 = vunpack.c.h.b16 %v271
        %v472 = vunpack.c.l.b16 %v272
        %v473 = vunpack.c.h.b16 %v272
        %v474 = vunpack.c.l.b16 %v273
        %v475 = vunpack.c.h.b16 %v273
        %v476 = vunpack.c.l.b16 %v274
        %v477 = vunpack.c.h.b16 %v274
        %v478 = vunpack.c.l.b16 %v275
        %v479 = vunpack.c.h.b16 %v275
        %v480 = vunpack.c.l.b16 %v276
        %v481 = vunpack.c.h.b16 %v276
        %v482 = vunpack.c.l.b16 %v277
        %v483 = vunpack.c.h.b16 %v277
        %v484 = vunpack.c.l.b16 %v278
        %v485 = vunpack.c.h.b16 %v278
        %v486 = vunpack.c.l.b16 %v279
        %v487 = vunpack.c.h.b16 %v279
        %v488 = vunpack.c.l.b16 %v280
        %v489 = vunpack.c.h.b16 %v280
        %v490 = vunpack.c.l.b16 %v281
        %v491 = vunpack.c.h.b16 %v281
        %v492 = vunpack.c.l.b16 %v282
        %v493 = vunpack.c.h.b16 %v282
        %v494 = vunpack.c.l.b16 %v283
        %v495 = vunpack.c.h.b16 %v283
        %v496 = vunpack.c.l.b16 %v284
        %v497 = vunpack.c.h.b16 %v284
        %v498 = vunpack.c.l.b16 %v285
        %v499 = vunpack.c.h.b16 %v285
        %v500 = vunpack.c.l.b16 %v286
        %v501 = vunpack.c.h.b16 %v286
        %v502 = vunpack.c.l.b16 %v287
        %v503 = vunpack.c.h.b16 %v287
        %v504 = vunpack.c.l.b16 %v288
        %v505 = vunpack.c.h.b16 %v288
        %v506 = vunpack.c.l.b16 %v289
        %v507 = vunpack.c.h.b16 %v289
        %v508 = vunpack.c.l.b16 %v290
        %v509 = vunpack.c.h.b16 %v290
        %v510 = vunpack.c.l.b16 %v291
        %v511 = vunpack.c.h.b16 %v291
        %v512 = vunpack.c.l.b16 %v292
        %v513 = vunpack.c.h.b16 %v292
        %v514 = vunpack.c.l.b16 %v293
        %v515 = vunpack.c.h.b16 %v293
        %v516 = vunpack.c.l.b16 %v294
        %v517 = vunpack.c.h.b16 %v294
        %v518 = vunpack.c.l.b16 %v295
        %v519 = vunpack.c.h.b16 %v295
        %v520 = vunpack.c.l.b16 %v296
        %v521 = vunpack.c.h.b16 %v296
        %v522 = vunpack.c.l.b16 %v297
        %v523 = vunpack.c.h.b16 %v297
        %v524 = vunpack.c.l.b16 %v298
        %v525 = vunpack.c.h.b16 %v298
        %v526 = vunpack.c.l.b16 %v299
        %v527 = vunpack.c.h.b16 %v299
        %v528 = vunpack.c.l.b16 %v300
        %v529 = vunpack.c.h.b16 %v300
        %v530 = vunpack.c.l.b16 %v301
        %v531 = vunpack.c.h.b16 %v301
        %v532 = vunpack.c.l.b16 %v302
        %v533 = vunpack.c.h.b16 %v302
        %v534 = vunpack.c.l.b16 %v303
        %v535 = vunpack.c.h.b16 %v303
        %v536 = vunpack.c.l.b16 %v304
        %v537 = vunpack.c.h.b16 %v304
        %v538 = vunpack.c.l.b16 %v305
        %v539 = vunpack.c.h.b16 %v305
        %v540 = vunpack.c.l.b16 %v306
        %v541 = vunpack.c.h.b16 %v306
        %v542 = vunpack.c.l.b16 %v307
        %v543 = vunpack.c.h.b16 %v307
        %v544 = vunpack.c.l.b16 %v308
        %v545 = vunpack.c.h.b16 %v308
        %v546 = vunpack.c.l.b16 %v309
        %v547 = vunpack.c.h.b16 %v309
        %v548 = vunpack.c.l.b16 %v310
        %v549 = vunpack.c.h.b16 %v310
        %v550 = vunpack.c.l.b16 %v311
        %v551 = vunpack.c.h.b16 %v311
        %v552 = vpack.c.b16 %v444, %v440
        %v553 = vpack.c.b16 %v445, %v441
        %v554 = vpack.c.b16 %v446, %v442
        %v555 = vpack.c.b16 %v447, %v443
        %v556 = vpack.c.b16 %v452, %v448
        %v557 = vpack.c.b16 %v453, %v449
        %v558 = vpack.c.b16 %v454, %v450
        %v559 = vpack.c.b16 %v455, %v451
        %v560 = vpack.c.b16 %v460, %v456
        %v561 = vpack.c.b16 %v461, %v457
        %v562 = vpack.c.b16 %v462, %v458
        %v563 = vpack.c.b16 %v463, %v459
        %v564 = vpack.c.b16 %v468, %v464
        %v565 = vpack.c.b16 %v469, %v465
        %v566 = vpack.c.b16 %v470, %v466
        %v567 = vpack.c.b16 %v471, %v467
        %v568 = vpack.c.b16 %v476, %v472
        %v569 = vpack.c.b16 %v477, %v473
        %v570 = vpack.c.b16 %v478, %v474
        %v571 = vpack.c.b16 %v479, %v475
        %v572 = vpack.c.b16 %v484, %v480
        %v573 = vpack.c.b16 %v485, %v481
        %v574 = vpack.c.b16 %v486, %v482
        %v575 = vpack.c.b16 %v487, %v483
        %v576 = vpack.c.b16 %v492, %v488
        %v577 = vpack.c.b16 %v493, %v489
        %v578 = vpack.c.b16 %v494, %v490
        %v579 = vpack.c.b16 %v495, %v491
        %v580 = vpack.c.b16 %v500, %v496
        %v581 = vpack.c.b16 %v501, %v497
        %v582 = vpack.c.b16 %v502, %v498
        %v583 = vpack.c.b16 %v503, %v499
        %v584 = vpack.c.b16 %v508, %v504
        %v585 = vpack.c.b16 %v509, %v505
        %v586 = vpack.c.b16 %v510, %v506
        %v587 = vpack.c.b16 %v511, %v507
        %v588 = vpack.c.b16 %v516, %v512
        %v589 = vpack.c.b16 %v517, %v513
        %v590 = vpack.c.b16 %v518, %v514
        %v591 = vpack.c.b16 %v519, %v515
        %v592 = vpack.c.b16 %v524, %v520
        %v593 = vpack.c.b16 %v525, %v521
        %v594 = vpack.c.b16 %v526, %v522
        %v595 = vpack.c.b16 %v527, %v523
        %v596 = vpack.c.b16 %v532, %v528
        %v597 = vpack.c.b16 %v533, %v529
        %v598 = vpack.c.b16 %v534, %v530
        %v599 = vpack.c.b16 %v535, %v531
        %v600 = vpack.c.b16 %v540, %v536
        %v601 = vpack.c.b16 %v541, %v537
        %v602 = vpack.c.b16 %v542, %v538
        %v603 = vpack.c.b16 %v543, %v539
        %v604 = vpack.c.b16 %v548, %v544
        %v605 = vpack.c.b16 %v549, %v545
        %v606 = vpack.c.b16 %v550, %v546
        %v607 = vpack.c.b16 %v551, %v547
        %v710 = vunpack.c.l.b16 %v312
        %v711 = vunpack.c.h.b16 %v312
        %v712 = vunpack.c.l.b16 %v313
        %v713 = vunpack.c.h.b16 %v313
        %v714 = vunpack.c.l.b16 %v314
        %v715 = vunpack.c.h.b16 %v314
        %v716 = vunpack.c.l.b16 %v315
        %v717 = vunpack.c.h.b16 %v315
        %v718 = vunpack.c.l.b16 %v316
        %v719 = vunpack.c.h.b16 %v316
        %v720 = vunpack.c.l.b16 %v317
        %v721 = vunpack.c.h.b16 %v317
        %v722 = vunpack.c.l.b16 %v318
        %v723 = vunpack.c.h.b16 %v318
        %v724 = vunpack.c.l.b16 %v319
        %v725 = vunpack.c.h.b16 %v319
        %v726 = vunpack.c.l.b16 %v320
        %v727 = vunpack.c.h.b16 %v320
        %v728 = vunpack.c.l.b16 %v321
        %v729 = vunpack.c.h.b16 %v321
        %v730 = vunpack.c.l.b16 %v322
        %v731 = vunpack.c.h.b16 %v322
        %v732 = vunpack.c.l.b16 %v323
        %v733 = vunpack.c.h.b16 %v323
        %v734 = vunpack.c.l.b16 %v324
        %v735 = vunpack.c.h.b16 %v324
        %v736 = vunpack.c.l.b16 %v325
        %v737 = vunpack.c.h.b16 %v325
        %v738 = vunpack.c.l.b16 %v326
        %v739 = vunpack.c.h.b16 %v326
        %v740 = vunpack.c.l.b16 %v327
        %v741 = vunpack.c.h.b16 %v327
        %v742 = vunpack.c.l.b16 %v328
        %v743 = vunpack.c.h.b16 %v328
        %v744 = vunpack.c.l.b16 %v329
        %v745 = vunpack.c.h.b16 %v329
        %v746 = vunpack.c.l.b16 %v330
        %v747 = vunpack.c.h.b16 %v330
        %v748 = vunpack.c.l.b16 %v331
        %v749 = vunpack.c.h.b16 %v331
        %v750 = vunpack.c.l.b16 %v332
        %v751 = vunpack.c.h.b16 %v332
        %v752 = vunpack.c.l.b16 %v333
        %v753 = vunpack.c.h.b16 %v333
        %v754 = vunpack.c.l.b16 %v334
        %v755 = vunpack.c.h.b16 %v334
        %v756 = vunpack.c.l.b16 %v335
        %v757 = vunpack.c.h.b16 %v335
        %v758 = vunpack.c.l.b16 %v336
        %v759 = vunpack.c.h.b16 %v336
        %v760 = vunpack.c.l.b16 %v337
        %v761 = vunpack.c.h.b16 %v337
        %v762 = vunpack.c.l.b16 %v338
        %v763 = vunpack.c.h.b16 %v338
        %v764 = vunpack.c.l.b16 %v339
        %v765 = vunpack.c.h.b16 %v339
        %v766 = vunpack.c.l.b16 %v340
        %v767 = vunpack.c.h.b16 %v340
        %v768 = vunpack.c.l.b16 %v341
        %v769 = vunpack.c.h.b16 %v341
        %v770 = vunpack.c.l.b16 %v342
        %v771 = vunpack.c.h.b16 %v342
        %v772 = vunpack.c.l.b16 %v343
        %v773 = vunpack.c.h.b16 %v343
        %v774 = vunpack.c.l.b16 %v344
        %v775 = vunpack.c.h.b16 %v344
        %v776 = vunpack.c.l.b16 %v345
        %v777 = vunpack.c.h.b16 %v345
        %v778 = vunpack.c.l.b16 %v346
        %v779 = vunpack.c.h.b16 %v346
        %v780 = vunpack.c.l.b16 %v347
        %v781 = vunpack.c.h.b16 %v347
        %v782 = vunpack.c.l.b16 %v348
        %v783 = vunpack.c.h.b16 %v348
        %v784 = vunpack.c.l.b16 %v349
        %v785 = vunpack.c.h.b16 %v349
        %v786 = vunpack.c.l.b16 %v350
        %v787 = vunpack.c.h.b16 %v350
        %v788 = vunpack.c.l.b16 %v351
        %v789 = vunpack.c.h.b16 %v351
        %v790 = vunpack.c.l.b16 %v352
        %v791 = vunpack.c.h.b16 %v352
        %v792 = vunpack.c.l.b16 %v353
        %v793 = vunpack.c.h.b16 %v353
        %v794 = vunpack.c.l.b16 %v354
        %v795 = vunpack.c.h.b16 %v354
        %v796 = vunpack.c.l.b16 %v355
        %v797 = vunpack.c.h.b16 %v355
        %v798 = vunpack.c.l.b16 %v356
        %v799 = vunpack.c.h.b16 %v356
        %v800 = vunpack.c.l.b16 %v357
        %v801 = vunpack.c.h.b16 %v357
        %v802 = vunpack.c.l.b16 %v358
        %v803 = vunpack.c.h.b16 %v358
        %v804 = vunpack.c.l.b16 %v359
        %v805 = vunpack.c.h.b16 %v359
        %v806 = vunpack.c.l.b16 %v360
        %v807 = vunpack.c.h.b16 %v360
        %v808 = vunpack.c.l.b16 %v361
        %v809 = vunpack.c.h.b16 %v361
        %v810 = vunpack.c.l.b16 %v362
        %v811 = vunpack.c.h.b16 %v362
        %v812 = vunpack.c.l.b16 %v363
        %v813 = vunpack.c.h.b16 %v363
        %v814 = vunpack.c.l.b16 %v364
        %v815 = vunpack.c.h.b16 %v364
        %v816 = vunpack.c.l.b16 %v365
        %v817 = vunpack.c.h.b16 %v365
        %v818 = vunpack.c.l.b16 %v366
        %v819 = vunpack.c.h.b16 %v366
        %v820 = vunpack.c.l.b16 %v367
        %v821 = vunpack.c.h.b16 %v367
        %v822 = vunpack.c.l.b16 %v368
        %v823 = vunpack.c.h.b16 %v368
        %v824 = vunpack.c.l.b16 %v369
        %v825 = vunpack.c.h.b16 %v369
        %v826 = vunpack.c.l.b16 %v370
        %v827 = vunpack.c.h.b16 %v370
        %v828 = vunpack.c.l.b16 %v371
        %v829 = vunpack.c.h.b16 %v371
        %v830 = vpack.c.b16 %v712, %v710
        %v831 = vpack.c.b16 %v713, %v711
        %v832 = vpack.c.b16 %v716, %v714
        %v833 = vpack.c.b16 %v717, %v715
        %v834 = vpack.c.b16 %v720, %v718
        %v835 = vpack.c.b16 %v721, %v719
        %v836 = vpack.c.b16 %v724, %v722
        %v837 = vpack.c.b16 %v725, %v723
        %v838 = vpack.c.b16 %v728, %v726
        %v839 = vpack.c.b16 %v729, %v727
        %v840 = vpack.c.b16 %v732, %v730
        %v841 = vpack.c.b16 %v733, %v731
        %v842 = vpack.c.b16 %v736, %v734
        %v843 = vpack.c.b16 %v737, %v735
        %v844 = vpack.c.b16 %v740, %v738
        %v845 = vpack.c.b16 %v741, %v739
        %v846 = vpack.c.b16 %v744, %v742
        %v847 = vpack.c.b16 %v745, %v743
        %v848 = vpack.c.b16 %v748, %v746
        %v849 = vpack.c.b16 %v749, %v747
        %v850 = vpack.c.b16 %v752, %v750
        %v851 = vpack.c.b16 %v753, %v751
        %v852 = vpack.c.b16 %v756, %v754
        %v853 = vpack.c.b16 %v757, %v755
        %v854 = vpack.c.b16 %v760, %v758
        %v855 = vpack.c.b16 %v761, %v759
        %v856 = vpack.c.b16 %v764, %v762
        %v857 = vpack.c.b16 %v765, %v763
        %v858 = vpack.c.b16 %v768, %v766
        %v859 = vpack.c.b16 %v769, %v767
        %v860 = vpack.c.b16 %v772, %v770
        %v861 = vpack.c.b16 %v773, %v771
        %v862 = vpack.c.b16 %v776, %v774
        %v863 = vpack.c.b16 %v777, %v775
        %v864 = vpack.c.b16 %v780, %v778
        %v865 = vpack.c.b16 %v781, %v779
        %v866 = vpack.c.b16 %v784, %v782
        %v867 = vpack.c.b16 %v785, %v783
        %v868 = vpack.c.b16 %v788, %v786
        %v869 = vpack.c.b16 %v789, %v787
        %v870 = vpack.c.b16 %v792, %v790
        %v871 = vpack.c.b16 %v793, %v791
        %v872 = vpack.c.b16 %v796, %v794
        %v873 = vpack.c.b16 %v797, %v795
        %v874 = vpack.c.b16 %v800, %v798
        %v875 = vpack.c.b16 %v801, %v799
        %v876 = vpack.c.b16 %v804, %v802
        %v877 = vpack.c.b16 %v805, %v803
        %v878 = vpack.c.b16 %v808, %v806
        %v879 = vpack.c.b16 %v809, %v807
        %v880 = vpack.c.b16 %v812, %v810
        %v881 = vpack.c.b16 %v813, %v811
        %v882 = vpack.c.b16 %v816, %v814
        %v883 = vpack.c.b16 %v817, %v815
        %v884 = vpack.c.b16 %v820, %v818
        %v885 = vpack.c.b16 %v821, %v819
        %v886 = vpack.c.b16 %v824, %v822
        %v887 = vpack.c.b16 %v825, %v823
        %v888 = vpack.c.b16 %v828, %v826
        %v889 = vpack.c.b16 %v829, %v827
        %vm950 = vcmask 785408
        %v952 = vsel %vm950, %v555, 0
        %v955 = vsel %vm950, %v559, 0
        %v958 = vsel %vm950, %v563, 0
        %v961 = vsel %vm950, %v567, 0
        %v964 = vsel %vm950, %v571, 0
        %v967 = vsel %vm950, %v575, 0
        %v970 = vsel %vm950, %v579, 0
        %v973 = vsel %vm950, %v583, 0
        %v976 = vsel %vm950, %v587, 0
        %v979 = vsel %vm950, %v591, 0
        %v982 = vsel %vm950, %v595, 0
        %v985 = vsel %vm950, %v599, 0
        %v988 = vsel %vm950, %v603, 0
        %v991 = vsel %vm950, %v607, 0
        %993 = vmatprep.subr.bf16.mxu0 %v845
        %994 = vmatpush1.bf16.msra.mxu0 %v844
        %995 = vmatprep.subr.bf16.mxu0 %v843
        %996 = vmatpush1.bf16.msra.mxu0 %v842
        %997 = vmatprep.subr.bf16.mxu0 %v841
        %998 = vmatpush1.bf16.msra.mxu0 %v840
        %999 = vmatprep.subr.bf16.mxu0 %v839
        %1000 = vmatpush1.bf16.msra.mxu0 %v838
        %1001 = vmatprep.subr.bf16.mxu0 %v837
        %1002 = vmatpush1.bf16.msra.mxu0 %v836
        %1003 = vmatprep.subr.bf16.mxu0 %v835
        %1004 = vmatpush1.bf16.msra.mxu0 %v834
        %1005 = vmatprep.subr.bf16.mxu0 %v833
        %1006 = vmatpush1.bf16.msra.mxu0 %v832
        %1007 = vmatprep.subr.bf16.mxu0 %v831
        %1008 = vmatpush1.bf16.msra.mxu0 %v830
        %1009 = vmatprep.subr.bf16.mxu0 %v861
        %1010 = vmatpush2.bf16.msra.mxu0 %v860
        %1011 = vmatprep.subr.bf16.mxu0 %v859
        %1012 = vmatpush2.bf16.msra.mxu0 %v858
        %1013 = vmatprep.subr.bf16.mxu0 %v857
        %1014 = vmatpush2.bf16.msra.mxu0 %v856
        %1015 = vmatprep.subr.bf16.mxu0 %v855
        %1016 = vmatpush2.bf16.msra.mxu0 %v854
        %1017 = vmatprep.subr.bf16.mxu0 %v853
        %1018 = vmatpush2.bf16.msra.mxu0 %v852
        %1019 = vmatprep.subr.bf16.mxu0 %v851
        %1020 = vmatpush2.bf16.msra.mxu0 %v850
        %1021 = vmatprep.subr.bf16.mxu0 %v849
        %1022 = vmatpush2.bf16.msra.mxu0 %v848
        %1023 = vmatprep.subr.bf16.mxu0 %v847
        %1024 = vmatpush2.bf16.msra.mxu0 %v846
        %1025 = vmatprep.mubr.bf16.mxu0 %v553
        %1026 = vmatmul.mubr.bf16.gmra.mxu0 %v552
        %v1027 = vpop.f32.mrf.mxu0
        %v1028 = vadd.f32 %v377, %v1027
        %v1029 = vpop.f32.mrf.mxu0
        %v1030 = vadd.f32 %v381, %v1029
        %v1031 = vpop.f32.mrf.mxu0
        %v1032 = vadd.f32 %v377, %v1031
        %v1033 = vpop.f32.mrf.mxu0
        %v1034 = vadd.f32 %v381, %v1033
        %1035 = vmatprep.mubr.bf16.mxu0 %v557
        %1036 = vmatmul.mubr.bf16.gmra.mxu0 %v556
        %v1037 = vpop.f32.mrf.mxu0
        %v1038 = vadd.f32 %v377, %v1037
        %v1039 = vpop.f32.mrf.mxu0
        %v1040 = vadd.f32 %v381, %v1039
        %v1041 = vpop.f32.mrf.mxu0
        %v1042 = vadd.f32 %v377, %v1041
        %v1043 = vpop.f32.mrf.mxu0
        %v1044 = vadd.f32 %v381, %v1043
        %1045 = vmatprep.mubr.bf16.mxu0 %v561
        %1046 = vmatmul.mubr.bf16.gmra.mxu0 %v560
        %v1047 = vpop.f32.mrf.mxu0
        %v1048 = vadd.f32 %v377, %v1047
        %v1049 = vpop.f32.mrf.mxu0
        %v1050 = vadd.f32 %v381, %v1049
        %v1051 = vpop.f32.mrf.mxu0
        %v1052 = vadd.f32 %v377, %v1051
        %v1053 = vpop.f32.mrf.mxu0
        %v1054 = vadd.f32 %v381, %v1053
        %1055 = vmatprep.mubr.bf16.mxu0 %v565
        %1056 = vmatmul.mubr.bf16.gmra.mxu0 %v564
        %v1057 = vpop.f32.mrf.mxu0
        %v1058 = vadd.f32 %v377, %v1057
        %v1059 = vpop.f32.mrf.mxu0
        %v1060 = vadd.f32 %v381, %v1059
        %v1061 = vpop.f32.mrf.mxu0
        %v1062 = vadd.f32 %v377, %v1061
        %v1063 = vpop.f32.mrf.mxu0
        %v1064 = vadd.f32 %v381, %v1063
        %1065 = vmatprep.mubr.bf16.mxu0 %v569
        %1066 = vmatmul.mubr.bf16.gmra.mxu0 %v568
        %v1067 = vpop.f32.mrf.mxu0
        %v1068 = vadd.f32 %v377, %v1067
        %v1069 = vpop.f32.mrf.mxu0
        %v1070 = vadd.f32 %v381, %v1069
        %v1071 = vpop.f32.mrf.mxu0
        %v1072 = vadd.f32 %v377, %v1071
        %v1073 = vpop.f32.mrf.mxu0
        %v1074 = vadd.f32 %v381, %v1073
        %1075 = vmatprep.mubr.bf16.mxu0 %v573
        %1076 = vmatmul.mubr.bf16.gmra.mxu0 %v572
        %v1077 = vpop.f32.mrf.mxu0
        %v1078 = vadd.f32 %v377, %v1077
        %v1079 = vpop.f32.mrf.mxu0
        %v1080 = vadd.f32 %v381, %v1079
        %v1081 = vpop.f32.mrf.mxu0
        %v1082 = vadd.f32 %v377, %v1081
        %v1083 = vpop.f32.mrf.mxu0
        %v1084 = vadd.f32 %v381, %v1083
        %1085 = vmatprep.mubr.bf16.mxu0 %v577
        %1086 = vmatmul.mubr.bf16.gmra.mxu0 %v576
        %v1087 = vpop.f32.mrf.mxu0
        %v1088 = vadd.f32 %v377, %v1087
        %v1089 = vpop.f32.mrf.mxu0
        %v1090 = vadd.f32 %v381, %v1089
        %v1091 = vpop.f32.mrf.mxu0
        %v1092 = vadd.f32 %v377, %v1091
        %v1093 = vpop.f32.mrf.mxu0
        %v1094 = vadd.f32 %v381, %v1093
        %1095 = vmatprep.mubr.bf16.mxu0 %v581
        %1096 = vmatmul.mubr.bf16.gmra.mxu0 %v580
        %v1097 = vpop.f32.mrf.mxu0
        %v1098 = vadd.f32 %v377, %v1097
        %v1099 = vpop.f32.mrf.mxu0
        %v1100 = vadd.f32 %v381, %v1099
        %v1101 = vpop.f32.mrf.mxu0
        %v1102 = vadd.f32 %v377, %v1101
        %v1103 = vpop.f32.mrf.mxu0
        %v1104 = vadd.f32 %v381, %v1103
        %1105 = vmatprep.mubr.bf16.mxu0 %v585
        %1106 = vmatmul.mubr.bf16.gmra.mxu0 %v584
        %v1107 = vpop.f32.mrf.mxu0
        %v1108 = vadd.f32 %v377, %v1107
        %v1109 = vpop.f32.mrf.mxu0
        %v1110 = vadd.f32 %v381, %v1109
        %v1111 = vpop.f32.mrf.mxu0
        %v1112 = vadd.f32 %v377, %v1111
        %v1113 = vpop.f32.mrf.mxu0
        %v1114 = vadd.f32 %v381, %v1113
        %1115 = vmatprep.mubr.bf16.mxu0 %v589
        %1116 = vmatmul.mubr.bf16.gmra.mxu0 %v588
        %v1117 = vpop.f32.mrf.mxu0
        %v1118 = vadd.f32 %v377, %v1117
        %v1119 = vpop.f32.mrf.mxu0
        %v1120 = vadd.f32 %v381, %v1119
        %v1121 = vpop.f32.mrf.mxu0
        %v1122 = vadd.f32 %v377, %v1121
        %v1123 = vpop.f32.mrf.mxu0
        %v1124 = vadd.f32 %v381, %v1123
        %1125 = vmatprep.mubr.bf16.mxu0 %v593
        %1126 = vmatmul.mubr.bf16.gmra.mxu0 %v592
        %v1127 = vpop.f32.mrf.mxu0
        %v1128 = vadd.f32 %v377, %v1127
        %v1129 = vpop.f32.mrf.mxu0
        %v1130 = vadd.f32 %v381, %v1129
        %v1131 = vpop.f32.mrf.mxu0
        %v1132 = vadd.f32 %v377, %v1131
        %v1133 = vpop.f32.mrf.mxu0
        %v1134 = vadd.f32 %v381, %v1133
        %1135 = vmatprep.mubr.bf16.mxu0 %v597
        %1136 = vmatmul.mubr.bf16.gmra.mxu0 %v596
        %v1137 = vpop.f32.mrf.mxu0
        %v1138 = vadd.f32 %v377, %v1137
        %v1139 = vpop.f32.mrf.mxu0
        %v1140 = vadd.f32 %v381, %v1139
        %v1141 = vpop.f32.mrf.mxu0
        %v1142 = vadd.f32 %v377, %v1141
        %v1143 = vpop.f32.mrf.mxu0
        %v1144 = vadd.f32 %v381, %v1143
        %1145 = vmatprep.mubr.bf16.mxu0 %v601
        %1146 = vmatmul.mubr.bf16.gmra.mxu0 %v600
        %v1147 = vpop.f32.mrf.mxu0
        %v1148 = vadd.f32 %v377, %v1147
        %v1149 = vpop.f32.mrf.mxu0
        %v1150 = vadd.f32 %v381, %v1149
        %v1151 = vpop.f32.mrf.mxu0
        %v1152 = vadd.f32 %v377, %v1151
        %v1153 = vpop.f32.mrf.mxu0
        %v1154 = vadd.f32 %v381, %v1153
        %1155 = vmatprep.mubr.bf16.mxu0 %v605
        %1156 = vmatmul.mubr.bf16.gmra.mxu0 %v604
        %v1157 = vpop.f32.mrf.mxu0
        %v1158 = vadd.f32 %v377, %v1157
        %v1159 = vpop.f32.mrf.mxu0
        %v1160 = vadd.f32 %v381, %v1159
        %v1161 = vpop.f32.mrf.mxu0
        %v1162 = vadd.f32 %v377, %v1161
        %v1163 = vpop.f32.mrf.mxu0
        %v1164 = vadd.f32 %v381, %v1163
        %1165 = vdwg.mxu0
        %1166 = vmatprep.subr.bf16.mxu0 %v877
        %1167 = vmatpush1.bf16.msra.mxu0 %v876
        %1168 = vmatprep.subr.bf16.mxu0 %v875
        %1169 = vmatpush1.bf16.msra.mxu0 %v874
        %1170 = vmatprep.subr.bf16.mxu0 %v873
        %1171 = vmatpush1.bf16.msra.mxu0 %v872
        %1172 = vmatprep.subr.bf16.mxu0 %v871
        %1173 = vmatpush1.bf16.msra.mxu0 %v870
        %1174 = vmatprep.subr.bf16.mxu0 %v869
        %1175 = vmatpush1.bf16.msra.mxu0 %v868
        %1176 = vmatprep.subr.bf16.mxu0 %v867
        %1177 = vmatpush1.bf16.msra.mxu0 %v866
        %1178 = vmatprep.subr.bf16.mxu0 %v865
        %1179 = vmatpush1.bf16.msra.mxu0 %v864
        %1180 = vmatprep.subr.bf16.mxu0 %v863
        %1181 = vmatpush1.bf16.msra.mxu0 %v862
        %1182 = vmatprep.subr.bf16.mxu0 0
        %1183 = vmatpush2.bf16.msra.mxu0 0
        %1184 = vmatprep.subr.bf16.mxu0 0
        %1185 = vmatpush2.bf16.msra.mxu0 0
        %1186 = vmatprep.subr.bf16.mxu0 %v889
        %1187 = vmatpush2.bf16.msra.mxu0 %v888
        %1188 = vmatprep.subr.bf16.mxu0 %v887
        %1189 = vmatpush2.bf16.msra.mxu0 %v886
        %1190 = vmatprep.subr.bf16.mxu0 %v885
        %1191 = vmatpush2.bf16.msra.mxu0 %v884
        %1192 = vmatprep.subr.bf16.mxu0 %v883
        %1193 = vmatpush2.bf16.msra.mxu0 %v882
        %1194 = vmatprep.subr.bf16.mxu0 %v881
        %1195 = vmatpush2.bf16.msra.mxu0 %v880
        %1196 = vmatprep.subr.bf16.mxu0 %v879
        %1197 = vmatpush2.bf16.msra.mxu0 %v878
        %1198 = vmatprep.mubr.bf16.mxu0 %v952
        %1199 = vmatmul.mubr.bf16.gmra.mxu0 %v554
        %v1200 = vpop.f32.mrf.mxu0
        %v1201 = vadd.f32 %v1028, %v1200
        %v1202 = vpop.f32.mrf.mxu0
        %v1203 = vadd.f32 %v1030, %v1202
        %v1204 = vpop.f32.mrf.mxu0
        %v1205 = vadd.f32 %v1032, %v1204
        %v1206 = vpop.f32.mrf.mxu0
        %v1207 = vadd.f32 %v1034, %v1206
        %1208 = vmatprep.mubr.bf16.mxu0 %v955
        %1209 = vmatmul.mubr.bf16.gmra.mxu0 %v558
        %v1210 = vpop.f32.mrf.mxu0
        %v1211 = vadd.f32 %v1038, %v1210
        %v1212 = vpop.f32.mrf.mxu0
        %v1213 = vadd.f32 %v1040, %v1212
        %v1214 = vpop.f32.mrf.mxu0
        %v1215 = vadd.f32 %v1042, %v1214
        %v1216 = vpop.f32.mrf.mxu0
        %v1217 = vadd.f32 %v1044, %v1216
        %1218 = vmatprep.mubr.bf16.mxu0 %v958
        %1219 = vmatmul.mubr.bf16.gmra.mxu0 %v562
        %v1220 = vpop.f32.mrf.mxu0
        %v1221 = vadd.f32 %v1048, %v1220
        %v1222 = vpop.f32.mrf.mxu0
        %v1223 = vadd.f32 %v1050, %v1222
        %v1224 = vpop.f32.mrf.mxu0
        %v1225 = vadd.f32 %v1052, %v1224
        %v1226 = vpop.f32.mrf.mxu0
        %v1227 = vadd.f32 %v1054, %v1226
        %1228 = vmatprep.mubr.bf16.mxu0 %v961
        %1229 = vmatmul.mubr.bf16.gmra.mxu0 %v566
        %v1230 = vpop.f32.mrf.mxu0
        %v1231 = vadd.f32 %v1058, %v1230
        %v1232 = vpop.f32.mrf.mxu0
        %v1233 = vadd.f32 %v1060, %v1232
        %v1234 = vpop.f32.mrf.mxu0
        %v1235 = vadd.f32 %v1062, %v1234
        %v1236 = vpop.f32.mrf.mxu0
        %v1237 = vadd.f32 %v1064, %v1236
        %1238 = vmatprep.mubr.bf16.mxu0 %v964
        %1239 = vmatmul.mubr.bf16.gmra.mxu0 %v570
        %v1240 = vpop.f32.mrf.mxu0
        %v1241 = vadd.f32 %v1068, %v1240
        %v1242 = vpop.f32.mrf.mxu0
        %v1243 = vadd.f32 %v1070, %v1242
        %v1244 = vpop.f32.mrf.mxu0
        %v1245 = vadd.f32 %v1072, %v1244
        %v1246 = vpop.f32.mrf.mxu0
        %v1247 = vadd.f32 %v1074, %v1246
        %1248 = vmatprep.mubr.bf16.mxu0 %v967
        %1249 = vmatmul.mubr.bf16.gmra.mxu0 %v574
        %v1250 = vpop.f32.mrf.mxu0
        %v1251 = vadd.f32 %v1078, %v1250
        %v1252 = vpop.f32.mrf.mxu0
        %v1253 = vadd.f32 %v1080, %v1252
        %v1254 = vpop.f32.mrf.mxu0
        %v1255 = vadd.f32 %v1082, %v1254
        %v1256 = vpop.f32.mrf.mxu0
        %v1257 = vadd.f32 %v1084, %v1256
        %1258 = vmatprep.mubr.bf16.mxu0 %v970
        %1259 = vmatmul.mubr.bf16.gmra.mxu0 %v578
        %v1260 = vpop.f32.mrf.mxu0
        %v1261 = vadd.f32 %v1088, %v1260
        %v1262 = vpop.f32.mrf.mxu0
        %v1263 = vadd.f32 %v1090, %v1262
        %v1264 = vpop.f32.mrf.mxu0
        %v1265 = vadd.f32 %v1092, %v1264
        %v1266 = vpop.f32.mrf.mxu0
        %v1267 = vadd.f32 %v1094, %v1266
        %1268 = vmatprep.mubr.bf16.mxu0 %v973
        %1269 = vmatmul.mubr.bf16.gmra.mxu0 %v582
        %v1270 = vpop.f32.mrf.mxu0
        %v1271 = vadd.f32 %v1098, %v1270
        %v1272 = vpop.f32.mrf.mxu0
        %v1273 = vadd.f32 %v1100, %v1272
        %v1274 = vpop.f32.mrf.mxu0
        %v1275 = vadd.f32 %v1102, %v1274
        %v1276 = vpop.f32.mrf.mxu0
        %v1277 = vadd.f32 %v1104, %v1276
        %1278 = vmatprep.mubr.bf16.mxu0 %v976
        %1279 = vmatmul.mubr.bf16.gmra.mxu0 %v586
        %v1280 = vpop.f32.mrf.mxu0
        %v1281 = vadd.f32 %v1108, %v1280
        %v1282 = vpop.f32.mrf.mxu0
        %v1283 = vadd.f32 %v1110, %v1282
        %v1284 = vpop.f32.mrf.mxu0
        %v1285 = vadd.f32 %v1112, %v1284
        %v1286 = vpop.f32.mrf.mxu0
        %v1287 = vadd.f32 %v1114, %v1286
        %1288 = vmatprep.mubr.bf16.mxu0 %v979
        %1289 = vmatmul.mubr.bf16.gmra.mxu0 %v590
        %v1290 = vpop.f32.mrf.mxu0
        %v1291 = vadd.f32 %v1118, %v1290
        %v1292 = vpop.f32.mrf.mxu0
        %v1293 = vadd.f32 %v1120, %v1292
        %v1294 = vpop.f32.mrf.mxu0
        %v1295 = vadd.f32 %v1122, %v1294
        %v1296 = vpop.f32.mrf.mxu0
        %v1297 = vadd.f32 %v1124, %v1296
        %1298 = vmatprep.mubr.bf16.mxu0 %v982
        %1299 = vmatmul.mubr.bf16.gmra.mxu0 %v594
        %v1300 = vpop.f32.mrf.mxu0
        %v1301 = vadd.f32 %v1128, %v1300
        %v1302 = vpop.f32.mrf.mxu0
        %v1303 = vadd.f32 %v1130, %v1302
        %v1304 = vpop.f32.mrf.mxu0
        %v1305 = vadd.f32 %v1132, %v1304
        %v1306 = vpop.f32.mrf.mxu0
        %v1307 = vadd.f32 %v1134, %v1306
        %1308 = vmatprep.mubr.bf16.mxu0 %v985
        %1309 = vmatmul.mubr.bf16.gmra.mxu0 %v598
        %v1310 = vpop.f32.mrf.mxu0
        %v1311 = vadd.f32 %v1138, %v1310
        %v1312 = vpop.f32.mrf.mxu0
        %v1313 = vadd.f32 %v1140, %v1312
        %v1314 = vpop.f32.mrf.mxu0
        %v1315 = vadd.f32 %v1142, %v1314
        %v1316 = vpop.f32.mrf.mxu0
        %v1317 = vadd.f32 %v1144, %v1316
        %1318 = vmatprep.mubr.bf16.mxu0 %v988
        %1319 = vmatmul.mubr.bf16.gmra.mxu0 %v602
        %v1320 = vpop.f32.mrf.mxu0
        %v1321 = vadd.f32 %v1148, %v1320
        %v1322 = vpop.f32.mrf.mxu0
        %v1323 = vadd.f32 %v1150, %v1322
        %v1324 = vpop.f32.mrf.mxu0
        %v1325 = vadd.f32 %v1152, %v1324
        %v1326 = vpop.f32.mrf.mxu0
        %v1327 = vadd.f32 %v1154, %v1326
        %1328 = vmatprep.mubr.bf16.mxu0 %v991
        %1329 = vmatmul.mubr.bf16.gmra.mxu0 %v606
        %v1330 = vpop.f32.mrf.mxu0
        %v1331 = vadd.f32 %v1158, %v1330
        %v1332 = vpop.f32.mrf.mxu0
        %v1333 = vadd.f32 %v1160, %v1332
        %v1334 = vpop.f32.mrf.mxu0
        %v1335 = vadd.f32 %v1162, %v1334
        %v1336 = vpop.f32.mrf.mxu0
        %v1337 = vadd.f32 %v1164, %v1336
        %1338 = vdwg.mxu0
        %v1339 = vmax.f32 %v1201, 0.0
        %v1340 = vmax.f32 %v1203, 0.0
        %v1341 = vmax.f32 %v1205, 0.0
        %v1342 = vmax.f32 %v1207, 0.0
        %v1343 = vmax.f32 %v1211, 0.0
        %v1344 = vmax.f32 %v1213, 0.0
        %v1345 = vmax.f32 %v1215, 0.0
        %v1346 = vmax.f32 %v1217, 0.0
        %v1347 = vmax.f32 %v1221, 0.0
        %v1348 = vmax.f32 %v1223, 0.0
        %v1349 = vmax.f32 %v1225, 0.0
        %v1350 = vmax.f32 %v1227, 0.0
        %v1351 = vmax.f32 %v1231, 0.0
        %v1352 = vmax.f32 %v1233, 0.0
        %v1353 = vmax.f32 %v1235, 0.0
        %v1354 = vmax.f32 %v1237, 0.0
        %v1355 = vmax.f32 %v1241, 0.0
        %v1356 = vmax.f32 %v1243, 0.0
        %v1357 = vmax.f32 %v1245, 0.0
        %v1358 = vmax.f32 %v1247, 0.0
        %v1359 = vmax.f32 %v1251, 0.0
        %v1360 = vmax.f32 %v1253, 0.0
        %v1361 = vmax.f32 %v1255, 0.0
        %v1362 = vmax.f32 %v1257, 0.0
        %v1363 = vmax.f32 %v1261, 0.0
        %v1364 = vmax.f32 %v1263, 0.0
        %v1365 = vmax.f32 %v1265, 0.0
        %v1366 = vmax.f32 %v1267, 0.0
        %v1367 = vmax.f32 %v1271, 0.0
        %v1368 = vmax.f32 %v1273, 0.0
        %v1369 = vmax.f32 %v1275, 0.0
        %v1370 = vmax.f32 %v1277, 0.0
        %v1371 = vmax.f32 %v1281, 0.0
        %v1372 = vmax.f32 %v1283, 0.0
        %v1373 = vmax.f32 %v1285, 0.0
        %v1374 = vmax.f32 %v1287, 0.0
        %v1375 = vmax.f32 %v1291, 0.0
        %v1376 = vmax.f32 %v1293, 0.0
        %v1377 = vmax.f32 %v1295, 0.0
        %v1378 = vmax.f32 %v1297, 0.0
        %v1379 = vmax.f32 %v1301, 0.0
        %v1380 = vmax.f32 %v1303, 0.0
        %v1381 = vmax.f32 %v1305, 0.0
        %v1382 = vmax.f32 %v1307, 0.0
        %v1383 = vmax.f32 %v1311, 0.0
        %v1384 = vmax.f32 %v1313, 0.0
        %v1385 = vmax.f32 %v1315, 0.0
        %v1386 = vmax.f32 %v1317, 0.0
        %v1387 = vmax.f32 %v1321, 0.0
        %v1388 = vmax.f32 %v1323, 0.0
        %v1389 = vmax.f32 %v1325, 0.0
        %v1390 = vmax.f32 %v1327, 0.0
        %v1391 = vmax.f32 %v1331, 0.0
        %v1392 = vmax.f32 %v1333, 0.0
        %v1393 = vmax.f32 %v1335, 0.0
        %v1394 = vmax.f32 %v1337, 0.0
        %v1395 = vpack.c.bf16 %v1341, %v1339
        %v1396 = vpack.c.bf16 %v1342, %v1340
        %v1397 = vpack.c.bf16 %v1345, %v1343
        %v1398 = vpack.c.bf16 %v1346, %v1344
        %v1399 = vpack.c.bf16 %v1349, %v1347
        %v1400 = vpack.c.bf16 %v1350, %v1348
        %v1401 = vpack.c.bf16 %v1353, %v1351
        %v1402 = vpack.c.bf16 %v1354, %v1352
        %v1403 = vpack.c.bf16 %v1357, %v1355
        %v1404 = vpack.c.bf16 %v1358, %v1356
        %v1405 = vpack.c.bf16 %v1361, %v1359
        %v1406 = vpack.c.bf16 %v1362, %v1360
        %v1407 = vpack.c.bf16 %v1365, %v1363
        %v1408 = vpack.c.bf16 %v1366, %v1364
        %v1409 = vpack.c.bf16 %v1369, %v1367
        %v1410 = vpack.c.bf16 %v1370, %v1368
        %v1411 = vpack.c.bf16 %v1373, %v1371
        %v1412 = vpack.c.bf16 %v1374, %v1372
        %v1413 = vpack.c.bf16 %v1377, %v1375
        %v1414 = vpack.c.bf16 %v1378, %v1376
        %v1415 = vpack.c.bf16 %v1381, %v1379
        %v1416 = vpack.c.bf16 %v1382, %v1380
        %v1417 = vpack.c.bf16 %v1385, %v1383
        %v1418 = vpack.c.bf16 %v1386, %v1384
        %v1419 = vpack.c.bf16 %v1389, %v1387
        %v1420 = vpack.c.bf16 %v1390, %v1388
        %v1421 = vpack.c.bf16 %v1393, %v1391
        %v1422 = vpack.c.bf16 %v1394, %v1392
        %v1423 = vld [vmem:[%s2 + $0x1e0] sm:$0xf]
        %v1424 = vld [vmem:[%s2 + $0x1e8] sm:$0xf]
        %v1425 = vld [vmem:[%s2 + $0x1f0] sm:$0xf]
        %v1426 = vld [vmem:[%s2 + $0x1f8] sm:$0xf]
        %v1427 = vld [vmem:[%s2 + $0x200] sm:$0xf]
        %v1428 = vld [vmem:[%s2 + $0x208] sm:$0xf]
        %v1429 = vld [vmem:[%s2 + $0x210] sm:$0xf]
        %v1430 = vld [vmem:[%s2 + $0x218] sm:$0xf]
        %v1431 = vld [vmem:[%s2 + $0x220] sm:$0xf]
        %v1432 = vld [vmem:[%s2 + $0x228] sm:$0xf]
        %v1433 = vld [vmem:[%s2 + $0x230] sm:$0xf]
        %v1434 = vld [vmem:[%s2 + $0x238] sm:$0xf]
        %v1435 = vld [vmem:[%s2 + $0x240] sm:$0xf]
        %v1436 = vld [vmem:[%s2 + $0x248] sm:$0xf]
        %v1437 = vld [vmem:[%s2 + $0x250] sm:$0xf]
        %v1438 = vld [vmem:[%s2 + $0x258] sm:$0xf]
        %v1439 = vld [vmem:[%s2 + $0x260] sm:$0xf]
        %v1440 = vld [vmem:[%s2 + $0x268] sm:$0xf]
        %v1441 = vld [vmem:[%s2 + $0x270] sm:$0xf]
        %v1442 = vld [vmem:[%s2 + $0x278] sm:$0xf]
        %v1443 = vld [vmem:[%s2 + $0x280] sm:$0xf]
        %v1465 = vunpack.c.l.b16 %v1423
        %v1466 = vunpack.c.l.b16 %v1424
        %v1467 = vunpack.c.l.b16 %v1425
        %v1468 = vunpack.c.l.b16 %v1426
        %v1469 = vunpack.c.l.b16 %v1427
        %v1470 = vunpack.c.l.b16 %v1428
        %v1471 = vunpack.c.l.b16 %v1429
        %v1472 = vunpack.c.l.b16 %v1430
        %v1473 = vunpack.c.l.b16 %v1431
        %v1474 = vunpack.c.l.b16 %v1432
        %v1475 = vunpack.c.l.b16 %v1433
        %v1476 = vunpack.c.l.b16 %v1434
        %v1477 = vunpack.c.l.b16 %v1435
        %v1478 = vunpack.c.l.b16 %v1436
        %v1479 = vunpack.c.l.b16 %v1437
        %v1480 = vunpack.c.l.b16 %v1438
        %v1481 = vunpack.c.l.b16 %v1439
        %v1482 = vunpack.c.l.b16 %v1440
        %v1483 = vunpack.c.l.b16 %v1441
        %v1484 = vunpack.c.l.b16 %v1442
        %v1485 = vunpack.c.l.b16 %v1443
        %v1486 = vpack.c.b16 %v1466, %v1465
        %v1487 = vpack.c.b16 %v1468, %v1467
        %v1488 = vpack.c.b16 %v1470, %v1469
        %v1489 = vpack.c.b16 %v1472, %v1471
        %v1490 = vpack.c.b16 %v1474, %v1473
        %v1491 = vpack.c.b16 %v1476, %v1475
        %v1492 = vpack.c.b16 %v1478, %v1477
        %v1493 = vpack.c.b16 %v1480, %v1479
        %v1494 = vpack.c.b16 %v1482, %v1481
        %v1495 = vpack.c.b16 %v1484, %v1483
        %v1496 = vpack.c.b16 %v1485, %v1485
        %vm1507 = vcmask 326656
        %v1509 = vsel %vm1507, %v1396, 0
        %v1512 = vsel %vm1507, %v1398, 0
        %v1515 = vsel %vm1507, %v1400, 0
        %v1518 = vsel %vm1507, %v1402, 0
        %v1521 = vsel %vm1507, %v1404, 0
        %v1524 = vsel %vm1507, %v1406, 0
        %v1527 = vsel %vm1507, %v1408, 0
        %v1530 = vsel %vm1507, %v1410, 0
        %v1533 = vsel %vm1507, %v1412, 0
        %v1536 = vsel %vm1507, %v1414, 0
        %v1539 = vsel %vm1507, %v1416, 0
        %v1542 = vsel %vm1507, %v1418, 0
        %v1545 = vsel %vm1507, %v1420, 0
        %v1548 = vsel %vm1507, %v1422, 0
        %vm1550 = vcmask 1043456
        %v1552 = vsel %vm1550, %v1496, 0
        %1554 = vmatprep.subr.bf16.mxu0 0
        %1555 = vmatpush1.bf16.msra.mxu0 %v1493
        %1556 = vmatprep.subr.bf16.mxu0 0
        %1557 = vmatpush1.bf16.msra.mxu0 %v1492
        %1558 = vmatprep.subr.bf16.mxu0 0
        %1559 = vmatpush1.bf16.msra.mxu0 %v1491
        %1560 = vmatprep.subr.bf16.mxu0 0
        %1561 = vmatpush1.bf16.msra.mxu0 %v1490
        %1562 = vmatprep.subr.bf16.mxu0 0
        %1563 = vmatpush1.bf16.msra.mxu0 %v1489
        %1564 = vmatprep.subr.bf16.mxu0 0
        %1565 = vmatpush1.bf16.msra.mxu0 %v1488
        %1566 = vmatprep.subr.bf16.mxu0 0
        %1567 = vmatpush1.bf16.msra.mxu0 %v1487
        %1568 = vmatprep.subr.bf16.mxu0 0
        %1569 = vmatpush1.bf16.msra.mxu0 %v1486
        %1570 = vmatprep.subr.bf16.mxu0 0
        %1571 = vmatpush2.bf16.msra.mxu0 0
        %1572 = vmatprep.subr.bf16.mxu0 0
        %1573 = vmatpush2.bf16.msra.mxu0 0
        %1574 = vmatprep.subr.bf16.mxu0 0
        %1575 = vmatpush2.bf16.msra.mxu0 0
        %1576 = vmatprep.subr.bf16.mxu0 0
        %1577 = vmatpush2.bf16.msra.mxu0 0
        %1578 = vmatprep.subr.bf16.mxu0 0
        %1579 = vmatpush2.bf16.msra.mxu0 0
        %1580 = vmatprep.subr.bf16.mxu0 0
        %1581 = vmatpush2.bf16.msra.mxu0 %v1552
        %1582 = vmatprep.subr.bf16.mxu0 0
        %1583 = vmatpush2.bf16.msra.mxu0 %v1495
        %1584 = vmatprep.subr.bf16.mxu0 0
        %1585 = vmatpush2.bf16.msra.mxu0 %v1494
        %1586 = vmatprep.mubr.bf16.mxu0 %v1509
        %1587 = vmatmul.mubr.bf16.gmra.mxu0 %v1395
        %v1588 = vpop.f32.mrf.mxu0
        %v1589 = vadd.f32 0.0, %v1588
        %v1590 = vpop.f32.mrf.mxu0
        %v1591 = vpop.f32.mrf.mxu0
        %v1592 = vadd.f32 0.0, %v1591
        %v1593 = vpop.f32.mrf.mxu0
        %1594 = vmatprep.mubr.bf16.mxu0 %v1512
        %1595 = vmatmul.mubr.bf16.gmra.mxu0 %v1397
        %v1596 = vpop.f32.mrf.mxu0
        %v1597 = vadd.f32 0.0, %v1596
        %v1598 = vpop.f32.mrf.mxu0
        %v1599 = vpop.f32.mrf.mxu0
        %v1600 = vadd.f32 0.0, %v1599
        %v1601 = vpop.f32.mrf.mxu0
        %1602 = vmatprep.mubr.bf16.mxu0 %v1515
        %1603 = vmatmul.mubr.bf16.gmra.mxu0 %v1399
        %v1604 = vpop.f32.mrf.mxu0
        %v1605 = vadd.f32 0.0, %v1604
        %v1606 = vpop.f32.mrf.mxu0
        %v1607 = vpop.f32.mrf.mxu0
        %v1608 = vadd.f32 0.0, %v1607
        %v1609 = vpop.f32.mrf.mxu0
        %1610 = vmatprep.mubr.bf16.mxu0 %v1518
        %1611 = vmatmul.mubr.bf16.gmra.mxu0 %v1401
        %v1612 = vpop.f32.mrf.mxu0
        %v1613 = vadd.f32 0.0, %v1612
        %v1614 = vpop.f32.mrf.mxu0
        %v1615 = vpop.f32.mrf.mxu0
        %v1616 = vadd.f32 0.0, %v1615
        %v1617 = vpop.f32.mrf.mxu0
        %1618 = vmatprep.mubr.bf16.mxu0 %v1521
        %1619 = vmatmul.mubr.bf16.gmra.mxu0 %v1403
        %v1620 = vpop.f32.mrf.mxu0
        %v1621 = vadd.f32 0.0, %v1620
        %v1622 = vpop.f32.mrf.mxu0
        %v1623 = vpop.f32.mrf.mxu0
        %v1624 = vadd.f32 0.0, %v1623
        %v1625 = vpop.f32.mrf.mxu0
        %1626 = vmatprep.mubr.bf16.mxu0 %v1524
        %1627 = vmatmul.mubr.bf16.gmra.mxu0 %v1405
        %v1628 = vpop.f32.mrf.mxu0
        %v1629 = vadd.f32 0.0, %v1628
        %v1630 = vpop.f32.mrf.mxu0
        %v1631 = vpop.f32.mrf.mxu0
        %v1632 = vadd.f32 0.0, %v1631
        %v1633 = vpop.f32.mrf.mxu0
        %1634 = vmatprep.mubr.bf16.mxu0 %v1527
        %1635 = vmatmul.mubr.bf16.gmra.mxu0 %v1407
        %v1636 = vpop.f32.mrf.mxu0
        %v1637 = vadd.f32 0.0, %v1636
        %v1638 = vpop.f32.mrf.mxu0
        %v1639 = vpop.f32.mrf.mxu0
        %v1640 = vadd.f32 0.0, %v1639
        %v1641 = vpop.f32.mrf.mxu0
        %1642 = vmatprep.mubr.bf16.mxu0 %v1530
        %1643 = vmatmul.mubr.bf16.gmra.mxu0 %v1409
        %v1644 = vpop.f32.mrf.mxu0
        %v1645 = vadd.f32 0.0, %v1644
        %v1646 = vpop.f32.mrf.mxu0
        %v1647 = vpop.f32.mrf.mxu0
        %v1648 = vadd.f32 0.0, %v1647
        %v1649 = vpop.f32.mrf.mxu0
        %1650 = vmatprep.mubr.bf16.mxu0 %v1533
        %1651 = vmatmul.mubr.bf16.gmra.mxu0 %v1411
        %v1652 = vpop.f32.mrf.mxu0
        %v1653 = vadd.f32 0.0, %v1652
        %v1654 = vpop.f32.mrf.mxu0
        %v1655 = vpop.f32.mrf.mxu0
        %v1656 = vadd.f32 0.0, %v1655
        %v1657 = vpop.f32.mrf.mxu0
        %1658 = vmatprep.mubr.bf16.mxu0 %v1536
        %1659 = vmatmul.mubr.bf16.gmra.mxu0 %v1413
        %v1660 = vpop.f32.mrf.mxu0
        %v1661 = vadd.f32 0.0, %v1660
        %v1662 = vpop.f32.mrf.mxu0
        %v1663 = vpop.f32.mrf.mxu0
        %v1664 = vadd.f32 0.0, %v1663
        %v1665 = vpop.f32.mrf.mxu0
        %1666 = vmatprep.mubr.bf16.mxu0 %v1539
        %1667 = vmatmul.mubr.bf16.gmra.mxu0 %v1415
        %v1668 = vpop.f32.mrf.mxu0
        %v1669 = vadd.f32 0.0, %v1668
        %v1670 = vpop.f32.mrf.mxu0
        %v1671 = vpop.f32.mrf.mxu0
        %v1672 = vadd.f32 0.0, %v1671
        %v1673 = vpop.f32.mrf.mxu0
        %1674 = vmatprep.mubr.bf16.mxu0 %v1542
        %1675 = vmatmul.mubr.bf16.gmra.mxu0 %v1417
        %v1676 = vpop.f32.mrf.mxu0
        %v1677 = vadd.f32 0.0, %v1676
        %v1678 = vpop.f32.mrf.mxu0
        %v1679 = vpop.f32.mrf.mxu0
        %v1680 = vadd.f32 0.0, %v1679
        %v1681 = vpop.f32.mrf.mxu0
        %1682 = vmatprep.mubr.bf16.mxu0 %v1545
        %1683 = vmatmul.mubr.bf16.gmra.mxu0 %v1419
        %v1684 = vpop.f32.mrf.mxu0
        %v1685 = vadd.f32 0.0, %v1684
        %v1686 = vpop.f32.mrf.mxu0
        %v1687 = vpop.f32.mrf.mxu0
        %v1688 = vadd.f32 0.0, %v1687
        %v1689 = vpop.f32.mrf.mxu0
        %1690 = vmatprep.mubr.bf16.mxu0 %v1548
        %1691 = vmatmul.mubr.bf16.gmra.mxu0 %v1421
        %v1692 = vpop.f32.mrf.mxu0
        %v1693 = vadd.f32 0.0, %v1692
        %v1694 = vpop.f32.mrf.mxu0
        %v1695 = vpop.f32.mrf.mxu0
        %v1696 = vadd.f32 0.0, %v1695
        %v1697 = vpop.f32.mrf.mxu0
        %1698 = vdwg.mxu0
        %v1699 = vld [vmem:[%s2 + $0x288] sm:$0xf]
        %v1700 = vld [vmem:[%s2 + $0x290] sm:$0xf]
        %v1701 = vld [vmem:[%s2 + $0x298] sm:$0xf]
        %v1702 = vld [vmem:[%s2 + $0x2a0] sm:$0xf]
        %v1703 = vld [vmem:[%s2 + $0x2a8] sm:$0xf]
        %v1704 = vld [vmem:[%s2 + $0x2b0] sm:$0xf]
        %v1705 = vld [vmem:[%s2 + $0x2b8] sm:$0xf]
        %v1706 = vld [vmem:[%s2 + $0x2c0] sm:$0xf]
        %v1707 = vld [vmem:[%s2 + $0x2c8] sm:$0xf]
        %v1708 = vld [vmem:[%s2 + $0x2d0] sm:$0xf]
        %v1709 = vld [vmem:[%s2 + $0x2d8] sm:$0xf]
        %v1710 = vld [vmem:[%s2 + $0x2e0] sm:$0xf]
        %v1711 = vld [vmem:[%s2 + $0x2e8] sm:$0xf]
        %v1712 = vld [vmem:[%s2 + $0x2f0] sm:$0xf]
        %v1713 = vld [vmem:[%s2 + $0x2f8] sm:$0xf]
        %v1714 = vld [vmem:[%s2 + $0x300] sm:$0xf]
        %v1715 = vld [vmem:[%s2 + $0x308] sm:$0xf]
        %v1716 = vld [vmem:[%s2 + $0x310] sm:$0xf]
        %v1717 = vld [vmem:[%s2 + $0x318] sm:$0xf]
        %v1718 = vld [vmem:[%s2 + $0x320] sm:$0xf]
        %v1719 = vld [vmem:[%s2 + $0x328] sm:$0xf]
        %v1741 = vunpack.c.l.b16 %v1699
        %v1742 = vunpack.c.l.b16 %v1700
        %v1743 = vunpack.c.l.b16 %v1701
        %v1744 = vunpack.c.l.b16 %v1702
        %v1745 = vunpack.c.l.b16 %v1703
        %v1746 = vunpack.c.l.b16 %v1704
        %v1747 = vunpack.c.l.b16 %v1705
        %v1748 = vunpack.c.l.b16 %v1706
        %v1749 = vunpack.c.l.b16 %v1707
        %v1750 = vunpack.c.l.b16 %v1708
        %v1751 = vunpack.c.l.b16 %v1709
        %v1752 = vunpack.c.l.b16 %v1710
        %v1753 = vunpack.c.l.b16 %v1711
        %v1754 = vunpack.c.l.b16 %v1712
        %v1755 = vunpack.c.l.b16 %v1713
        %v1756 = vunpack.c.l.b16 %v1714
        %v1757 = vunpack.c.l.b16 %v1715
        %v1758 = vunpack.c.l.b16 %v1716
        %v1759 = vunpack.c.l.b16 %v1717
        %v1760 = vunpack.c.l.b16 %v1718
        %v1761 = vunpack.c.l.b16 %v1719
        %v1762 = vpack.c.b16 %v1742, %v1741
        %v1763 = vpack.c.b16 %v1744, %v1743
        %v1764 = vpack.c.b16 %v1746, %v1745
        %v1765 = vpack.c.b16 %v1748, %v1747
        %v1766 = vpack.c.b16 %v1750, %v1749
        %v1767 = vpack.c.b16 %v1752, %v1751
        %v1768 = vpack.c.b16 %v1754, %v1753
        %v1769 = vpack.c.b16 %v1756, %v1755
        %v1770 = vpack.c.b16 %v1758, %v1757
        %v1771 = vpack.c.b16 %v1760, %v1759
        %v1772 = vpack.c.b16 %v1761, %v1761
        %v1784 = vsel %vm1550, %v1772, 0
        %1786 = vmatprep.subr.bf16.mxu0 0
        %1787 = vmatpush1.bf16.msra.mxu0 %v1769
        %1788 = vmatprep.subr.bf16.mxu0 0
        %1789 = vmatpush1.bf16.msra.mxu0 %v1768
        %1790 = vmatprep.subr.bf16.mxu0 0
        %1791 = vmatpush1.bf16.msra.mxu0 %v1767
        %1792 = vmatprep.subr.bf16.mxu0 0
        %1793 = vmatpush1.bf16.msra.mxu0 %v1766
        %1794 = vmatprep.subr.bf16.mxu0 0
        %1795 = vmatpush1.bf16.msra.mxu0 %v1765
        %1796 = vmatprep.subr.bf16.mxu0 0
        %1797 = vmatpush1.bf16.msra.mxu0 %v1764
        %1798 = vmatprep.subr.bf16.mxu0 0
        %1799 = vmatpush1.bf16.msra.mxu0 %v1763
        %1800 = vmatprep.subr.bf16.mxu0 0
        %1801 = vmatpush1.bf16.msra.mxu0 %v1762
        %1802 = vmatprep.subr.bf16.mxu0 0
        %1803 = vmatpush2.bf16.msra.mxu0 0
        %1804 = vmatprep.subr.bf16.mxu0 0
        %1805 = vmatpush2.bf16.msra.mxu0 0
        %1806 = vmatprep.subr.bf16.mxu0 0
        %1807 = vmatpush2.bf16.msra.mxu0 0
        %1808 = vmatprep.subr.bf16.mxu0 0
        %1809 = vmatpush2.bf16.msra.mxu0 0
        %1810 = vmatprep.subr.bf16.mxu0 0
        %1811 = vmatpush2.bf16.msra.mxu0 0
        %1812 = vmatprep.subr.bf16.mxu0 0
        %1813 = vmatpush2.bf16.msra.mxu0 %v1784
        %1814 = vmatprep.subr.bf16.mxu0 0
        %1815 = vmatpush2.bf16.msra.mxu0 %v1771
        %1816 = vmatprep.subr.bf16.mxu0 0
        %1817 = vmatpush2.bf16.msra.mxu0 %v1770
        %1818 = vmatprep.mubr.bf16.mxu0 %v1509
        %1819 = vmatmul.mubr.bf16.gmra.mxu0 %v1395
        %v1820 = vpop.f32.mrf.mxu0
        %v1821 = vadd.f32 0.0, %v1820
        %v1822 = vpop.f32.mrf.mxu0
        %v1823 = vpop.f32.mrf.mxu0
        %v1824 = vadd.f32 0.0, %v1823
        %v1825 = vpop.f32.mrf.mxu0
        %1826 = vmatprep.mubr.bf16.mxu0 %v1512
        %1827 = vmatmul.mubr.bf16.gmra.mxu0 %v1397
        %v1828 = vpop.f32.mrf.mxu0
        %v1829 = vadd.f32 0.0, %v1828
        %v1830 = vpop.f32.mrf.mxu0
        %v1831 = vpop.f32.mrf.mxu0
        %v1832 = vadd.f32 0.0, %v1831
        %v1833 = vpop.f32.mrf.mxu0
        %1834 = vmatprep.mubr.bf16.mxu0 %v1515
        %1835 = vmatmul.mubr.bf16.gmra.mxu0 %v1399
        %v1836 = vpop.f32.mrf.mxu0
        %v1837 = vadd.f32 0.0, %v1836
        %v1838 = vpop.f32.mrf.mxu0
        %v1839 = vpop.f32.mrf.mxu0
        %v1840 = vadd.f32 0.0, %v1839
        %v1841 = vpop.f32.mrf.mxu0
        %1842 = vmatprep.mubr.bf16.mxu0 %v1518
        %1843 = vmatmul.mubr.bf16.gmra.mxu0 %v1401
        %v1844 = vpop.f32.mrf.mxu0
        %v1845 = vadd.f32 0.0, %v1844
        %v1846 = vpop.f32.mrf.mxu0
        %v1847 = vpop.f32.mrf.mxu0
        %v1848 = vadd.f32 0.0, %v1847
        %v1849 = vpop.f32.mrf.mxu0
        %1850 = vmatprep.mubr.bf16.mxu0 %v1521
        %1851 = vmatmul.mubr.bf16.gmra.mxu0 %v1403
        %v1852 = vpop.f32.mrf.mxu0
        %v1853 = vadd.f32 0.0, %v1852
        %v1854 = vpop.f32.mrf.mxu0
        %v1855 = vpop.f32.mrf.mxu0
        %v1856 = vadd.f32 0.0, %v1855
        %v1857 = vpop.f32.mrf.mxu0
        %1858 = vmatprep.mubr.bf16.mxu0 %v1524
        %1859 = vmatmul.mubr.bf16.gmra.mxu0 %v1405
        %v1860 = vpop.f32.mrf.mxu0
        %v1861 = vadd.f32 0.0, %v1860
        %v1862 = vpop.f32.mrf.mxu0
        %v1863 = vpop.f32.mrf.mxu0
        %v1864 = vadd.f32 0.0, %v1863
        %v1865 = vpop.f32.mrf.mxu0
        %1866 = vmatprep.mubr.bf16.mxu0 %v1527
        %1867 = vmatmul.mubr.bf16.gmra.mxu0 %v1407
        %v1868 = vpop.f32.mrf.mxu0
        %v1869 = vadd.f32 0.0, %v1868
        %v1870 = vpop.f32.mrf.mxu0
        %v1871 = vpop.f32.mrf.mxu0
        %v1872 = vadd.f32 0.0, %v1871
        %v1873 = vpop.f32.mrf.mxu0
        %1874 = vmatprep.mubr.bf16.mxu0 %v1530
        %1875 = vmatmul.mubr.bf16.gmra.mxu0 %v1409
        %v1876 = vpop.f32.mrf.mxu0
        %v1877 = vadd.f32 0.0, %v1876
        %v1878 = vpop.f32.mrf.mxu0
        %v1879 = vpop.f32.mrf.mxu0
        %v1880 = vadd.f32 0.0, %v1879
        %v1881 = vpop.f32.mrf.mxu0
        %1882 = vmatprep.mubr.bf16.mxu0 %v1533
        %1883 = vmatmul.mubr.bf16.gmra.mxu0 %v1411
        %v1884 = vpop.f32.mrf.mxu0
        %v1885 = vadd.f32 0.0, %v1884
        %v1886 = vpop.f32.mrf.mxu0
        %v1887 = vpop.f32.mrf.mxu0
        %v1888 = vadd.f32 0.0, %v1887
        %v1889 = vpop.f32.mrf.mxu0
        %1890 = vmatprep.mubr.bf16.mxu0 %v1536
        %1891 = vmatmul.mubr.bf16.gmra.mxu0 %v1413
        %v1892 = vpop.f32.mrf.mxu0
        %v1893 = vadd.f32 0.0, %v1892
        %v1894 = vpop.f32.mrf.mxu0
        %v1895 = vpop.f32.mrf.mxu0
        %v1896 = vadd.f32 0.0, %v1895
        %v1897 = vpop.f32.mrf.mxu0
        %1898 = vmatprep.mubr.bf16.mxu0 %v1539
        %1899 = vmatmul.mubr.bf16.gmra.mxu0 %v1415
        %v1900 = vpop.f32.mrf.mxu0
        %v1901 = vadd.f32 0.0, %v1900
        %v1902 = vpop.f32.mrf.mxu0
        %v1903 = vpop.f32.mrf.mxu0
        %v1904 = vadd.f32 0.0, %v1903
        %v1905 = vpop.f32.mrf.mxu0
        %1906 = vmatprep.mubr.bf16.mxu0 %v1542
        %1907 = vmatmul.mubr.bf16.gmra.mxu0 %v1417
        %v1908 = vpop.f32.mrf.mxu0
        %v1909 = vadd.f32 0.0, %v1908
        %v1910 = vpop.f32.mrf.mxu0
        %v1911 = vpop.f32.mrf.mxu0
        %v1912 = vadd.f32 0.0, %v1911
        %v1913 = vpop.f32.mrf.mxu0
        %1914 = vmatprep.mubr.bf16.mxu0 %v1545
        %1915 = vmatmul.mubr.bf16.gmra.mxu0 %v1419
        %v1916 = vpop.f32.mrf.mxu0
        %v1917 = vadd.f32 0.0, %v1916
        %v1918 = vpop.f32.mrf.mxu0
        %v1919 = vpop.f32.mrf.mxu0
        %v1920 = vadd.f32 0.0, %v1919
        %v1921 = vpop.f32.mrf.mxu0
        %1922 = vmatprep.mubr.bf16.mxu0 %v1548
        %1923 = vmatmul.mubr.bf16.gmra.mxu0 %v1421
        %v1924 = vpop.f32.mrf.mxu0
        %v1925 = vadd.f32 0.0, %v1924
        %v1926 = vpop.f32.mrf.mxu0
        %v1927 = vpop.f32.mrf.mxu0
        %v1928 = vadd.f32 0.0, %v1927
        %v1929 = vpop.f32.mrf.mxu0
        %1930 = vdwg.mxu0
        %v1931 = vmax.f32 %v1589, %v1821
        %v1932 = vmax.f32 %v1592, %v1824
        %v1933 = vmax.f32 %v1597, %v1829
        %v1934 = vmax.f32 %v1600, %v1832
        %v1935 = vmax.f32 %v1605, %v1837
        %v1936 = vmax.f32 %v1608, %v1840
        %v1937 = vmax.f32 %v1613, %v1845
        %v1938 = vmax.f32 %v1616, %v1848
        %v1939 = vmax.f32 %v1621, %v1853
        %v1940 = vmax.f32 %v1624, %v1856
        %v1941 = vmax.f32 %v1629, %v1861
        %v1942 = vmax.f32 %v1632, %v1864
        %v1943 = vmax.f32 %v1637, %v1869
        %v1944 = vmax.f32 %v1640, %v1872
        %v1945 = vmax.f32 %v1645, %v1877
        %v1946 = vmax.f32 %v1648, %v1880
        %v1947 = vmax.f32 %v1653, %v1885
        %v1948 = vmax.f32 %v1656, %v1888
        %v1949 = vmax.f32 %v1661, %v1893
        %v1950 = vmax.f32 %v1664, %v1896
        %v1951 = vmax.f32 %v1669, %v1901
        %v1952 = vmax.f32 %v1672, %v1904
        %v1953 = vmax.f32 %v1677, %v1909
        %v1954 = vmax.f32 %v1680, %v1912
        %v1955 = vmax.f32 %v1685, %v1917
        %v1956 = vmax.f32 %v1688, %v1920
        %v1957 = vmax.f32 %v1693, %v1925
        %v1958 = vmax.f32 %v1696, %v1928
        %vm1959 = vcmask 687104
        %1960 = vst.msk [vmem:[#allocation2] sm:$0xff] %vm1959, %v1931
        %1961 = vst.msk [vmem:[#allocation2 + $0x8] sm:$0xff] %vm1959, %v1932
        %1962 = vst.msk [vmem:[#allocation2 + $0x10] sm:$0xff] %vm1959, %v1933
        %1963 = vst.msk [vmem:[#allocation2 + $0x18] sm:$0xff] %vm1959, %v1934
        %1964 = vst.msk [vmem:[#allocation2 + $0x20] sm:$0xff] %vm1959, %v1935
        %1965 = vst.msk [vmem:[#allocation2 + $0x28] sm:$0xff] %vm1959, %v1936
        %1966 = vst.msk [vmem:[#allocation2 + $0x30] sm:$0xff] %vm1959, %v1937
        %1967 = vst.msk [vmem:[#allocation2 + $0x38] sm:$0xff] %vm1959, %v1938
        %1968 = vst.msk [vmem:[#allocation2 + $0x40] sm:$0xff] %vm1959, %v1939
        %1969 = vst.msk [vmem:[#allocation2 + $0x48] sm:$0xff] %vm1959, %v1940
        %1970 = vst.msk [vmem:[#allocation2 + $0x50] sm:$0xff] %vm1959, %v1941
        %1971 = vst.msk [vmem:[#allocation2 + $0x58] sm:$0xff] %vm1959, %v1942
        %1972 = vst.msk [vmem:[#allocation2 + $0x60] sm:$0xff] %vm1959, %v1943
        %1973 = vst.msk [vmem:[#allocation2 + $0x68] sm:$0xff] %vm1959, %v1944
        %1974 = vst.msk [vmem:[#allocation2 + $0x70] sm:$0xff] %vm1959, %v1945
        %1975 = vst.msk [vmem:[#allocation2 + $0x78] sm:$0xff] %vm1959, %v1946
        %1976 = vst.msk [vmem:[#allocation2 + $0x80] sm:$0xff] %vm1959, %v1947
        %1977 = vst.msk [vmem:[#allocation2 + $0x88] sm:$0xff] %vm1959, %v1948
        %1978 = vst.msk [vmem:[#allocation2 + $0x90] sm:$0xff] %vm1959, %v1949
        %1979 = vst.msk [vmem:[#allocation2 + $0x98] sm:$0xff] %vm1959, %v1950
        %1980 = vst.msk [vmem:[#allocation2 + $0xa0] sm:$0xff] %vm1959, %v1951
        %1981 = vst.msk [vmem:[#allocation2 + $0xa8] sm:$0xff] %vm1959, %v1952
        %1982 = vst.msk [vmem:[#allocation2 + $0xb0] sm:$0xff] %vm1959, %v1953
        %1983 = vst.msk [vmem:[#allocation2 + $0xb8] sm:$0xff] %vm1959, %v1954
        %1984 = vst.msk [vmem:[#allocation2 + $0xc0] sm:$0xff] %vm1959, %v1955
        %1985 = vst.msk [vmem:[#allocation2 + $0xc8] sm:$0xff] %vm1959, %v1956
        %1986 = vst.msk [vmem:[#allocation2 + $0xd0] sm:$0xff] %vm1959, %v1957
        %1987 = vst.msk [vmem:[#allocation2 + $0xd8] sm:$0xff] %vm1959, %v1958
        %v1988 = vld [vmem:[#allocation2] ss:$2 sm:$0xff]
        %s1989 = scalar_lea.vmem [#allocation2], 16
        %v1990 = vld [vmem:[%s1989] ss:$2 sm:$0xff]
        %s1991 = scalar_lea.vmem [#allocation2], 32
        %v1992 = vld [vmem:[%s1991] ss:$2 sm:$0xff]
        %s1993 = scalar_lea.vmem [#allocation2], 48
        %v1994 = vld [vmem:[%s1993] ss:$2 sm:$0xff]
        %s1995 = scalar_lea.vmem [#allocation2], 64
        %v1996 = vld [vmem:[%s1995] ss:$2 sm:$0xff]
        %s1997 = scalar_lea.vmem [#allocation2], 80
        %v1998 = vld [vmem:[%s1997] ss:$2 sm:$0xff]
        %s1999 = scalar_lea.vmem [#allocation2], 96
        %v2000 = vld [vmem:[%s1999] ss:$2 sm:$0xff]
        %s2001 = scalar_lea.vmem [#allocation2], 112
        %v2002 = vld [vmem:[%s2001] ss:$2 sm:$0xff]
        %s2003 = scalar_lea.vmem [#allocation2], 128
        %v2004 = vld [vmem:[%s2003] ss:$2 sm:$0xff]
        %s2005 = scalar_lea.vmem [#allocation2], 144
        %v2006 = vld [vmem:[%s2005] ss:$2 sm:$0xff]
        %s2007 = scalar_lea.vmem [#allocation2], 160
        %v2008 = vld [vmem:[%s2007] ss:$2 sm:$0xff]
        %s2009 = scalar_lea.vmem [#allocation2], 176
        %v2010 = vld [vmem:[%s2009] ss:$2 sm:$0xff]
        %s2011 = scalar_lea.vmem [#allocation2], 192
        %v2012 = vld [vmem:[%s2011] ss:$2 sm:$0xff]
        %s2013 = scalar_lea.vmem [#allocation2], 208
        %v2014 = vld [vmem:[%s2013] ss:$2 sm:$0xff]
        %s2015 = scalar_lea.vmem [#allocation2], 1
        %v2016 = vld [vmem:[%s2015] ss:$2 sm:$0xff]
        %s2017 = scalar_lea.vmem [#allocation2], 17
        %v2018 = vld [vmem:[%s2017] ss:$2 sm:$0xff]
        %s2019 = scalar_lea.vmem [#allocation2], 33
        %v2020 = vld [vmem:[%s2019] ss:$2 sm:$0xff]
        %s2021 = scalar_lea.vmem [#allocation2], 49
        %v2022 = vld [vmem:[%s2021] ss:$2 sm:$0xff]
        %s2023 = scalar_lea.vmem [#allocation2], 65
        %v2024 = vld [vmem:[%s2023] ss:$2 sm:$0xff]
        %s2025 = scalar_lea.vmem [#allocation2], 81
        %v2026 = vld [vmem:[%s2025] ss:$2 sm:$0xff]
        %s2027 = scalar_lea.vmem [#allocation2], 97
        %v2028 = vld [vmem:[%s2027] ss:$2 sm:$0xff]
        %s2029 = scalar_lea.vmem [#allocation2], 113
        %v2030 = vld [vmem:[%s2029] ss:$2 sm:$0xff]
        %s2031 = scalar_lea.vmem [#allocation2], 129
        %v2032 = vld [vmem:[%s2031] ss:$2 sm:$0xff]
        %s2033 = scalar_lea.vmem [#allocation2], 145
        %v2034 = vld [vmem:[%s2033] ss:$2 sm:$0xff]
        %s2035 = scalar_lea.vmem [#allocation2], 161
        %v2036 = vld [vmem:[%s2035] ss:$2 sm:$0xff]
        %s2037 = scalar_lea.vmem [#allocation2], 177
        %v2038 = vld [vmem:[%s2037] ss:$2 sm:$0xff]
        %s2039 = scalar_lea.vmem [#allocation2], 193
        %v2040 = vld [vmem:[%s2039] ss:$2 sm:$0xff]
        %s2041 = scalar_lea.vmem [#allocation2], 209
        %v2042 = vld [vmem:[%s2041] ss:$2 sm:$0xff]
        %v2043 = vmax.f32 %v1988, %v2016
        %v2044 = vmax.f32 %v1990, %v2018
        %v2045 = vmax.f32 %v1992, %v2020
        %v2046 = vmax.f32 %v1994, %v2022
        %v2047 = vmax.f32 %v1996, %v2024
        %v2048 = vmax.f32 %v1998, %v2026
        %v2049 = vmax.f32 %v2000, %v2028
        %v2050 = vmax.f32 %v2002, %v2030
        %v2051 = vmax.f32 %v2004, %v2032
        %v2052 = vmax.f32 %v2006, %v2034
        %v2053 = vmax.f32 %v2008, %v2036
        %v2054 = vmax.f32 %v2010, %v2038
        %v2055 = vmax.f32 %v2012, %v2040
        %v2056 = vmax.f32 %v2014, %v2042
        %2057 = vst.msk [vmem:[#allocation2] sm:$0xff] %vm1959, %v2043
        %2058 = vst.msk [vmem:[#allocation2 + $0x8] sm:$0xff] %vm1959, %v2044
        %2059 = vst.msk [vmem:[#allocation2 + $0x10] sm:$0xff] %vm1959, %v2045
        %2060 = vst.msk [vmem:[#allocation2 + $0x18] sm:$0xff] %vm1959, %v2046
        %2061 = vst.msk [vmem:[#allocation2 + $0x20] sm:$0xff] %vm1959, %v2047
        %2062 = vst.msk [vmem:[#allocation2 + $0x28] sm:$0xff] %vm1959, %v2048
        %2063 = vst.msk [vmem:[#allocation2 + $0x30] sm:$0xff] %vm1959, %v2049
        %2064 = vst.msk [vmem:[#allocation2 + $0x38] sm:$0xff] %vm1959, %v2050
        %2065 = vst.msk [vmem:[#allocation2 + $0x40] sm:$0xff] %vm1959, %v2051
        %2066 = vst.msk [vmem:[#allocation2 + $0x48] sm:$0xff] %vm1959, %v2052
        %2067 = vst.msk [vmem:[#allocation2 + $0x50] sm:$0xff] %vm1959, %v2053
        %2068 = vst.msk [vmem:[#allocation2 + $0x58] sm:$0xff] %vm1959, %v2054
        %2069 = vst.msk [vmem:[#allocation2 + $0x60] sm:$0xff] %vm1959, %v2055
        %2070 = vst.msk [vmem:[#allocation2 + $0x68] sm:$0xff] %vm1959, %v2056
        %v2071 = vld [vmem:[#allocation2] sm:$0xff]
        %v2072 = vld [vmem:[#allocation2 + $0x8] sm:$0xff]
        %v2073 = vld [vmem:[#allocation2 + $0x10] sm:$0xff]
        %v2074 = vld [vmem:[#allocation2 + $0x18] sm:$0xff]
        %v2075 = vld [vmem:[#allocation2 + $0x20] sm:$0xff]
        %v2076 = vld [vmem:[#allocation2 + $0x28] sm:$0xff]
        %v2077 = vld [vmem:[#allocation2 + $0x30] sm:$0xff]
        %v2078 = vld [vmem:[#allocation2 + $0x38] sm:$0xff]
        %v2079 = vld [vmem:[#allocation2 + $0x40] sm:$0xff]
        %v2080 = vld [vmem:[#allocation2 + $0x48] sm:$0xff]
        %v2081 = vld [vmem:[#allocation2 + $0x50] sm:$0xff]
        %v2082 = vld [vmem:[#allocation2 + $0x58] sm:$0xff]
        %v2083 = vld [vmem:[#allocation2 + $0x60] sm:$0xff]
        %v2084 = vld [vmem:[#allocation2 + $0x68] sm:$0xff]
        %v2085 = vpack.c.bf16 %v2072, %v2071
        %v2086 = vpack.c.bf16 %v2074, %v2073
        %v2087 = vpack.c.bf16 %v2076, %v2075
        %v2088 = vpack.c.bf16 %v2078, %v2077
        %v2089 = vpack.c.bf16 %v2080, %v2079
        %v2090 = vpack.c.bf16 %v2082, %v2081
        %v2091 = vpack.c.bf16 %v2084, %v2083
        %v2092 = vld [vmem:[%s3] sm:$0xff]
        %v2093 = vld [vmem:[%s3 + $0x8] sm:$0xff]
        %v2094 = vld [vmem:[%s3 + $0x10] sm:$0xff]
        %v2095 = vld [vmem:[%s3 + $0x18] sm:$0xff]
        %v2096 = vld [vmem:[%s3 + $0x20] sm:$0xff]
        %v2097 = vld [vmem:[%s3 + $0x28] sm:$0xff]
        %v2098 = vld [vmem:[%s3 + $0x30] sm:$0xff]
        %v2099 = vld [vmem:[%s3 + $0x38] sm:$0xff]
        %v2100 = vld [vmem:[%s3 + $0x40] sm:$0xff]
        %v2101 = vld [vmem:[%s3 + $0x48] sm:$0xff]
        %v2102 = vld [vmem:[%s3 + $0x50] sm:$0x33]
        %v2103 = vld [vmem:[#allocation2 + $0x1] sm:$0xff]
        %v2104 = vld [vmem:[#allocation2 + $0x9] sm:$0xff]
        %v2105 = vld [vmem:[#allocation2 + $0x11] sm:$0xff]
        %v2106 = vld [vmem:[#allocation2 + $0x19] sm:$0xff]
        %v2107 = vld [vmem:[#allocation2 + $0x21] sm:$0xff]
        %v2108 = vld [vmem:[#allocation2 + $0x29] sm:$0xff]
        %v2109 = vld [vmem:[#allocation2 + $0x31] sm:$0xff]
        %v2110 = vld [vmem:[#allocation2 + $0x39] sm:$0xff]
        %v2111 = vld [vmem:[#allocation2 + $0x41] sm:$0xff]
        %v2112 = vld [vmem:[#allocation2 + $0x49] sm:$0xff]
        %v2113 = vld [vmem:[#allocation2 + $0x51] sm:$0xff]
        %v2114 = vld [vmem:[#allocation2 + $0x59] sm:$0xff]
        %v2115 = vld [vmem:[#allocation2 + $0x61] sm:$0xff]
        %v2116 = vld [vmem:[#allocation2 + $0x69] sm:$0xff]
        %v2117 = vpack.c.bf16 %v2104, %v2103
        %v2118 = vpack.c.bf16 %v2106, %v2105
        %v2119 = vpack.c.bf16 %v2108, %v2107
        %v2120 = vpack.c.bf16 %v2110, %v2109
        %v2121 = vpack.c.bf16 %v2112, %v2111
        %v2122 = vpack.c.bf16 %v2114, %v2113
        %v2123 = vpack.c.bf16 %v2116, %v2115
        %s2124 = scalar_lea.vmem %s3, 88
        %v2125 = vld [vmem:[%s2124] sm:$0xff]
        %v2126 = vld [vmem:[%s2124 + $0x8] sm:$0xff]
        %v2127 = vld [vmem:[%s2124 + $0x10] sm:$0xff]
        %v2128 = vld [vmem:[%s2124 + $0x18] sm:$0xff]
        %v2129 = vld [vmem:[%s2124 + $0x20] sm:$0xff]
        %v2130 = vld [vmem:[%s2124 + $0x28] sm:$0xff]
        %v2131 = vld [vmem:[%s2124 + $0x30] sm:$0xff]
        %v2132 = vld [vmem:[%s2124 + $0x38] sm:$0xff]
        %v2133 = vld [vmem:[%s2124 + $0x40] sm:$0xff]
        %v2134 = vld [vmem:[%s2124 + $0x48] sm:$0xff]
        %v2135 = vld [vmem:[%s2124 + $0x50] sm:$0x33]
        %v2147 = vunpack.c.l.b16 %v2125
        %v2148 = vunpack.c.h.b16 %v2125
        %v2149 = vunpack.c.l.b16 %v2126
        %v2150 = vunpack.c.h.b16 %v2126
        %v2151 = vunpack.c.l.b16 %v2127
        %v2152 = vunpack.c.h.b16 %v2127
        %v2153 = vunpack.c.l.b16 %v2128
        %v2154 = vunpack.c.h.b16 %v2128
        %v2155 = vunpack.c.l.b16 %v2129
        %v2156 = vunpack.c.h.b16 %v2129
        %v2157 = vunpack.c.l.b16 %v2130
        %v2158 = vunpack.c.h.b16 %v2130
        %v2159 = vunpack.c.l.b16 %v2131
        %v2160 = vunpack.c.h.b16 %v2131
        %v2161 = vunpack.c.l.b16 %v2132
        %v2162 = vunpack.c.h.b16 %v2132
        %v2163 = vunpack.c.l.b16 %v2133
        %v2164 = vunpack.c.h.b16 %v2133
        %v2165 = vunpack.c.l.b16 %v2134
        %v2166 = vunpack.c.h.b16 %v2134
        %v2167 = vunpack.c.l.b16 %v2135
        %v2168 = vunpack.c.h.b16 %v2135
        %v2169 = vpack.c.b16 %v2149, %v2147
        %v2170 = vpack.c.b16 %v2150, %v2148
        %v2171 = vpack.c.b16 %v2153, %v2151
        %v2172 = vpack.c.b16 %v2154, %v2152
        %v2173 = vpack.c.b16 %v2157, %v2155
        %v2174 = vpack.c.b16 %v2158, %v2156
        %v2175 = vpack.c.b16 %v2161, %v2159
        %v2176 = vpack.c.b16 %v2162, %v2160
        %v2177 = vpack.c.b16 %v2165, %v2163
        %v2178 = vpack.c.b16 %v2166, %v2164
        %v2179 = vpack.c.b16 %v2167, %v2167
        %v2180 = vpack.c.b16 %v2168, %v2168
        %v2192 = vsel %vm1959, %v2117, 0
        %v2195 = vsel %vm1959, %v2118, 0
        %v2198 = vsel %vm1959, %v2119, 0
        %v2201 = vsel %vm1959, %v2120, 0
        %v2204 = vsel %vm1959, %v2121, 0
        %v2207 = vsel %vm1959, %v2122, 0
        %v2210 = vsel %vm1959, %v2123, 0
        %vm2212 = vcmask 1041408
        %v2214 = vsel %vm2212, %v2179, 0
        %v2217 = vsel %vm2212, %v2180, 0
        %2219 = vmatprep.subr.bf16.mxu0 0
        %2220 = vmatpush1.bf16.msra.mxu0 0
        %2221 = vmatprep.subr.bf16.mxu0 0
        %2222 = vmatpush1.bf16.msra.mxu0 0
        %2223 = vmatprep.subr.bf16.mxu0 %v2217
        %2224 = vmatpush1.bf16.msra.mxu0 %v2214
        %2225 = vmatprep.subr.bf16.mxu0 %v2178
        %2226 = vmatpush1.bf16.msra.mxu0 %v2177
        %2227 = vmatprep.subr.bf16.mxu0 %v2176
        %2228 = vmatpush1.bf16.msra.mxu0 %v2175
        %2229 = vmatprep.subr.bf16.mxu0 %v2174
        %2230 = vmatpush1.bf16.msra.mxu0 %v2173
        %2231 = vmatprep.subr.bf16.mxu0 %v2172
        %2232 = vmatpush1.bf16.msra.mxu0 %v2171
        %2233 = vmatprep.subr.bf16.mxu0 %v2170
        %2234 = vmatpush1.bf16.msra.mxu0 %v2169
        %2235 = vmatprep.subr.bf16.mxu0 0
        %2236 = vmatpush2.bf16.msra.mxu0 0
        %2237 = vmatprep.subr.bf16.mxu0 0
        %2238 = vmatpush2.bf16.msra.mxu0 0
        %2239 = vmatprep.subr.bf16.mxu0 0
        %2240 = vmatpush2.bf16.msra.mxu0 0
        %2241 = vmatprep.subr.bf16.mxu0 0
        %2242 = vmatpush2.bf16.msra.mxu0 0
        %2243 = vmatprep.subr.bf16.mxu0 0
        %2244 = vmatpush2.bf16.msra.mxu0 0
        %2245 = vmatprep.subr.bf16.mxu0 0
        %2246 = vmatpush2.bf16.msra.mxu0 0
        %2247 = vmatprep.subr.bf16.mxu0 0
        %2248 = vmatpush2.bf16.msra.mxu0 0
        %2249 = vmatprep.subr.bf16.mxu0 0
        %2250 = vmatpush2.bf16.msra.mxu0 0
        %2251 = vmatprep.mubr.bf16.mxu0 0
        %2252 = vmatmul.mubr.bf16.gmra.mxu0 %v2192
        %v2253 = vpop.f32.mrf.mxu0
        %v2254 = vadd.f32 0.0, %v2253
        %v2255 = vpop.f32.mrf.mxu0
        %v2256 = vadd.f32 0.0, %v2255
        %v2257 = vpop.f32.mrf.mxu0
        %v2258 = vadd.f32 0.0, %v2257
        %v2259 = vpop.f32.mrf.mxu0
        %v2260 = vadd.f32 0.0, %v2259
        %2261 = vmatprep.mubr.bf16.mxu0 0
        %2262 = vmatmul.mubr.bf16.gmra.mxu0 %v2195
        %v2263 = vpop.f32.mrf.mxu0
        %v2264 = vadd.f32 0.0, %v2263
        %v2265 = vpop.f32.mrf.mxu0
        %v2266 = vadd.f32 0.0, %v2265
        %v2267 = vpop.f32.mrf.mxu0
        %v2268 = vadd.f32 0.0, %v2267
        %v2269 = vpop.f32.mrf.mxu0
        %v2270 = vadd.f32 0.0, %v2269
        %2271 = vmatprep.mubr.bf16.mxu0 0
        %2272 = vmatmul.mubr.bf16.gmra.mxu0 %v2198
        %v2273 = vpop.f32.mrf.mxu0
        %v2274 = vadd.f32 0.0, %v2273
        %v2275 = vpop.f32.mrf.mxu0
        %v2276 = vadd.f32 0.0, %v2275
        %v2277 = vpop.f32.mrf.mxu0
        %v2278 = vadd.f32 0.0, %v2277
        %v2279 = vpop.f32.mrf.mxu0
        %v2280 = vadd.f32 0.0, %v2279
        %2281 = vmatprep.mubr.bf16.mxu0 0
        %2282 = vmatmul.mubr.bf16.gmra.mxu0 %v2201
        %v2283 = vpop.f32.mrf.mxu0
        %v2284 = vadd.f32 0.0, %v2283
        %v2285 = vpop.f32.mrf.mxu0
        %v2286 = vadd.f32 0.0, %v2285
        %v2287 = vpop.f32.mrf.mxu0
        %v2288 = vadd.f32 0.0, %v2287
        %v2289 = vpop.f32.mrf.mxu0
        %v2290 = vadd.f32 0.0, %v2289
        %2291 = vmatprep.mubr.bf16.mxu0 0
        %2292 = vmatmul.mubr.bf16.gmra.mxu0 %v2204
        %v2293 = vpop.f32.mrf.mxu0
        %v2294 = vadd.f32 0.0, %v2293
        %v2295 = vpop.f32.mrf.mxu0
        %v2296 = vadd.f32 0.0, %v2295
        %v2297 = vpop.f32.mrf.mxu0
        %v2298 = vadd.f32 0.0, %v2297
        %v2299 = vpop.f32.mrf.mxu0
        %v2300 = vadd.f32 0.0, %v2299
        %2301 = vmatprep.mubr.bf16.mxu0 0
        %2302 = vmatmul.mubr.bf16.gmra.mxu0 %v2207
        %v2303 = vpop.f32.mrf.mxu0
        %v2304 = vadd.f32 0.0, %v2303
        %v2305 = vpop.f32.mrf.mxu0
        %v2306 = vadd.f32 0.0, %v2305
        %v2307 = vpop.f32.mrf.mxu0
        %v2308 = vadd.f32 0.0, %v2307
        %v2309 = vpop.f32.mrf.mxu0
        %v2310 = vadd.f32 0.0, %v2309
        %2311 = vmatprep.mubr.bf16.mxu0 0
        %2312 = vmatmul.mubr.bf16.gmra.mxu0 %v2210
        %v2313 = vpop.f32.mrf.mxu0
        %v2314 = vadd.f32 0.0, %v2313
        %v2315 = vpop.f32.mrf.mxu0
        %v2316 = vadd.f32 0.0, %v2315
        %v2317 = vpop.f32.mrf.mxu0
        %v2318 = vadd.f32 0.0, %v2317
        %v2319 = vpop.f32.mrf.mxu0
        %v2320 = vadd.f32 0.0, %v2319
        %2321 = vdwg.mxu0
        %v2333 = vunpack.c.l.b16 %v2092
        %v2334 = vunpack.c.h.b16 %v2092
        %v2335 = vunpack.c.l.b16 %v2093
        %v2336 = vunpack.c.h.b16 %v2093
        %v2337 = vunpack.c.l.b16 %v2094
        %v2338 = vunpack.c.h.b16 %v2094
        %v2339 = vunpack.c.l.b16 %v2095
        %v2340 = vunpack.c.h.b16 %v2095
        %v2341 = vunpack.c.l.b16 %v2096
        %v2342 = vunpack.c.h.b16 %v2096
        %v2343 = vunpack.c.l.b16 %v2097
        %v2344 = vunpack.c.h.b16 %v2097
        %v2345 = vunpack.c.l.b16 %v2098
        %v2346 = vunpack.c.h.b16 %v2098
        %v2347 = vunpack.c.l.b16 %v2099
        %v2348 = vunpack.c.h.b16 %v2099
        %v2349 = vunpack.c.l.b16 %v2100
        %v2350 = vunpack.c.h.b16 %v2100
        %v2351 = vunpack.c.l.b16 %v2101
        %v2352 = vunpack.c.h.b16 %v2101
        %v2353 = vunpack.c.l.b16 %v2102
        %v2354 = vunpack.c.h.b16 %v2102
        %v2355 = vpack.c.b16 %v2335, %v2333
        %v2356 = vpack.c.b16 %v2336, %v2334
        %v2357 = vpack.c.b16 %v2339, %v2337
        %v2358 = vpack.c.b16 %v2340, %v2338
        %v2359 = vpack.c.b16 %v2343, %v2341
        %v2360 = vpack.c.b16 %v2344, %v2342
        %v2361 = vpack.c.b16 %v2347, %v2345
        %v2362 = vpack.c.b16 %v2348, %v2346
        %v2363 = vpack.c.b16 %v2351, %v2349
        %v2364 = vpack.c.b16 %v2352, %v2350
        %v2365 = vpack.c.b16 %v2353, %v2353
        %v2366 = vpack.c.b16 %v2354, %v2354
        %v2378 = vsel %vm1959, %v2085, 0
        %v2381 = vsel %vm1959, %v2086, 0
        %v2384 = vsel %vm1959, %v2087, 0
        %v2387 = vsel %vm1959, %v2088, 0
        %v2390 = vsel %vm1959, %v2089, 0
        %v2393 = vsel %vm1959, %v2090, 0
        %v2396 = vsel %vm1959, %v2091, 0
        %v2399 = vsel %vm2212, %v2365, 0
        %v2402 = vsel %vm2212, %v2366, 0
        %2404 = vmatprep.subr.bf16.mxu0 0
        %2405 = vmatpush1.bf16.msra.mxu0 0
        %2406 = vmatprep.subr.bf16.mxu0 0
        %2407 = vmatpush1.bf16.msra.mxu0 0
        %2408 = vmatprep.subr.bf16.mxu0 %v2402
        %2409 = vmatpush1.bf16.msra.mxu0 %v2399
        %2410 = vmatprep.subr.bf16.mxu0 %v2364
        %2411 = vmatpush1.bf16.msra.mxu0 %v2363
        %2412 = vmatprep.subr.bf16.mxu0 %v2362
        %2413 = vmatpush1.bf16.msra.mxu0 %v2361
        %2414 = vmatprep.subr.bf16.mxu0 %v2360
        %2415 = vmatpush1.bf16.msra.mxu0 %v2359
        %2416 = vmatprep.subr.bf16.mxu0 %v2358
        %2417 = vmatpush1.bf16.msra.mxu0 %v2357
        %2418 = vmatprep.subr.bf16.mxu0 %v2356
        %2419 = vmatpush1.bf16.msra.mxu0 %v2355
        %2420 = vmatprep.subr.bf16.mxu0 0
        %2421 = vmatpush2.bf16.msra.mxu0 0
        %2422 = vmatprep.subr.bf16.mxu0 0
        %2423 = vmatpush2.bf16.msra.mxu0 0
        %2424 = vmatprep.subr.bf16.mxu0 0
        %2425 = vmatpush2.bf16.msra.mxu0 0
        %2426 = vmatprep.subr.bf16.mxu0 0
        %2427 = vmatpush2.bf16.msra.mxu0 0
        %2428 = vmatprep.subr.bf16.mxu0 0
        %2429 = vmatpush2.bf16.msra.mxu0 0
        %2430 = vmatprep.subr.bf16.mxu0 0
        %2431 = vmatpush2.bf16.msra.mxu0 0
        %2432 = vmatprep.subr.bf16.mxu0 0
        %2433 = vmatpush2.bf16.msra.mxu0 0
        %2434 = vmatprep.subr.bf16.mxu0 0
        %2435 = vmatpush2.bf16.msra.mxu0 0
        %2436 = vmatprep.mubr.bf16.mxu0 0
        %2437 = vmatmul.mubr.bf16.gmra.mxu0 %v2378
        %v2438 = vpop.f32.mrf.mxu0
        %v2439 = vadd.f32 %v2254, %v2438
        %v2440 = vpop.f32.mrf.mxu0
        %v2441 = vadd.f32 %v2256, %v2440
        %v2442 = vpop.f32.mrf.mxu0
        %v2443 = vadd.f32 %v2258, %v2442
        %v2444 = vpop.f32.mrf.mxu0
        %v2445 = vadd.f32 %v2260, %v2444
        %2446 = vmatprep.mubr.bf16.mxu0 0
        %2447 = vmatmul.mubr.bf16.gmra.mxu0 %v2381
        %v2448 = vpop.f32.mrf.mxu0
        %v2449 = vadd.f32 %v2264, %v2448
        %v2450 = vpop.f32.mrf.mxu0
        %v2451 = vadd.f32 %v2266, %v2450
        %v2452 = vpop.f32.mrf.mxu0
        %v2453 = vadd.f32 %v2268, %v2452
        %v2454 = vpop.f32.mrf.mxu0
        %v2455 = vadd.f32 %v2270, %v2454
        %2456 = vmatprep.mubr.bf16.mxu0 0
        %2457 = vmatmul.mubr.bf16.gmra.mxu0 %v2384
        %v2458 = vpop.f32.mrf.mxu0
        %v2459 = vadd.f32 %v2274, %v2458
        %v2460 = vpop.f32.mrf.mxu0
        %v2461 = vadd.f32 %v2276, %v2460
        %v2462 = vpop.f32.mrf.mxu0
        %v2463 = vadd.f32 %v2278, %v2462
        %v2464 = vpop.f32.mrf.mxu0
        %v2465 = vadd.f32 %v2280, %v2464
        %2466 = vmatprep.mubr.bf16.mxu0 0
        %2467 = vmatmul.mubr.bf16.gmra.mxu0 %v2387
        %v2468 = vpop.f32.mrf.mxu0
        %v2469 = vadd.f32 %v2284, %v2468
        %v2470 = vpop.f32.mrf.mxu0
        %v2471 = vadd.f32 %v2286, %v2470
        %v2472 = vpop.f32.mrf.mxu0
        %v2473 = vadd.f32 %v2288, %v2472
        %v2474 = vpop.f32.mrf.mxu0
        %v2475 = vadd.f32 %v2290, %v2474
        %2476 = vmatprep.mubr.bf16.mxu0 0
        %2477 = vmatmul.mubr.bf16.gmra.mxu0 %v2390
        %v2478 = vpop.f32.mrf.mxu0
        %v2479 = vadd.f32 %v2294, %v2478
        %v2480 = vpop.f32.mrf.mxu0
        %v2481 = vadd.f32 %v2296, %v2480
        %v2482 = vpop.f32.mrf.mxu0
        %v2483 = vadd.f32 %v2298, %v2482
        %v2484 = vpop.f32.mrf.mxu0
        %v2485 = vadd.f32 %v2300, %v2484
        %2486 = vmatprep.mubr.bf16.mxu0 0
        %2487 = vmatmul.mubr.bf16.gmra.mxu0 %v2393
        %v2488 = vpop.f32.mrf.mxu0
        %v2489 = vadd.f32 %v2304, %v2488
        %v2490 = vpop.f32.mrf.mxu0
        %v2491 = vadd.f32 %v2306, %v2490
        %v2492 = vpop.f32.mrf.mxu0
        %v2493 = vadd.f32 %v2308, %v2492
        %v2494 = vpop.f32.mrf.mxu0
        %v2495 = vadd.f32 %v2310, %v2494
        %2496 = vmatprep.mubr.bf16.mxu0 0
        %2497 = vmatmul.mubr.bf16.gmra.mxu0 %v2396
        %v2498 = vpop.f32.mrf.mxu0
        %v2499 = vadd.f32 %v2314, %v2498
        %v2500 = vpop.f32.mrf.mxu0
        %v2501 = vadd.f32 %v2316, %v2500
        %v2502 = vpop.f32.mrf.mxu0
        %v2503 = vadd.f32 %v2318, %v2502
        %v2504 = vpop.f32.mrf.mxu0
        %v2505 = vadd.f32 %v2320, %v2504
        %2506 = vdwg.mxu0
        %v2507 = vld [vmem:[#allocation2 + $0x2] sm:$0xff]
        %v2508 = vld [vmem:[#allocation2 + $0xa] sm:$0xff]
        %v2509 = vld [vmem:[#allocation2 + $0x12] sm:$0xff]
        %v2510 = vld [vmem:[#allocation2 + $0x1a] sm:$0xff]
        %v2511 = vld [vmem:[#allocation2 + $0x22] sm:$0xff]
        %v2512 = vld [vmem:[#allocation2 + $0x2a] sm:$0xff]
        %v2513 = vld [vmem:[#allocation2 + $0x32] sm:$0xff]
        %v2514 = vld [vmem:[#allocation2 + $0x3a] sm:$0xff]
        %v2515 = vld [vmem:[#allocation2 + $0x42] sm:$0xff]
        %v2516 = vld [vmem:[#allocation2 + $0x4a] sm:$0xff]
        %v2517 = vld [vmem:[#allocation2 + $0x52] sm:$0xff]
        %v2518 = vld [vmem:[#allocation2 + $0x5a] sm:$0xff]
        %v2519 = vld [vmem:[#allocation2 + $0x62] sm:$0xff]
        %v2520 = vld [vmem:[#allocation2 + $0x6a] sm:$0xff]
        %v2521 = vpack.c.bf16 %v2508, %v2507
        %v2522 = vpack.c.bf16 %v2510, %v2509
        %v2523 = vpack.c.bf16 %v2512, %v2511
        %v2524 = vpack.c.bf16 %v2514, %v2513
        %v2525 = vpack.c.bf16 %v2516, %v2515
        %v2526 = vpack.c.bf16 %v2518, %v2517
        %v2527 = vpack.c.bf16 %v2520, %v2519
        %s2528 = scalar_lea.vmem %s3, 176
        %v2529 = vld [vmem:[%s2528] sm:$0xff]
        %v2530 = vld [vmem:[%s2528 + $0x8] sm:$0xff]
        %v2531 = vld [vmem:[%s2528 + $0x10] sm:$0xff]
        %v2532 = vld [vmem:[%s2528 + $0x18] sm:$0xff]
        %v2533 = vld [vmem:[%s2528 + $0x20] sm:$0xff]
        %v2534 = vld [vmem:[%s2528 + $0x28] sm:$0xff]
        %v2535 = vld [vmem:[%s2528 + $0x30] sm:$0xff]
        %v2536 = vld [vmem:[%s2528 + $0x38] sm:$0xff]
        %v2537 = vld [vmem:[%s2528 + $0x40] sm:$0xff]
        %v2538 = vld [vmem:[%s2528 + $0x48] sm:$0xff]
        %v2539 = vld [vmem:[%s2528 + $0x50] sm:$0x33]
        %v2551 = vunpack.c.l.b16 %v2529
        %v2552 = vunpack.c.h.b16 %v2529
        %v2553 = vunpack.c.l.b16 %v2530
        %v2554 = vunpack.c.h.b16 %v2530
        %v2555 = vunpack.c.l.b16 %v2531
        %v2556 = vunpack.c.h.b16 %v2531
        %v2557 = vunpack.c.l.b16 %v2532
        %v2558 = vunpack.c.h.b16 %v2532
        %v2559 = vunpack.c.l.b16 %v2533
        %v2560 = vunpack.c.h.b16 %v2533
        %v2561 = vunpack.c.l.b16 %v2534
        %v2562 = vunpack.c.h.b16 %v2534
        %v2563 = vunpack.c.l.b16 %v2535
        %v2564 = vunpack.c.h.b16 %v2535
        %v2565 = vunpack.c.l.b16 %v2536
        %v2566 = vunpack.c.h.b16 %v2536
        %v2567 = vunpack.c.l.b16 %v2537
        %v2568 = vunpack.c.h.b16 %v2537
        %v2569 = vunpack.c.l.b16 %v2538
        %v2570 = vunpack.c.h.b16 %v2538
        %v2571 = vunpack.c.l.b16 %v2539
        %v2572 = vunpack.c.h.b16 %v2539
        %v2573 = vpack.c.b16 %v2553, %v2551
        %v2574 = vpack.c.b16 %v2554, %v2552
        %v2575 = vpack.c.b16 %v2557, %v2555
        %v2576 = vpack.c.b16 %v2558, %v2556
        %v2577 = vpack.c.b16 %v2561, %v2559
        %v2578 = vpack.c.b16 %v2562, %v2560
        %v2579 = vpack.c.b16 %v2565, %v2563
        %v2580 = vpack.c.b16 %v2566, %v2564
        %v2581 = vpack.c.b16 %v2569, %v2567
        %v2582 = vpack.c.b16 %v2570, %v2568
        %v2583 = vpack.c.b16 %v2571, %v2571
        %v2584 = vpack.c.b16 %v2572, %v2572
        %v2596 = vsel %vm1959, %v2521, 0
        %v2599 = vsel %vm1959, %v2522, 0
        %v2602 = vsel %vm1959, %v2523, 0
        %v2605 = vsel %vm1959, %v2524, 0
        %v2608 = vsel %vm1959, %v2525, 0
        %v2611 = vsel %vm1959, %v2526, 0
        %v2614 = vsel %vm1959, %v2527, 0
        %v2617 = vsel %vm2212, %v2583, 0
        %v2620 = vsel %vm2212, %v2584, 0
        %2622 = vmatprep.subr.bf16.mxu0 0
        %2623 = vmatpush1.bf16.msra.mxu0 0
        %2624 = vmatprep.subr.bf16.mxu0 0
        %2625 = vmatpush1.bf16.msra.mxu0 0
        %2626 = vmatprep.subr.bf16.mxu0 %v2620
        %2627 = vmatpush1.bf16.msra.mxu0 %v2617
        %2628 = vmatprep.subr.bf16.mxu0 %v2582
        %2629 = vmatpush1.bf16.msra.mxu0 %v2581
        %2630 = vmatprep.subr.bf16.mxu0 %v2580
        %2631 = vmatpush1.bf16.msra.mxu0 %v2579
        %2632 = vmatprep.subr.bf16.mxu0 %v2578
        %2633 = vmatpush1.bf16.msra.mxu0 %v2577
        %2634 = vmatprep.subr.bf16.mxu0 %v2576
        %2635 = vmatpush1.bf16.msra.mxu0 %v2575
        %2636 = vmatprep.subr.bf16.mxu0 %v2574
        %2637 = vmatpush1.bf16.msra.mxu0 %v2573
        %2638 = vmatprep.subr.bf16.mxu0 0
        %2639 = vmatpush2.bf16.msra.mxu0 0
        %2640 = vmatprep.subr.bf16.mxu0 0
        %2641 = vmatpush2.bf16.msra.mxu0 0
        %2642 = vmatprep.subr.bf16.mxu0 0
        %2643 = vmatpush2.bf16.msra.mxu0 0
        %2644 = vmatprep.subr.bf16.mxu0 0
        %2645 = vmatpush2.bf16.msra.mxu0 0
        %2646 = vmatprep.subr.bf16.mxu0 0
        %2647 = vmatpush2.bf16.msra.mxu0 0
        %2648 = vmatprep.subr.bf16.mxu0 0
        %2649 = vmatpush2.bf16.msra.mxu0 0
        %2650 = vmatprep.subr.bf16.mxu0 0
        %2651 = vmatpush2.bf16.msra.mxu0 0
        %2652 = vmatprep.subr.bf16.mxu0 0
        %2653 = vmatpush2.bf16.msra.mxu0 0
        %2654 = vmatprep.mubr.bf16.mxu0 0
        %2655 = vmatmul.mubr.bf16.gmra.mxu0 %v2596
        %v2656 = vpop.f32.mrf.mxu0
        %v2657 = vadd.f32 0.0, %v2656
        %v2658 = vpop.f32.mrf.mxu0
        %v2659 = vadd.f32 0.0, %v2658
        %v2660 = vpop.f32.mrf.mxu0
        %v2661 = vadd.f32 0.0, %v2660
        %v2662 = vpop.f32.mrf.mxu0
        %v2663 = vadd.f32 0.0, %v2662
        %2664 = vmatprep.mubr.bf16.mxu0 0
        %2665 = vmatmul.mubr.bf16.gmra.mxu0 %v2599
        %v2666 = vpop.f32.mrf.mxu0
        %v2667 = vadd.f32 0.0, %v2666
        %v2668 = vpop.f32.mrf.mxu0
        %v2669 = vadd.f32 0.0, %v2668
        %v2670 = vpop.f32.mrf.mxu0
        %v2671 = vadd.f32 0.0, %v2670
        %v2672 = vpop.f32.mrf.mxu0
        %v2673 = vadd.f32 0.0, %v2672
        %2674 = vmatprep.mubr.bf16.mxu0 0
        %2675 = vmatmul.mubr.bf16.gmra.mxu0 %v2602
        %v2676 = vpop.f32.mrf.mxu0
        %v2677 = vadd.f32 0.0, %v2676
        %v2678 = vpop.f32.mrf.mxu0
        %v2679 = vadd.f32 0.0, %v2678
        %v2680 = vpop.f32.mrf.mxu0
        %v2681 = vadd.f32 0.0, %v2680
        %v2682 = vpop.f32.mrf.mxu0
        %v2683 = vadd.f32 0.0, %v2682
        %2684 = vmatprep.mubr.bf16.mxu0 0
        %2685 = vmatmul.mubr.bf16.gmra.mxu0 %v2605
        %v2686 = vpop.f32.mrf.mxu0
        %v2687 = vadd.f32 0.0, %v2686
        %v2688 = vpop.f32.mrf.mxu0
        %v2689 = vadd.f32 0.0, %v2688
        %v2690 = vpop.f32.mrf.mxu0
        %v2691 = vadd.f32 0.0, %v2690
        %v2692 = vpop.f32.mrf.mxu0
        %v2693 = vadd.f32 0.0, %v2692
        %2694 = vmatprep.mubr.bf16.mxu0 0
        %2695 = vmatmul.mubr.bf16.gmra.mxu0 %v2608
        %v2696 = vpop.f32.mrf.mxu0
        %v2697 = vadd.f32 0.0, %v2696
        %v2698 = vpop.f32.mrf.mxu0
        %v2699 = vadd.f32 0.0, %v2698
        %v2700 = vpop.f32.mrf.mxu0
        %v2701 = vadd.f32 0.0, %v2700
        %v2702 = vpop.f32.mrf.mxu0
        %v2703 = vadd.f32 0.0, %v2702
        %2704 = vmatprep.mubr.bf16.mxu0 0
        %2705 = vmatmul.mubr.bf16.gmra.mxu0 %v2611
        %v2706 = vpop.f32.mrf.mxu0
        %v2707 = vadd.f32 0.0, %v2706
        %v2708 = vpop.f32.mrf.mxu0
        %v2709 = vadd.f32 0.0, %v2708
        %v2710 = vpop.f32.mrf.mxu0
        %v2711 = vadd.f32 0.0, %v2710
        %v2712 = vpop.f32.mrf.mxu0
        %v2713 = vadd.f32 0.0, %v2712
        %2714 = vmatprep.mubr.bf16.mxu0 0
        %2715 = vmatmul.mubr.bf16.gmra.mxu0 %v2614
        %v2716 = vpop.f32.mrf.mxu0
        %v2717 = vadd.f32 0.0, %v2716
        %v2718 = vpop.f32.mrf.mxu0
        %v2719 = vadd.f32 0.0, %v2718
        %v2720 = vpop.f32.mrf.mxu0
        %v2721 = vadd.f32 0.0, %v2720
        %v2722 = vpop.f32.mrf.mxu0
        %v2723 = vadd.f32 0.0, %v2722
        %2724 = vdwg.mxu0
        %v2725 = vadd.f32 %v2439, %v2657
        %v2726 = vadd.f32 %v2441, %v2659
        %v2727 = vadd.f32 %v2443, %v2661
        %v2728 = vadd.f32 %v2445, %v2663
        %v2729 = vadd.f32 %v2449, %v2667
        %v2730 = vadd.f32 %v2451, %v2669
        %v2731 = vadd.f32 %v2453, %v2671
        %v2732 = vadd.f32 %v2455, %v2673
        %v2733 = vadd.f32 %v2459, %v2677
        %v2734 = vadd.f32 %v2461, %v2679
        %v2735 = vadd.f32 %v2463, %v2681
        %v2736 = vadd.f32 %v2465, %v2683
        %v2737 = vadd.f32 %v2469, %v2687
        %v2738 = vadd.f32 %v2471, %v2689
        %v2739 = vadd.f32 %v2473, %v2691
        %v2740 = vadd.f32 %v2475, %v2693
        %v2741 = vadd.f32 %v2479, %v2697
        %v2742 = vadd.f32 %v2481, %v2699
        %v2743 = vadd.f32 %v2483, %v2701
        %v2744 = vadd.f32 %v2485, %v2703
        %v2745 = vadd.f32 %v2489, %v2707
        %v2746 = vadd.f32 %v2491, %v2709
        %v2747 = vadd.f32 %v2493, %v2711
        %v2748 = vadd.f32 %v2495, %v2713
        %v2749 = vadd.f32 %v2499, %v2717
        %v2750 = vadd.f32 %v2501, %v2719
        %v2751 = vadd.f32 %v2503, %v2721
        %v2752 = vadd.f32 %v2505, %v2723
        %v2753 = vld [vmem:[#allocation2 + $0x3] sm:$0xff]
        %v2754 = vld [vmem:[#allocation2 + $0xb] sm:$0xff]
        %v2755 = vld [vmem:[#allocation2 + $0x13] sm:$0xff]
        %v2756 = vld [vmem:[#allocation2 + $0x1b] sm:$0xff]
        %v2757 = vld [vmem:[#allocation2 + $0x23] sm:$0xff]
        %v2758 = vld [vmem:[#allocation2 + $0x2b] sm:$0xff]
        %v2759 = vld [vmem:[#allocation2 + $0x33] sm:$0xff]
        %v2760 = vld [vmem:[#allocation2 + $0x3b] sm:$0xff]
        %v2761 = vld [vmem:[#allocation2 + $0x43] sm:$0xff]
        %v2762 = vld [vmem:[#allocation2 + $0x4b] sm:$0xff]
        %v2763 = vld [vmem:[#allocation2 + $0x53] sm:$0xff]
        %v2764 = vld [vmem:[#allocation2 + $0x5b] sm:$0xff]
        %v2765 = vld [vmem:[#allocation2 + $0x63] sm:$0xff]
        %v2766 = vld [vmem:[#allocation2 + $0x6b] sm:$0xff]
        %v2767 = vpack.c.bf16 %v2754, %v2753
        %v2768 = vpack.c.bf16 %v2756, %v2755
        %v2769 = vpack.c.bf16 %v2758, %v2757
        %v2770 = vpack.c.bf16 %v2760, %v2759
        %v2771 = vpack.c.bf16 %v2762, %v2761
        %v2772 = vpack.c.bf16 %v2764, %v2763
        %v2773 = vpack.c.bf16 %v2766, %v2765
        %s2774 = scalar_lea.vmem %s3, 264
        %v2775 = vld [vmem:[%s2774] sm:$0xff]
        %v2776 = vld [vmem:[%s2774 + $0x8] sm:$0xff]
        %v2777 = vld [vmem:[%s2774 + $0x10] sm:$0xff]
        %v2778 = vld [vmem:[%s2774 + $0x18] sm:$0xff]
        %v2779 = vld [vmem:[%s2774 + $0x20] sm:$0xff]
        %v2780 = vld [vmem:[%s2774 + $0x28] sm:$0xff]
        %v2781 = vld [vmem:[%s2774 + $0x30] sm:$0xff]
        %v2782 = vld [vmem:[%s2774 + $0x38] sm:$0xff]
        %v2783 = vld [vmem:[%s2774 + $0x40] sm:$0xff]
        %v2784 = vld [vmem:[%s2774 + $0x48] sm:$0xff]
        %v2785 = vld [vmem:[%s2774 + $0x50] sm:$0x33]
        %v2797 = vunpack.c.l.b16 %v2775
        %v2798 = vunpack.c.h.b16 %v2775
        %v2799 = vunpack.c.l.b16 %v2776
        %v2800 = vunpack.c.h.b16 %v2776
        %v2801 = vunpack.c.l.b16 %v2777
        %v2802 = vunpack.c.h.b16 %v2777
        %v2803 = vunpack.c.l.b16 %v2778
        %v2804 = vunpack.c.h.b16 %v2778
        %v2805 = vunpack.c.l.b16 %v2779
        %v2806 = vunpack.c.h.b16 %v2779
        %v2807 = vunpack.c.l.b16 %v2780
        %v2808 = vunpack.c.h.b16 %v2780
        %v2809 = vunpack.c.l.b16 %v2781
        %v2810 = vunpack.c.h.b16 %v2781
        %v2811 = vunpack.c.l.b16 %v2782
        %v2812 = vunpack.c.h.b16 %v2782
        %v2813 = vunpack.c.l.b16 %v2783
        %v2814 = vunpack.c.h.b16 %v2783
        %v2815 = vunpack.c.l.b16 %v2784
        %v2816 = vunpack.c.h.b16 %v2784
        %v2817 = vunpack.c.l.b16 %v2785
        %v2818 = vunpack.c.h.b16 %v2785
        %v2819 = vpack.c.b16 %v2799, %v2797
        %v2820 = vpack.c.b16 %v2800, %v2798
        %v2821 = vpack.c.b16 %v2803, %v2801
        %v2822 = vpack.c.b16 %v2804, %v2802
        %v2823 = vpack.c.b16 %v2807, %v2805
        %v2824 = vpack.c.b16 %v2808, %v2806
        %v2825 = vpack.c.b16 %v2811, %v2809
        %v2826 = vpack.c.b16 %v2812, %v2810
        %v2827 = vpack.c.b16 %v2815, %v2813
        %v2828 = vpack.c.b16 %v2816, %v2814
        %v2829 = vpack.c.b16 %v2817, %v2817
        %v2830 = vpack.c.b16 %v2818, %v2818
        %v2842 = vsel %vm1959, %v2767, 0
        %v2845 = vsel %vm1959, %v2768, 0
        %v2848 = vsel %vm1959, %v2769, 0
        %v2851 = vsel %vm1959, %v2770, 0
        %v2854 = vsel %vm1959, %v2771, 0
        %v2857 = vsel %vm1959, %v2772, 0
        %v2860 = vsel %vm1959, %v2773, 0
        %v2863 = vsel %vm2212, %v2829, 0
        %v2866 = vsel %vm2212, %v2830, 0
        %2868 = vmatprep.subr.bf16.mxu0 0
        %2869 = vmatpush1.bf16.msra.mxu0 0
        %2870 = vmatprep.subr.bf16.mxu0 0
        %2871 = vmatpush1.bf16.msra.mxu0 0
        %2872 = vmatprep.subr.bf16.mxu0 %v2866
        %2873 = vmatpush1.bf16.msra.mxu0 %v2863
        %2874 = vmatprep.subr.bf16.mxu0 %v2828
        %2875 = vmatpush1.bf16.msra.mxu0 %v2827
        %2876 = vmatprep.subr.bf16.mxu0 %v2826
        %2877 = vmatpush1.bf16.msra.mxu0 %v2825
        %2878 = vmatprep.subr.bf16.mxu0 %v2824
        %2879 = vmatpush1.bf16.msra.mxu0 %v2823
        %2880 = vmatprep.subr.bf16.mxu0 %v2822
        %2881 = vmatpush1.bf16.msra.mxu0 %v2821
        %2882 = vmatprep.subr.bf16.mxu0 %v2820
        %2883 = vmatpush1.bf16.msra.mxu0 %v2819
        %2884 = vmatprep.subr.bf16.mxu0 0
        %2885 = vmatpush2.bf16.msra.mxu0 0
        %2886 = vmatprep.subr.bf16.mxu0 0
        %2887 = vmatpush2.bf16.msra.mxu0 0
        %2888 = vmatprep.subr.bf16.mxu0 0
        %2889 = vmatpush2.bf16.msra.mxu0 0
        %2890 = vmatprep.subr.bf16.mxu0 0
        %2891 = vmatpush2.bf16.msra.mxu0 0
        %2892 = vmatprep.subr.bf16.mxu0 0
        %2893 = vmatpush2.bf16.msra.mxu0 0
        %2894 = vmatprep.subr.bf16.mxu0 0
        %2895 = vmatpush2.bf16.msra.mxu0 0
        %2896 = vmatprep.subr.bf16.mxu0 0
        %2897 = vmatpush2.bf16.msra.mxu0 0
        %2898 = vmatprep.subr.bf16.mxu0 0
        %2899 = vmatpush2.bf16.msra.mxu0 0
        %2900 = vmatprep.mubr.bf16.mxu0 0
        %2901 = vmatmul.mubr.bf16.gmra.mxu0 %v2842
        %v2902 = vpop.f32.mrf.mxu0
        %v2903 = vadd.f32 0.0, %v2902
        %v2904 = vpop.f32.mrf.mxu0
        %v2905 = vadd.f32 0.0, %v2904
        %v2906 = vpop.f32.mrf.mxu0
        %v2907 = vadd.f32 0.0, %v2906
        %v2908 = vpop.f32.mrf.mxu0
        %v2909 = vadd.f32 0.0, %v2908
        %2910 = vmatprep.mubr.bf16.mxu0 0
        %2911 = vmatmul.mubr.bf16.gmra.mxu0 %v2845
        %v2912 = vpop.f32.mrf.mxu0
        %v2913 = vadd.f32 0.0, %v2912
        %v2914 = vpop.f32.mrf.mxu0
        %v2915 = vadd.f32 0.0, %v2914
        %v2916 = vpop.f32.mrf.mxu0
        %v2917 = vadd.f32 0.0, %v2916
        %v2918 = vpop.f32.mrf.mxu0
        %v2919 = vadd.f32 0.0, %v2918
        %2920 = vmatprep.mubr.bf16.mxu0 0
        %2921 = vmatmul.mubr.bf16.gmra.mxu0 %v2848
        %v2922 = vpop.f32.mrf.mxu0
        %v2923 = vadd.f32 0.0, %v2922
        %v2924 = vpop.f32.mrf.mxu0
        %v2925 = vadd.f32 0.0, %v2924
        %v2926 = vpop.f32.mrf.mxu0
        %v2927 = vadd.f32 0.0, %v2926
        %v2928 = vpop.f32.mrf.mxu0
        %v2929 = vadd.f32 0.0, %v2928
        %2930 = vmatprep.mubr.bf16.mxu0 0
        %2931 = vmatmul.mubr.bf16.gmra.mxu0 %v2851
        %v2932 = vpop.f32.mrf.mxu0
        %v2933 = vadd.f32 0.0, %v2932
        %v2934 = vpop.f32.mrf.mxu0
        %v2935 = vadd.f32 0.0, %v2934
        %v2936 = vpop.f32.mrf.mxu0
        %v2937 = vadd.f32 0.0, %v2936
        %v2938 = vpop.f32.mrf.mxu0
        %v2939 = vadd.f32 0.0, %v2938
        %2940 = vmatprep.mubr.bf16.mxu0 0
        %2941 = vmatmul.mubr.bf16.gmra.mxu0 %v2854
        %v2942 = vpop.f32.mrf.mxu0
        %v2943 = vadd.f32 0.0, %v2942
        %v2944 = vpop.f32.mrf.mxu0
        %v2945 = vadd.f32 0.0, %v2944
        %v2946 = vpop.f32.mrf.mxu0
        %v2947 = vadd.f32 0.0, %v2946
        %v2948 = vpop.f32.mrf.mxu0
        %v2949 = vadd.f32 0.0, %v2948
        %2950 = vmatprep.mubr.bf16.mxu0 0
        %2951 = vmatmul.mubr.bf16.gmra.mxu0 %v2857
        %v2952 = vpop.f32.mrf.mxu0
        %v2953 = vadd.f32 0.0, %v2952
        %v2954 = vpop.f32.mrf.mxu0
        %v2955 = vadd.f32 0.0, %v2954
        %v2956 = vpop.f32.mrf.mxu0
        %v2957 = vadd.f32 0.0, %v2956
        %v2958 = vpop.f32.mrf.mxu0
        %v2959 = vadd.f32 0.0, %v2958
        %2960 = vmatprep.mubr.bf16.mxu0 0
        %2961 = vmatmul.mubr.bf16.gmra.mxu0 %v2860
        %v2962 = vpop.f32.mrf.mxu0
        %v2963 = vadd.f32 0.0, %v2962
        %v2964 = vpop.f32.mrf.mxu0
        %v2965 = vadd.f32 0.0, %v2964
        %v2966 = vpop.f32.mrf.mxu0
        %v2967 = vadd.f32 0.0, %v2966
        %v2968 = vpop.f32.mrf.mxu0
        %v2969 = vadd.f32 0.0, %v2968
        %2970 = vdwg.mxu0
        %v2971 = vadd.f32 %v2725, %v2903
        %v2972 = vadd.f32 %v2726, %v2905
        %v2973 = vadd.f32 %v2727, %v2907
        %v2974 = vadd.f32 %v2728, %v2909
        %v2975 = vadd.f32 %v2729, %v2913
        %v2976 = vadd.f32 %v2730, %v2915
        %v2977 = vadd.f32 %v2731, %v2917
        %v2978 = vadd.f32 %v2732, %v2919
        %v2979 = vadd.f32 %v2733, %v2923
        %v2980 = vadd.f32 %v2734, %v2925
        %v2981 = vadd.f32 %v2735, %v2927
        %v2982 = vadd.f32 %v2736, %v2929
        %v2983 = vadd.f32 %v2737, %v2933
        %v2984 = vadd.f32 %v2738, %v2935
        %v2985 = vadd.f32 %v2739, %v2937
        %v2986 = vadd.f32 %v2740, %v2939
        %v2987 = vadd.f32 %v2741, %v2943
        %v2988 = vadd.f32 %v2742, %v2945
        %v2989 = vadd.f32 %v2743, %v2947
        %v2990 = vadd.f32 %v2744, %v2949
        %v2991 = vadd.f32 %v2745, %v2953
        %v2992 = vadd.f32 %v2746, %v2955
        %v2993 = vadd.f32 %v2747, %v2957
        %v2994 = vadd.f32 %v2748, %v2959
        %v2995 = vadd.f32 %v2749, %v2963
        %v2996 = vadd.f32 %v2750, %v2965
        %v2997 = vadd.f32 %v2751, %v2967
        %v2998 = vadd.f32 %v2752, %v2969
        %v2999 = vld [vmem:[#allocation2 + $0x4] sm:$0xff]
        %v3000 = vld [vmem:[#allocation2 + $0xc] sm:$0xff]
        %v3001 = vld [vmem:[#allocation2 + $0x14] sm:$0xff]
        %v3002 = vld [vmem:[#allocation2 + $0x1c] sm:$0xff]
        %v3003 = vld [vmem:[#allocation2 + $0x24] sm:$0xff]
        %v3004 = vld [vmem:[#allocation2 + $0x2c] sm:$0xff]
        %v3005 = vld [vmem:[#allocation2 + $0x34] sm:$0xff]
        %v3006 = vld [vmem:[#allocation2 + $0x3c] sm:$0xff]
        %v3007 = vld [vmem:[#allocation2 + $0x44] sm:$0xff]
        %v3008 = vld [vmem:[#allocation2 + $0x4c] sm:$0xff]
        %v3009 = vld [vmem:[#allocation2 + $0x54] sm:$0xff]
        %v3010 = vld [vmem:[#allocation2 + $0x5c] sm:$0xff]
        %v3011 = vld [vmem:[#allocation2 + $0x64] sm:$0xff]
        %v3012 = vld [vmem:[#allocation2 + $0x6c] sm:$0xff]
        %v3013 = vpack.c.bf16 %v3000, %v2999
        %v3014 = vpack.c.bf16 %v3002, %v3001
        %v3015 = vpack.c.bf16 %v3004, %v3003
        %v3016 = vpack.c.bf16 %v3006, %v3005
        %v3017 = vpack.c.bf16 %v3008, %v3007
        %v3018 = vpack.c.bf16 %v3010, %v3009
        %v3019 = vpack.c.bf16 %v3012, %v3011
        %s3020 = scalar_lea.vmem %s3, 352
        %v3021 = vld [vmem:[%s3020] sm:$0xff]
        %v3022 = vld [vmem:[%s3020 + $0x8] sm:$0xff]
        %v3023 = vld [vmem:[%s3020 + $0x10] sm:$0xff]
        %v3024 = vld [vmem:[%s3020 + $0x18] sm:$0xff]
        %v3025 = vld [vmem:[%s3020 + $0x20] sm:$0xff]
        %v3026 = vld [vmem:[%s3020 + $0x28] sm:$0xff]
        %v3027 = vld [vmem:[%s3020 + $0x30] sm:$0xff]
        %v3028 = vld [vmem:[%s3020 + $0x38] sm:$0xff]
        %v3029 = vld [vmem:[%s3020 + $0x40] sm:$0xff]
        %v3030 = vld [vmem:[%s3020 + $0x48] sm:$0xff]
        %v3031 = vld [vmem:[%s3020 + $0x50] sm:$0x33]
        %v3043 = vunpack.c.l.b16 %v3021
        %v3044 = vunpack.c.h.b16 %v3021
        %v3045 = vunpack.c.l.b16 %v3022
        %v3046 = vunpack.c.h.b16 %v3022
        %v3047 = vunpack.c.l.b16 %v3023
        %v3048 = vunpack.c.h.b16 %v3023
        %v3049 = vunpack.c.l.b16 %v3024
        %v3050 = vunpack.c.h.b16 %v3024
        %v3051 = vunpack.c.l.b16 %v3025
        %v3052 = vunpack.c.h.b16 %v3025
        %v3053 = vunpack.c.l.b16 %v3026
        %v3054 = vunpack.c.h.b16 %v3026
        %v3055 = vunpack.c.l.b16 %v3027
        %v3056 = vunpack.c.h.b16 %v3027
        %v3057 = vunpack.c.l.b16 %v3028
        %v3058 = vunpack.c.h.b16 %v3028
        %v3059 = vunpack.c.l.b16 %v3029
        %v3060 = vunpack.c.h.b16 %v3029
        %v3061 = vunpack.c.l.b16 %v3030
        %v3062 = vunpack.c.h.b16 %v3030
        %v3063 = vunpack.c.l.b16 %v3031
        %v3064 = vunpack.c.h.b16 %v3031
        %v3065 = vpack.c.b16 %v3045, %v3043
        %v3066 = vpack.c.b16 %v3046, %v3044
        %v3067 = vpack.c.b16 %v3049, %v3047
        %v3068 = vpack.c.b16 %v3050, %v3048
        %v3069 = vpack.c.b16 %v3053, %v3051
        %v3070 = vpack.c.b16 %v3054, %v3052
        %v3071 = vpack.c.b16 %v3057, %v3055
        %v3072 = vpack.c.b16 %v3058, %v3056
        %v3073 = vpack.c.b16 %v3061, %v3059
        %v3074 = vpack.c.b16 %v3062, %v3060
        %v3075 = vpack.c.b16 %v3063, %v3063
        %v3076 = vpack.c.b16 %v3064, %v3064
        %v3088 = vsel %vm1959, %v3013, 0
        %v3091 = vsel %vm1959, %v3014, 0
        %v3094 = vsel %vm1959, %v3015, 0
        %v3097 = vsel %vm1959, %v3016, 0
        %v3100 = vsel %vm1959, %v3017, 0
        %v3103 = vsel %vm1959, %v3018, 0
        %v3106 = vsel %vm1959, %v3019, 0
        %v3109 = vsel %vm2212, %v3075, 0
        %v3112 = vsel %vm2212, %v3076, 0
        %3114 = vmatprep.subr.bf16.mxu0 0
        %3115 = vmatpush1.bf16.msra.mxu0 0
        %3116 = vmatprep.subr.bf16.mxu0 0
        %3117 = vmatpush1.bf16.msra.mxu0 0
        %3118 = vmatprep.subr.bf16.mxu0 %v3112
        %3119 = vmatpush1.bf16.msra.mxu0 %v3109
        %3120 = vmatprep.subr.bf16.mxu0 %v3074
        %3121 = vmatpush1.bf16.msra.mxu0 %v3073
        %3122 = vmatprep.subr.bf16.mxu0 %v3072
        %3123 = vmatpush1.bf16.msra.mxu0 %v3071
        %3124 = vmatprep.subr.bf16.mxu0 %v3070
        %3125 = vmatpush1.bf16.msra.mxu0 %v3069
        %3126 = vmatprep.subr.bf16.mxu0 %v3068
        %3127 = vmatpush1.bf16.msra.mxu0 %v3067
        %3128 = vmatprep.subr.bf16.mxu0 %v3066
        %3129 = vmatpush1.bf16.msra.mxu0 %v3065
        %3130 = vmatprep.subr.bf16.mxu0 0
        %3131 = vmatpush2.bf16.msra.mxu0 0
        %3132 = vmatprep.subr.bf16.mxu0 0
        %3133 = vmatpush2.bf16.msra.mxu0 0
        %3134 = vmatprep.subr.bf16.mxu0 0
        %3135 = vmatpush2.bf16.msra.mxu0 0
        %3136 = vmatprep.subr.bf16.mxu0 0
        %3137 = vmatpush2.bf16.msra.mxu0 0
        %3138 = vmatprep.subr.bf16.mxu0 0
        %3139 = vmatpush2.bf16.msra.mxu0 0
        %3140 = vmatprep.subr.bf16.mxu0 0
        %3141 = vmatpush2.bf16.msra.mxu0 0
        %3142 = vmatprep.subr.bf16.mxu0 0
        %3143 = vmatpush2.bf16.msra.mxu0 0
        %3144 = vmatprep.subr.bf16.mxu0 0
        %3145 = vmatpush2.bf16.msra.mxu0 0
        %3146 = vmatprep.mubr.bf16.mxu0 0
        %3147 = vmatmul.mubr.bf16.gmra.mxu0 %v3088
        %v3148 = vpop.f32.mrf.mxu0
        %v3149 = vadd.f32 0.0, %v3148
        %v3150 = vpop.f32.mrf.mxu0
        %v3151 = vadd.f32 0.0, %v3150
        %v3152 = vpop.f32.mrf.mxu0
        %v3153 = vadd.f32 0.0, %v3152
        %v3154 = vpop.f32.mrf.mxu0
        %v3155 = vadd.f32 0.0, %v3154
        %3156 = vmatprep.mubr.bf16.mxu0 0
        %3157 = vmatmul.mubr.bf16.gmra.mxu0 %v3091
        %v3158 = vpop.f32.mrf.mxu0
        %v3159 = vadd.f32 0.0, %v3158
        %v3160 = vpop.f32.mrf.mxu0
        %v3161 = vadd.f32 0.0, %v3160
        %v3162 = vpop.f32.mrf.mxu0
        %v3163 = vadd.f32 0.0, %v3162
        %v3164 = vpop.f32.mrf.mxu0
        %v3165 = vadd.f32 0.0, %v3164
        %3166 = vmatprep.mubr.bf16.mxu0 0
        %3167 = vmatmul.mubr.bf16.gmra.mxu0 %v3094
        %v3168 = vpop.f32.mrf.mxu0
        %v3169 = vadd.f32 0.0, %v3168
        %v3170 = vpop.f32.mrf.mxu0
        %v3171 = vadd.f32 0.0, %v3170
        %v3172 = vpop.f32.mrf.mxu0
        %v3173 = vadd.f32 0.0, %v3172
        %v3174 = vpop.f32.mrf.mxu0
        %v3175 = vadd.f32 0.0, %v3174
        %3176 = vmatprep.mubr.bf16.mxu0 0
        %3177 = vmatmul.mubr.bf16.gmra.mxu0 %v3097
        %v3178 = vpop.f32.mrf.mxu0
        %v3179 = vadd.f32 0.0, %v3178
        %v3180 = vpop.f32.mrf.mxu0
        %v3181 = vadd.f32 0.0, %v3180
        %v3182 = vpop.f32.mrf.mxu0
        %v3183 = vadd.f32 0.0, %v3182
        %v3184 = vpop.f32.mrf.mxu0
        %v3185 = vadd.f32 0.0, %v3184
        %3186 = vmatprep.mubr.bf16.mxu0 0
        %3187 = vmatmul.mubr.bf16.gmra.mxu0 %v3100
        %v3188 = vpop.f32.mrf.mxu0
        %v3189 = vadd.f32 0.0, %v3188
        %v3190 = vpop.f32.mrf.mxu0
        %v3191 = vadd.f32 0.0, %v3190
        %v3192 = vpop.f32.mrf.mxu0
        %v3193 = vadd.f32 0.0, %v3192
        %v3194 = vpop.f32.mrf.mxu0
        %v3195 = vadd.f32 0.0, %v3194
        %3196 = vmatprep.mubr.bf16.mxu0 0
        %3197 = vmatmul.mubr.bf16.gmra.mxu0 %v3103
        %v3198 = vpop.f32.mrf.mxu0
        %v3199 = vadd.f32 0.0, %v3198
        %v3200 = vpop.f32.mrf.mxu0
        %v3201 = vadd.f32 0.0, %v3200
        %v3202 = vpop.f32.mrf.mxu0
        %v3203 = vadd.f32 0.0, %v3202
        %v3204 = vpop.f32.mrf.mxu0
        %v3205 = vadd.f32 0.0, %v3204
        %3206 = vmatprep.mubr.bf16.mxu0 0
        %3207 = vmatmul.mubr.bf16.gmra.mxu0 %v3106
        %v3208 = vpop.f32.mrf.mxu0
        %v3209 = vadd.f32 0.0, %v3208
        %v3210 = vpop.f32.mrf.mxu0
        %v3211 = vadd.f32 0.0, %v3210
        %v3212 = vpop.f32.mrf.mxu0
        %v3213 = vadd.f32 0.0, %v3212
        %v3214 = vpop.f32.mrf.mxu0
        %v3215 = vadd.f32 0.0, %v3214
        %3216 = vdwg.mxu0
        %v3217 = vadd.f32 %v2971, %v3149
        %v3218 = vadd.f32 %v2972, %v3151
        %v3219 = vadd.f32 %v2973, %v3153
        %v3220 = vadd.f32 %v2974, %v3155
        %v3221 = vadd.f32 %v2975, %v3159
        %v3222 = vadd.f32 %v2976, %v3161
        %v3223 = vadd.f32 %v2977, %v3163
        %v3224 = vadd.f32 %v2978, %v3165
        %v3225 = vadd.f32 %v2979, %v3169
        %v3226 = vadd.f32 %v2980, %v3171
        %v3227 = vadd.f32 %v2981, %v3173
        %v3228 = vadd.f32 %v2982, %v3175
        %v3229 = vadd.f32 %v2983, %v3179
        %v3230 = vadd.f32 %v2984, %v3181
        %v3231 = vadd.f32 %v2985, %v3183
        %v3232 = vadd.f32 %v2986, %v3185
        %v3233 = vadd.f32 %v2987, %v3189
        %v3234 = vadd.f32 %v2988, %v3191
        %v3235 = vadd.f32 %v2989, %v3193
        %v3236 = vadd.f32 %v2990, %v3195
        %v3237 = vadd.f32 %v2991, %v3199
        %v3238 = vadd.f32 %v2992, %v3201
        %v3239 = vadd.f32 %v2993, %v3203
        %v3240 = vadd.f32 %v2994, %v3205
        %v3241 = vadd.f32 %v2995, %v3209
        %v3242 = vadd.f32 %v2996, %v3211
        %v3243 = vadd.f32 %v2997, %v3213
        %v3244 = vadd.f32 %v2998, %v3215
        %s3245 = scalar_lea.vmem %s1, 1
        %v3246 = vld [vmem:[%s3245] ss:$8 sm:$0x3]
        %v3248 = vlaneseq
        %v3249 = vshrl.u32 %v3248, 7
        %v3250 = vsub.s32 0, %v3249
        %v3251 = vrot.slane %v3246, %v3250
        %v3252 = vlaneseq
        %v3253 = vshrl.u32 %v3252, 7
        %v3254 = vsub.s32 1, %v3253
        %v3255 = vrot.slane %v3246, %v3254
        %v3258 = vadd.f32 %v3217, %v3251
        %v3259 = vadd.f32 %v3218, %v3255
        %v3260 = vadd.f32 %v3219, %v3251
        %v3261 = vadd.f32 %v3220, %v3255
        %v3262 = vadd.f32 %v3221, %v3251
        %v3263 = vadd.f32 %v3222, %v3255
        %v3264 = vadd.f32 %v3223, %v3251
        %v3265 = vadd.f32 %v3224, %v3255
        %v3266 = vadd.f32 %v3225, %v3251
        %v3267 = vadd.f32 %v3226, %v3255
        %v3268 = vadd.f32 %v3227, %v3251
        %v3269 = vadd.f32 %v3228, %v3255
        %v3270 = vadd.f32 %v3229, %v3251
        %v3271 = vadd.f32 %v3230, %v3255
        %v3272 = vadd.f32 %v3231, %v3251
        %v3273 = vadd.f32 %v3232, %v3255
        %v3274 = vadd.f32 %v3233, %v3251
        %v3275 = vadd.f32 %v3234, %v3255
        %v3276 = vadd.f32 %v3235, %v3251
        %v3277 = vadd.f32 %v3236, %v3255
        %v3278 = vadd.f32 %v3237, %v3251
        %v3279 = vadd.f32 %v3238, %v3255
        %v3280 = vadd.f32 %v3239, %v3251
        %v3281 = vadd.f32 %v3240, %v3255
        %v3282 = vadd.f32 %v3241, %v3251
        %v3283 = vadd.f32 %v3242, %v3255
        %v3284 = vadd.f32 %v3243, %v3251
        %v3285 = vadd.f32 %v3244, %v3255
        %v3286 = vmax.f32 %v3258, 0.0
        %v3287 = vmax.f32 %v3259, 0.0
        %v3288 = vmax.f32 %v3260, 0.0
        %v3289 = vmax.f32 %v3261, 0.0
        %v3290 = vmax.f32 %v3262, 0.0
        %v3291 = vmax.f32 %v3263, 0.0
        %v3292 = vmax.f32 %v3264, 0.0
        %v3293 = vmax.f32 %v3265, 0.0
        %v3294 = vmax.f32 %v3266, 0.0
        %v3295 = vmax.f32 %v3267, 0.0
        %v3296 = vmax.f32 %v3268, 0.0
        %v3297 = vmax.f32 %v3269, 0.0
        %v3298 = vmax.f32 %v3270, 0.0
        %v3299 = vmax.f32 %v3271, 0.0
        %v3300 = vmax.f32 %v3272, 0.0
        %v3301 = vmax.f32 %v3273, 0.0
        %v3302 = vmax.f32 %v3274, 0.0
        %v3303 = vmax.f32 %v3275, 0.0
        %v3304 = vmax.f32 %v3276, 0.0
        %v3305 = vmax.f32 %v3277, 0.0
        %v3306 = vmax.f32 %v3278, 0.0
        %v3307 = vmax.f32 %v3279, 0.0
        %v3308 = vmax.f32 %v3280, 0.0
        %v3309 = vmax.f32 %v3281, 0.0
        %v3310 = vmax.f32 %v3282, 0.0
        %v3311 = vmax.f32 %v3283, 0.0
        %v3312 = vmax.f32 %v3284, 0.0
        %v3313 = vmax.f32 %v3285, 0.0
        %v3314 = vpack.c.bf16 %v3288, %v3286
        %v3315 = vpack.c.bf16 %v3289, %v3287
        %v3316 = vpack.c.bf16 %v3292, %v3290
        %v3317 = vpack.c.bf16 %v3293, %v3291
        %v3318 = vpack.c.bf16 %v3296, %v3294
        %v3319 = vpack.c.bf16 %v3297, %v3295
        %v3320 = vpack.c.bf16 %v3300, %v3298
        %v3321 = vpack.c.bf16 %v3301, %v3299
        %v3322 = vpack.c.bf16 %v3304, %v3302
        %v3323 = vpack.c.bf16 %v3305, %v3303
        %v3324 = vpack.c.bf16 %v3308, %v3306
        %v3325 = vpack.c.bf16 %v3309, %v3307
        %v3326 = vpack.c.bf16 %v3312, %v3310
        %v3327 = vpack.c.bf16 %v3313, %v3311
        %v3328 = vld [vmem:[%s4] sm:$0xf]
        %v3329 = vld [vmem:[%s4 + $0x4] sm:$0xf]
        %v3330 = vld [vmem:[%s4 + $0x8] sm:$0xf]
        %v3331 = vld [vmem:[%s4 + $0xc] sm:$0xf]
        %v3332 = vld [vmem:[%s4 + $0x10] sm:$0xf]
        %v3333 = vld [vmem:[%s4 + $0x14] sm:$0xf]
        %v3334 = vld [vmem:[%s4 + $0x18] sm:$0xf]
        %v3335 = vld [vmem:[%s4 + $0x1c] sm:$0xf]
        %v3336 = vld [vmem:[%s4 + $0x20] sm:$0xf]
        %v3337 = vld [vmem:[%s4 + $0x24] sm:$0xf]
        %v3338 = vld [vmem:[%s4 + $0x28] sm:$0xf]
        %v3339 = vld [vmem:[%s4 + $0x2c] sm:$0xf]
        %v3340 = vld [vmem:[%s4 + $0x30] sm:$0xf]
        %v3341 = vld [vmem:[%s4 + $0x34] sm:$0xf]
        %v3342 = vld [vmem:[%s4 + $0x38] sm:$0xf]
        %v3343 = vld [vmem:[%s4 + $0x3c] sm:$0xf]
        %v3344 = vld [vmem:[%s4 + $0x40] sm:$0xf]
        %v3345 = vld [vmem:[%s4 + $0x44] sm:$0xf]
        %v3346 = vld [vmem:[%s4 + $0x48] sm:$0xf]
        %v3347 = vld [vmem:[%s4 + $0x4c] sm:$0xf]
        %v3368 = vunpack.c.l.b16 %v3328
        %v3369 = vunpack.c.l.b16 %v3329
        %v3370 = vunpack.c.l.b16 %v3330
        %v3371 = vunpack.c.l.b16 %v3331
        %v3372 = vunpack.c.l.b16 %v3332
        %v3373 = vunpack.c.l.b16 %v3333
        %v3374 = vunpack.c.l.b16 %v3334
        %v3375 = vunpack.c.l.b16 %v3335
        %v3376 = vunpack.c.l.b16 %v3336
        %v3377 = vunpack.c.l.b16 %v3337
        %v3378 = vunpack.c.l.b16 %v3338
        %v3379 = vunpack.c.l.b16 %v3339
        %v3380 = vunpack.c.l.b16 %v3340
        %v3381 = vunpack.c.l.b16 %v3341
        %v3382 = vunpack.c.l.b16 %v3342
        %v3383 = vunpack.c.l.b16 %v3343
        %v3384 = vunpack.c.l.b16 %v3344
        %v3385 = vunpack.c.l.b16 %v3345
        %v3386 = vunpack.c.l.b16 %v3346
        %v3387 = vunpack.c.l.b16 %v3347
        %v3388 = vpack.c.b16 %v3369, %v3368
        %v3389 = vpack.c.b16 %v3371, %v3370
        %v3390 = vpack.c.b16 %v3373, %v3372
        %v3391 = vpack.c.b16 %v3375, %v3374
        %v3392 = vpack.c.b16 %v3377, %v3376
        %v3393 = vpack.c.b16 %v3379, %v3378
        %v3394 = vpack.c.b16 %v3381, %v3380
        %v3395 = vpack.c.b16 %v3383, %v3382
        %v3396 = vpack.c.b16 %v3385, %v3384
        %v3397 = vpack.c.b16 %v3387, %v3386
        %vm3408 = vcmask 261120
        %v3410 = vsel %vm3408, %v3315, 0
        %v3413 = vsel %vm3408, %v3317, 0
        %v3416 = vsel %vm3408, %v3319, 0
        %v3419 = vsel %vm3408, %v3321, 0
        %v3422 = vsel %vm3408, %v3323, 0
        %v3425 = vsel %vm3408, %v3325, 0
        %v3428 = vsel %vm3408, %v3327, 0
        %3430 = vmatprep.subr.bf16.mxu0 0
        %3431 = vmatpush1.bf16.msra.mxu0 %v3395
        %3432 = vmatprep.subr.bf16.mxu0 0
        %3433 = vmatpush1.bf16.msra.mxu0 %v3394
        %3434 = vmatprep.subr.bf16.mxu0 0
        %3435 = vmatpush1.bf16.msra.mxu0 %v3393
        %3436 = vmatprep.subr.bf16.mxu0 0
        %3437 = vmatpush1.bf16.msra.mxu0 %v3392
        %3438 = vmatprep.subr.bf16.mxu0 0
        %3439 = vmatpush1.bf16.msra.mxu0 %v3391
        %3440 = vmatprep.subr.bf16.mxu0 0
        %3441 = vmatpush1.bf16.msra.mxu0 %v3390
        %3442 = vmatprep.subr.bf16.mxu0 0
        %3443 = vmatpush1.bf16.msra.mxu0 %v3389
        %3444 = vmatprep.subr.bf16.mxu0 0
        %3445 = vmatpush1.bf16.msra.mxu0 %v3388
        %3446 = vmatprep.subr.bf16.mxu0 0
        %3447 = vmatpush2.bf16.msra.mxu0 0
        %3448 = vmatprep.subr.bf16.mxu0 0
        %3449 = vmatpush2.bf16.msra.mxu0 0
        %3450 = vmatprep.subr.bf16.mxu0 0
        %3451 = vmatpush2.bf16.msra.mxu0 0
        %3452 = vmatprep.subr.bf16.mxu0 0
        %3453 = vmatpush2.bf16.msra.mxu0 0
        %3454 = vmatprep.subr.bf16.mxu0 0
        %3455 = vmatpush2.bf16.msra.mxu0 0
        %3456 = vmatprep.subr.bf16.mxu0 0
        %3457 = vmatpush2.bf16.msra.mxu0 0
        %3458 = vmatprep.subr.bf16.mxu0 0
        %3459 = vmatpush2.bf16.msra.mxu0 %v3397
        %3460 = vmatprep.subr.bf16.mxu0 0
        %3461 = vmatpush2.bf16.msra.mxu0 %v3396
        %3462 = vmatprep.mubr.bf16.mxu0 %v3410
        %3463 = vmatmul.mubr.bf16.gmra.mxu0 %v3314
        %v3464 = vpop.f32.mrf.mxu0
        %v3465 = vadd.f32 0.0, %v3464
        %v3466 = vpop.f32.mrf.mxu0
        %v3467 = vpop.f32.mrf.mxu0
        %v3468 = vadd.f32 0.0, %v3467
        %v3469 = vpop.f32.mrf.mxu0
        %3470 = vmatprep.mubr.bf16.mxu0 %v3413
        %3471 = vmatmul.mubr.bf16.gmra.mxu0 %v3316
        %v3472 = vpop.f32.mrf.mxu0
        %v3473 = vadd.f32 0.0, %v3472
        %v3474 = vpop.f32.mrf.mxu0
        %v3475 = vpop.f32.mrf.mxu0
        %v3476 = vadd.f32 0.0, %v3475
        %v3477 = vpop.f32.mrf.mxu0
        %3478 = vmatprep.mubr.bf16.mxu0 %v3416
        %3479 = vmatmul.mubr.bf16.gmra.mxu0 %v3318
        %v3480 = vpop.f32.mrf.mxu0
        %v3481 = vadd.f32 0.0, %v3480
        %v3482 = vpop.f32.mrf.mxu0
        %v3483 = vpop.f32.mrf.mxu0
        %v3484 = vadd.f32 0.0, %v3483
        %v3485 = vpop.f32.mrf.mxu0
        %3486 = vmatprep.mubr.bf16.mxu0 %v3419
        %3487 = vmatmul.mubr.bf16.gmra.mxu0 %v3320
        %v3488 = vpop.f32.mrf.mxu0
        %v3489 = vadd.f32 0.0, %v3488
        %v3490 = vpop.f32.mrf.mxu0
        %v3491 = vpop.f32.mrf.mxu0
        %v3492 = vadd.f32 0.0, %v3491
        %v3493 = vpop.f32.mrf.mxu0
        %3494 = vmatprep.mubr.bf16.mxu0 %v3422
        %3495 = vmatmul.mubr.bf16.gmra.mxu0 %v3322
        %v3496 = vpop.f32.mrf.mxu0
        %v3497 = vadd.f32 0.0, %v3496
        %v3498 = vpop.f32.mrf.mxu0
        %v3499 = vpop.f32.mrf.mxu0
        %v3500 = vadd.f32 0.0, %v3499
        %v3501 = vpop.f32.mrf.mxu0
        %3502 = vmatprep.mubr.bf16.mxu0 %v3425
        %3503 = vmatmul.mubr.bf16.gmra.mxu0 %v3324
        %v3504 = vpop.f32.mrf.mxu0
        %v3505 = vadd.f32 0.0, %v3504
        %v3506 = vpop.f32.mrf.mxu0
        %v3507 = vpop.f32.mrf.mxu0
        %v3508 = vadd.f32 0.0, %v3507
        %v3509 = vpop.f32.mrf.mxu0
        %3510 = vmatprep.mubr.bf16.mxu0 %v3428
        %3511 = vmatmul.mubr.bf16.gmra.mxu0 %v3326
        %v3512 = vpop.f32.mrf.mxu0
        %v3513 = vadd.f32 0.0, %v3512
        %v3514 = vpop.f32.mrf.mxu0
        %v3515 = vpop.f32.mrf.mxu0
        %v3516 = vadd.f32 0.0, %v3515
        %v3517 = vpop.f32.mrf.mxu0
        %3518 = vdwg.mxu0
        %v3519 = vld [vmem:[%s4 + $0x50] sm:$0xf]
        %v3520 = vld [vmem:[%s4 + $0x54] sm:$0xf]
        %v3521 = vld [vmem:[%s4 + $0x58] sm:$0xf]
        %v3522 = vld [vmem:[%s4 + $0x5c] sm:$0xf]
        %v3523 = vld [vmem:[%s4 + $0x60] sm:$0xf]
        %v3524 = vld [vmem:[%s4 + $0x64] sm:$0xf]
        %v3525 = vld [vmem:[%s4 + $0x68] sm:$0xf]
        %v3526 = vld [vmem:[%s4 + $0x6c] sm:$0xf]
        %v3527 = vld [vmem:[%s4 + $0x70] sm:$0xf]
        %v3528 = vld [vmem:[%s4 + $0x74] sm:$0xf]
        %v3529 = vld [vmem:[%s4 + $0x78] sm:$0xf]
        %v3530 = vld [vmem:[%s4 + $0x7c] sm:$0xf]
        %v3531 = vld [vmem:[%s4 + $0x80] sm:$0xf]
        %v3532 = vld [vmem:[%s4 + $0x84] sm:$0xf]
        %v3533 = vld [vmem:[%s4 + $0x88] sm:$0xf]
        %v3534 = vld [vmem:[%s4 + $0x8c] sm:$0xf]
        %v3535 = vld [vmem:[%s4 + $0x90] sm:$0xf]
        %v3536 = vld [vmem:[%s4 + $0x94] sm:$0xf]
        %v3537 = vld [vmem:[%s4 + $0x98] sm:$0xf]
        %v3538 = vld [vmem:[%s4 + $0x9c] sm:$0xf]
        %v3559 = vunpack.c.l.b16 %v3519
        %v3560 = vunpack.c.l.b16 %v3520
        %v3561 = vunpack.c.l.b16 %v3521
        %v3562 = vunpack.c.l.b16 %v3522
        %v3563 = vunpack.c.l.b16 %v3523
        %v3564 = vunpack.c.l.b16 %v3524
        %v3565 = vunpack.c.l.b16 %v3525
        %v3566 = vunpack.c.l.b16 %v3526
        %v3567 = vunpack.c.l.b16 %v3527
        %v3568 = vunpack.c.l.b16 %v3528
        %v3569 = vunpack.c.l.b16 %v3529
        %v3570 = vunpack.c.l.b16 %v3530
        %v3571 = vunpack.c.l.b16 %v3531
        %v3572 = vunpack.c.l.b16 %v3532
        %v3573 = vunpack.c.l.b16 %v3533
        %v3574 = vunpack.c.l.b16 %v3534
        %v3575 = vunpack.c.l.b16 %v3535
        %v3576 = vunpack.c.l.b16 %v3536
        %v3577 = vunpack.c.l.b16 %v3537
        %v3578 = vunpack.c.l.b16 %v3538
        %v3579 = vpack.c.b16 %v3560, %v3559
        %v3580 = vpack.c.b16 %v3562, %v3561
        %v3581 = vpack.c.b16 %v3564, %v3563
        %v3582 = vpack.c.b16 %v3566, %v3565
        %v3583 = vpack.c.b16 %v3568, %v3567
        %v3584 = vpack.c.b16 %v3570, %v3569
        %v3585 = vpack.c.b16 %v3572, %v3571
        %v3586 = vpack.c.b16 %v3574, %v3573
        %v3587 = vpack.c.b16 %v3576, %v3575
        %v3588 = vpack.c.b16 %v3578, %v3577
        %3599 = vmatprep.subr.bf16.mxu0 0
        %3600 = vmatpush1.bf16.msra.mxu0 %v3586
        %3601 = vmatprep.subr.bf16.mxu0 0
        %3602 = vmatpush1.bf16.msra.mxu0 %v3585
        %3603 = vmatprep.subr.bf16.mxu0 0
        %3604 = vmatpush1.bf16.msra.mxu0 %v3584
        %3605 = vmatprep.subr.bf16.mxu0 0
        %3606 = vmatpush1.bf16.msra.mxu0 %v3583
        %3607 = vmatprep.subr.bf16.mxu0 0
        %3608 = vmatpush1.bf16.msra.mxu0 %v3582
        %3609 = vmatprep.subr.bf16.mxu0 0
        %3610 = vmatpush1.bf16.msra.mxu0 %v3581
        %3611 = vmatprep.subr.bf16.mxu0 0
        %3612 = vmatpush1.bf16.msra.mxu0 %v3580
        %3613 = vmatprep.subr.bf16.mxu0 0
        %3614 = vmatpush1.bf16.msra.mxu0 %v3579
        %3615 = vmatprep.subr.bf16.mxu0 0
        %3616 = vmatpush2.bf16.msra.mxu0 0
        %3617 = vmatprep.subr.bf16.mxu0 0
        %3618 = vmatpush2.bf16.msra.mxu0 0
        %3619 = vmatprep.subr.bf16.mxu0 0
        %3620 = vmatpush2.bf16.msra.mxu0 0
        %3621 = vmatprep.subr.bf16.mxu0 0
        %3622 = vmatpush2.bf16.msra.mxu0 0
        %3623 = vmatprep.subr.bf16.mxu0 0
        %3624 = vmatpush2.bf16.msra.mxu0 0
        %3625 = vmatprep.subr.bf16.mxu0 0
        %3626 = vmatpush2.bf16.msra.mxu0 0
        %3627 = vmatprep.subr.bf16.mxu0 0
        %3628 = vmatpush2.bf16.msra.mxu0 %v3588
        %3629 = vmatprep.subr.bf16.mxu0 0
        %3630 = vmatpush2.bf16.msra.mxu0 %v3587
        %3631 = vmatprep.mubr.bf16.mxu0 %v3410
        %3632 = vmatmul.mubr.bf16.gmra.mxu0 %v3314
        %v3633 = vpop.f32.mrf.mxu0
        %v3634 = vadd.f32 0.0, %v3633
        %v3635 = vpop.f32.mrf.mxu0
        %v3636 = vpop.f32.mrf.mxu0
        %v3637 = vadd.f32 0.0, %v3636
        %v3638 = vpop.f32.mrf.mxu0
        %3639 = vmatprep.mubr.bf16.mxu0 %v3413
        %3640 = vmatmul.mubr.bf16.gmra.mxu0 %v3316
        %v3641 = vpop.f32.mrf.mxu0
        %v3642 = vadd.f32 0.0, %v3641
        %v3643 = vpop.f32.mrf.mxu0
        %v3644 = vpop.f32.mrf.mxu0
        %v3645 = vadd.f32 0.0, %v3644
        %v3646 = vpop.f32.mrf.mxu0
        %3647 = vmatprep.mubr.bf16.mxu0 %v3416
        %3648 = vmatmul.mubr.bf16.gmra.mxu0 %v3318
        %v3649 = vpop.f32.mrf.mxu0
        %v3650 = vadd.f32 0.0, %v3649
        %v3651 = vpop.f32.mrf.mxu0
        %v3652 = vpop.f32.mrf.mxu0
        %v3653 = vadd.f32 0.0, %v3652
        %v3654 = vpop.f32.mrf.mxu0
        %3655 = vmatprep.mubr.bf16.mxu0 %v3419
        %3656 = vmatmul.mubr.bf16.gmra.mxu0 %v3320
        %v3657 = vpop.f32.mrf.mxu0
        %v3658 = vadd.f32 0.0, %v3657
        %v3659 = vpop.f32.mrf.mxu0
        %v3660 = vpop.f32.mrf.mxu0
        %v3661 = vadd.f32 0.0, %v3660
        %v3662 = vpop.f32.mrf.mxu0
        %3663 = vmatprep.mubr.bf16.mxu0 %v3422
        %3664 = vmatmul.mubr.bf16.gmra.mxu0 %v3322
        %v3665 = vpop.f32.mrf.mxu0
        %v3666 = vadd.f32 0.0, %v3665
        %v3667 = vpop.f32.mrf.mxu0
        %v3668 = vpop.f32.mrf.mxu0
        %v3669 = vadd.f32 0.0, %v3668
        %v3670 = vpop.f32.mrf.mxu0
        %3671 = vmatprep.mubr.bf16.mxu0 %v3425
        %3672 = vmatmul.mubr.bf16.gmra.mxu0 %v3324
        %v3673 = vpop.f32.mrf.mxu0
        %v3674 = vadd.f32 0.0, %v3673
        %v3675 = vpop.f32.mrf.mxu0
        %v3676 = vpop.f32.mrf.mxu0
        %v3677 = vadd.f32 0.0, %v3676
        %v3678 = vpop.f32.mrf.mxu0
        %3679 = vmatprep.mubr.bf16.mxu0 %v3428
        %3680 = vmatmul.mubr.bf16.gmra.mxu0 %v3326
        %v3681 = vpop.f32.mrf.mxu0
        %v3682 = vadd.f32 0.0, %v3681
        %v3683 = vpop.f32.mrf.mxu0
        %v3684 = vpop.f32.mrf.mxu0
        %v3685 = vadd.f32 0.0, %v3684
        %v3686 = vpop.f32.mrf.mxu0
        %3687 = vdwg.mxu0
        %v3688 = vmax.f32 %v3465, %v3634
        %v3689 = vmax.f32 %v3468, %v3637
        %v3690 = vmax.f32 %v3473, %v3642
        %v3691 = vmax.f32 %v3476, %v3645
        %v3692 = vmax.f32 %v3481, %v3650
        %v3693 = vmax.f32 %v3484, %v3653
        %v3694 = vmax.f32 %v3489, %v3658
        %v3695 = vmax.f32 %v3492, %v3661
        %v3696 = vmax.f32 %v3497, %v3666
        %v3697 = vmax.f32 %v3500, %v3669
        %v3698 = vmax.f32 %v3505, %v3674
        %v3699 = vmax.f32 %v3508, %v3677
        %v3700 = vmax.f32 %v3513, %v3682
        %v3701 = vmax.f32 %v3516, %v3685
        %vm3702 = vcmask 654336
        %3703 = vst.msk [vmem:[#allocation2] sm:$0xff] %vm3702, %v3688
        %3704 = vst.msk [vmem:[#allocation2 + $0x8] sm:$0xff] %vm3702, %v3689
        %3705 = vst.msk [vmem:[#allocation2 + $0x10] sm:$0xff] %vm3702, %v3690
        %3706 = vst.msk [vmem:[#allocation2 + $0x18] sm:$0xff] %vm3702, %v3691
        %3707 = vst.msk [vmem:[#allocation2 + $0x20] sm:$0xff] %vm3702, %v3692
        %3708 = vst.msk [vmem:[#allocation2 + $0x28] sm:$0xff] %vm3702, %v3693
        %3709 = vst.msk [vmem:[#allocation2 + $0x30] sm:$0xff] %vm3702, %v3694
        %3710 = vst.msk [vmem:[#allocation2 + $0x38] sm:$0xff] %vm3702, %v3695
        %3711 = vst.msk [vmem:[#allocation2 + $0x40] sm:$0xff] %vm3702, %v3696
        %3712 = vst.msk [vmem:[#allocation2 + $0x48] sm:$0xff] %vm3702, %v3697
        %3713 = vst.msk [vmem:[#allocation2 + $0x50] sm:$0xff] %vm3702, %v3698
        %3714 = vst.msk [vmem:[#allocation2 + $0x58] sm:$0xff] %vm3702, %v3699
        %3715 = vst.msk [vmem:[#allocation2 + $0x60] sm:$0xff] %vm3702, %v3700
        %3716 = vst.msk [vmem:[#allocation2 + $0x68] sm:$0xff] %vm3702, %v3701
        %v3717 = vld [vmem:[%s1 + $0x2] ss:$0 sm:$0xff]
        %v3718 = vld [vmem:[#allocation2] ss:$14 sm:$0xff]
        %v3719 = vld [vmem:[%s2015] ss:$14 sm:$0xff]
        %v3720 = vmax.f32 %v3718, %v3719
        %v3721 = vpack.c.bf16 %v3720, %v3720
        %v3722 = vld [vmem:[%s5] sm:$0xf]
        %v3723 = vld [vmem:[%s5 + $0x4] sm:$0xf]
        %v3724 = vld [vmem:[%s5 + $0x8] sm:$0xf]
        %v3725 = vld [vmem:[%s5 + $0xc] sm:$0xf]
        %v3726 = vld [vmem:[%s5 + $0x10] sm:$0xf]
        %v3727 = vld [vmem:[%s5 + $0x14] sm:$0xf]
        %v3728 = vld [vmem:[%s5 + $0x18] sm:$0xf]
        %v3729 = vld [vmem:[%s5 + $0x1c] sm:$0xf]
        %v3730 = vld [vmem:[%s5 + $0x20] sm:$0xf]
        %v3731 = vld [vmem:[%s5 + $0x24] sm:$0xf]
        %v3742 = vunpack.c.l.b16 %v3722
        %v3743 = vunpack.c.l.b16 %v3723
        %v3744 = vunpack.c.l.b16 %v3724
        %v3745 = vunpack.c.l.b16 %v3725
        %v3746 = vunpack.c.l.b16 %v3726
        %v3747 = vunpack.c.l.b16 %v3727
        %v3748 = vunpack.c.l.b16 %v3728
        %v3749 = vunpack.c.l.b16 %v3729
        %v3750 = vunpack.c.l.b16 %v3730
        %v3751 = vunpack.c.l.b16 %v3731
        %v3752 = vpack.c.b16 %v3743, %v3742
        %v3753 = vpack.c.b16 %v3745, %v3744
        %v3754 = vpack.c.b16 %v3747, %v3746
        %v3755 = vpack.c.b16 %v3749, %v3748
        %v3756 = vpack.c.b16 %v3751, %v3750
        %v3763 = vsel %vm3702, %v3721, 0
        %3765 = vmatprep.subr.bf16.mxu0 0
        %3766 = vmatpush1.bf16.msra.mxu0 0
        %3767 = vmatprep.subr.bf16.mxu0 0
        %3768 = vmatpush1.bf16.msra.mxu0 0
        %3769 = vmatprep.subr.bf16.mxu0 0
        %3770 = vmatpush1.bf16.msra.mxu0 0
        %3771 = vmatprep.subr.bf16.mxu0 0
        %3772 = vmatpush1.bf16.msra.mxu0 %v3756
        %3773 = vmatprep.subr.bf16.mxu0 0
        %3774 = vmatpush1.bf16.msra.mxu0 %v3755
        %3775 = vmatprep.subr.bf16.mxu0 0
        %3776 = vmatpush1.bf16.msra.mxu0 %v3754
        %3777 = vmatprep.subr.bf16.mxu0 0
        %3778 = vmatpush1.bf16.msra.mxu0 %v3753
        %3779 = vmatprep.subr.bf16.mxu0 0
        %3780 = vmatpush1.bf16.msra.mxu0 %v3752
        %3781 = vmatprep.subr.bf16.mxu0 0
        %3782 = vmatpush2.bf16.msra.mxu0 0
        %3783 = vmatprep.subr.bf16.mxu0 0
        %3784 = vmatpush2.bf16.msra.mxu0 0
        %3785 = vmatprep.subr.bf16.mxu0 0
        %3786 = vmatpush2.bf16.msra.mxu0 0
        %3787 = vmatprep.subr.bf16.mxu0 0
        %3788 = vmatpush2.bf16.msra.mxu0 0
        %3789 = vmatprep.subr.bf16.mxu0 0
        %3790 = vmatpush2.bf16.msra.mxu0 0
        %3791 = vmatprep.subr.bf16.mxu0 0
        %3792 = vmatpush2.bf16.msra.mxu0 0
        %3793 = vmatprep.subr.bf16.mxu0 0
        %3794 = vmatpush2.bf16.msra.mxu0 0
        %3795 = vmatprep.subr.bf16.mxu0 0
        %3796 = vmatpush2.bf16.msra.mxu0 0
        %3797 = vmatprep.mubr.bf16.mxu0 0
        %3798 = vmatmul.mubr.bf16.gmra.mxu0 %v3763
        %v3799 = vpop.f32.mrf.mxu0
        %v3800 = vadd.f32 0.0, %v3799
        %v3801 = vpop.f32.mrf.mxu0
        %v3802 = vpop.f32.mrf.mxu0
        %v3803 = vpop.f32.mrf.mxu0
        %3804 = vdwg.mxu0
        %v3805 = vadd.f32 %v3717, %v3800
        %s3806 = scalar_lea.vmem [#allocation2], 2
        %v3807 = vld [vmem:[%s3806] ss:$14 sm:$0xff]
        %s3808 = scalar_lea.vmem [#allocation2], 3
        %v3809 = vld [vmem:[%s3808] ss:$14 sm:$0xff]
        %v3810 = vmax.f32 %v3807, %v3809
        %v3811 = vpack.c.bf16 %v3810, %v3810
        %s3812 = scalar_lea.vmem %s5, 40
        %v3813 = vld [vmem:[%s3812] sm:$0xf]
        %v3814 = vld [vmem:[%s3812 + $0x4] sm:$0xf]
        %v3815 = vld [vmem:[%s3812 + $0x8] sm:$0xf]
        %v3816 = vld [vmem:[%s3812 + $0xc] sm:$0xf]
        %v3817 = vld [vmem:[%s3812 + $0x10] sm:$0xf]
        %v3818 = vld [vmem:[%s3812 + $0x14] sm:$0xf]
        %v3819 = vld [vmem:[%s3812 + $0x18] sm:$0xf]
        %v3820 = vld [vmem:[%s3812 + $0x1c] sm:$0xf]
        %v3821 = vld [vmem:[%s3812 + $0x20] sm:$0xf]
        %v3822 = vld [vmem:[%s3812 + $0x24] sm:$0xf]
        %v3833 = vunpack.c.l.b16 %v3813
        %v3834 = vunpack.c.l.b16 %v3814
        %v3835 = vunpack.c.l.b16 %v3815
        %v3836 = vunpack.c.l.b16 %v3816
        %v3837 = vunpack.c.l.b16 %v3817
        %v3838 = vunpack.c.l.b16 %v3818
        %v3839 = vunpack.c.l.b16 %v3819
        %v3840 = vunpack.c.l.b16 %v3820
        %v3841 = vunpack.c.l.b16 %v3821
        %v3842 = vunpack.c.l.b16 %v3822
        %v3843 = vpack.c.b16 %v3834, %v3833
        %v3844 = vpack.c.b16 %v3836, %v3835
        %v3845 = vpack.c.b16 %v3838, %v3837
        %v3846 = vpack.c.b16 %v3840, %v3839
        %v3847 = vpack.c.b16 %v3842, %v3841
        %v3854 = vsel %vm3702, %v3811, 0
        %3856 = vmatprep.subr.bf16.mxu0 0
        %3857 = vmatpush1.bf16.msra.mxu0 0
        %3858 = vmatprep.subr.bf16.mxu0 0
        %3859 = vmatpush1.bf16.msra.mxu0 0
        %3860 = vmatprep.subr.bf16.mxu0 0
        %3861 = vmatpush1.bf16.msra.mxu0 0
        %3862 = vmatprep.subr.bf16.mxu0 0
        %3863 = vmatpush1.bf16.msra.mxu0 %v3847
        %3864 = vmatprep.subr.bf16.mxu0 0
        %3865 = vmatpush1.bf16.msra.mxu0 %v3846
        %3866 = vmatprep.subr.bf16.mxu0 0
        %3867 = vmatpush1.bf16.msra.mxu0 %v3845
        %3868 = vmatprep.subr.bf16.mxu0 0
        %3869 = vmatpush1.bf16.msra.mxu0 %v3844
        %3870 = vmatprep.subr.bf16.mxu0 0
        %3871 = vmatpush1.bf16.msra.mxu0 %v3843
        %3872 = vmatprep.subr.bf16.mxu0 0
        %3873 = vmatpush2.bf16.msra.mxu0 0
        %3874 = vmatprep.subr.bf16.mxu0 0
        %3875 = vmatpush2.bf16.msra.mxu0 0
        %3876 = vmatprep.subr.bf16.mxu0 0
        %3877 = vmatpush2.bf16.msra.mxu0 0
        %3878 = vmatprep.subr.bf16.mxu0 0
        %3879 = vmatpush2.bf16.msra.mxu0 0
        %3880 = vmatprep.subr.bf16.mxu0 0
        %3881 = vmatpush2.bf16.msra.mxu0 0
        %3882 = vmatprep.subr.bf16.mxu0 0
        %3883 = vmatpush2.bf16.msra.mxu0 0
        %3884 = vmatprep.subr.bf16.mxu0 0
        %3885 = vmatpush2.bf16.msra.mxu0 0
        %3886 = vmatprep.subr.bf16.mxu0 0
        %3887 = vmatpush2.bf16.msra.mxu0 0
        %3888 = vmatprep.mubr.bf16.mxu0 0
        %3889 = vmatmul.mubr.bf16.gmra.mxu0 %v3854
        %v3890 = vpop.f32.mrf.mxu0
        %v3891 = vadd.f32 0.0, %v3890
        %v3892 = vpop.f32.mrf.mxu0
        %v3893 = vpop.f32.mrf.mxu0
        %v3894 = vpop.f32.mrf.mxu0
        %3895 = vdwg.mxu0
        %v3896 = vadd.f32 %v3805, %v3891
        %s3897 = scalar_lea.vmem [#allocation2], 4
        %v3898 = vld [vmem:[%s3897] ss:$14 sm:$0xff]
        %s3899 = scalar_lea.vmem [#allocation2], 5
        %v3900 = vld [vmem:[%s3899] ss:$14 sm:$0xff]
        %v3901 = vmax.f32 %v3898, %v3900
        %v3902 = vpack.c.bf16 %v3901, %v3901
        %s3903 = scalar_lea.vmem %s5, 80
        %v3904 = vld [vmem:[%s3903] sm:$0xf]
        %v3905 = vld [vmem:[%s3903 + $0x4] sm:$0xf]
        %v3906 = vld [vmem:[%s3903 + $0x8] sm:$0xf]
        %v3907 = vld [vmem:[%s3903 + $0xc] sm:$0xf]
        %v3908 = vld [vmem:[%s3903 + $0x10] sm:$0xf]
        %v3909 = vld [vmem:[%s3903 + $0x14] sm:$0xf]
        %v3910 = vld [vmem:[%s3903 + $0x18] sm:$0xf]
        %v3911 = vld [vmem:[%s3903 + $0x1c] sm:$0xf]
        %v3912 = vld [vmem:[%s3903 + $0x20] sm:$0xf]
        %v3913 = vld [vmem:[%s3903 + $0x24] sm:$0xf]
        %v3924 = vunpack.c.l.b16 %v3904
        %v3925 = vunpack.c.l.b16 %v3905
        %v3926 = vunpack.c.l.b16 %v3906
        %v3927 = vunpack.c.l.b16 %v3907
        %v3928 = vunpack.c.l.b16 %v3908
        %v3929 = vunpack.c.l.b16 %v3909
        %v3930 = vunpack.c.l.b16 %v3910
        %v3931 = vunpack.c.l.b16 %v3911
        %v3932 = vunpack.c.l.b16 %v3912
        %v3933 = vunpack.c.l.b16 %v3913
        %v3934 = vpack.c.b16 %v3925, %v3924
        %v3935 = vpack.c.b16 %v3927, %v3926
        %v3936 = vpack.c.b16 %v3929, %v3928
        %v3937 = vpack.c.b16 %v3931, %v3930
        %v3938 = vpack.c.b16 %v3933, %v3932
        %v3945 = vsel %vm3702, %v3902, 0
        %3947 = vmatprep.subr.bf16.mxu0 0
        %3948 = vmatpush1.bf16.msra.mxu0 0
        %3949 = vmatprep.subr.bf16.mxu0 0
        %3950 = vmatpush1.bf16.msra.mxu0 0
        %3951 = vmatprep.subr.bf16.mxu0 0
        %3952 = vmatpush1.bf16.msra.mxu0 0
        %3953 = vmatprep.subr.bf16.mxu0 0
        %3954 = vmatpush1.bf16.msra.mxu0 %v3938
        %3955 = vmatprep.subr.bf16.mxu0 0
        %3956 = vmatpush1.bf16.msra.mxu0 %v3937
        %3957 = vmatprep.subr.bf16.mxu0 0
        %3958 = vmatpush1.bf16.msra.mxu0 %v3936
        %3959 = vmatprep.subr.bf16.mxu0 0
        %3960 = vmatpush1.bf16.msra.mxu0 %v3935
        %3961 = vmatprep.subr.bf16.mxu0 0
        %3962 = vmatpush1.bf16.msra.mxu0 %v3934
        %3963 = vmatprep.subr.bf16.mxu0 0
        %3964 = vmatpush2.bf16.msra.mxu0 0
        %3965 = vmatprep.subr.bf16.mxu0 0
        %3966 = vmatpush2.bf16.msra.mxu0 0
        %3967 = vmatprep.subr.bf16.mxu0 0
        %3968 = vmatpush2.bf16.msra.mxu0 0
        %3969 = vmatprep.subr.bf16.mxu0 0
        %3970 = vmatpush2.bf16.msra.mxu0 0
        %3971 = vmatprep.subr.bf16.mxu0 0
        %3972 = vmatpush2.bf16.msra.mxu0 0
        %3973 = vmatprep.subr.bf16.mxu0 0
        %3974 = vmatpush2.bf16.msra.mxu0 0
        %3975 = vmatprep.subr.bf16.mxu0 0
        %3976 = vmatpush2.bf16.msra.mxu0 0
        %3977 = vmatprep.subr.bf16.mxu0 0
        %3978 = vmatpush2.bf16.msra.mxu0 0
        %3979 = vmatprep.mubr.bf16.mxu0 0
        %3980 = vmatmul.mubr.bf16.gmra.mxu0 %v3945
        %v3981 = vpop.f32.mrf.mxu0
        %v3982 = vadd.f32 0.0, %v3981
        %v3983 = vpop.f32.mrf.mxu0
        %v3984 = vpop.f32.mrf.mxu0
        %v3985 = vpop.f32.mrf.mxu0
        %3986 = vdwg.mxu0
        %v3987 = vadd.f32 %v3896, %v3982
        %s3988 = scalar_lea.vmem [#allocation2], 6
        %v3989 = vld [vmem:[%s3988] ss:$14 sm:$0xff]
        %s3990 = scalar_lea.vmem [#allocation2], 7
        %v3991 = vld [vmem:[%s3990] ss:$14 sm:$0xff]
        %v3992 = vmax.f32 %v3989, %v3991
        %v3993 = vpack.c.bf16 %v3992, %v3992
        %s3994 = scalar_lea.vmem %s5, 120
        %v3995 = vld [vmem:[%s3994] sm:$0xf]
        %v3996 = vld [vmem:[%s3994 + $0x4] sm:$0xf]
        %v3997 = vld [vmem:[%s3994 + $0x8] sm:$0xf]
        %v3998 = vld [vmem:[%s3994 + $0xc] sm:$0xf]
        %v3999 = vld [vmem:[%s3994 + $0x10] sm:$0xf]
        %v4000 = vld [vmem:[%s3994 + $0x14] sm:$0xf]
        %v4001 = vld [vmem:[%s3994 + $0x18] sm:$0xf]
        %v4002 = vld [vmem:[%s3994 + $0x1c] sm:$0xf]
        %v4003 = vld [vmem:[%s3994 + $0x20] sm:$0xf]
        %v4004 = vld [vmem:[%s3994 + $0x24] sm:$0xf]
        %v4015 = vunpack.c.l.b16 %v3995
        %v4016 = vunpack.c.l.b16 %v3996
        %v4017 = vunpack.c.l.b16 %v3997
        %v4018 = vunpack.c.l.b16 %v3998
        %v4019 = vunpack.c.l.b16 %v3999
        %v4020 = vunpack.c.l.b16 %v4000
        %v4021 = vunpack.c.l.b16 %v4001
        %v4022 = vunpack.c.l.b16 %v4002
        %v4023 = vunpack.c.l.b16 %v4003
        %v4024 = vunpack.c.l.b16 %v4004
        %v4025 = vpack.c.b16 %v4016, %v4015
        %v4026 = vpack.c.b16 %v4018, %v4017
        %v4027 = vpack.c.b16 %v4020, %v4019
        %v4028 = vpack.c.b16 %v4022, %v4021
        %v4029 = vpack.c.b16 %v4024, %v4023
        %v4036 = vsel %vm3702, %v3993, 0
        %4038 = vmatprep.subr.bf16.mxu0 0
        %4039 = vmatpush1.bf16.msra.mxu0 0
        %4040 = vmatprep.subr.bf16.mxu0 0
        %4041 = vmatpush1.bf16.msra.mxu0 0
        %4042 = vmatprep.subr.bf16.mxu0 0
        %4043 = vmatpush1.bf16.msra.mxu0 0
        %4044 = vmatprep.subr.bf16.mxu0 0
        %4045 = vmatpush1.bf16.msra.mxu0 %v4029
        %4046 = vmatprep.subr.bf16.mxu0 0
        %4047 = vmatpush1.bf16.msra.mxu0 %v4028
        %4048 = vmatprep.subr.bf16.mxu0 0
        %4049 = vmatpush1.bf16.msra.mxu0 %v4027
        %4050 = vmatprep.subr.bf16.mxu0 0
        %4051 = vmatpush1.bf16.msra.mxu0 %v4026
        %4052 = vmatprep.subr.bf16.mxu0 0
        %4053 = vmatpush1.bf16.msra.mxu0 %v4025
        %4054 = vmatprep.subr.bf16.mxu0 0
        %4055 = vmatpush2.bf16.msra.mxu0 0
        %4056 = vmatprep.subr.bf16.mxu0 0
        %4057 = vmatpush2.bf16.msra.mxu0 0
        %4058 = vmatprep.subr.bf16.mxu0 0
        %4059 = vmatpush2.bf16.msra.mxu0 0
        %4060 = vmatprep.subr.bf16.mxu0 0
        %4061 = vmatpush2.bf16.msra.mxu0 0
        %4062 = vmatprep.subr.bf16.mxu0 0
        %4063 = vmatpush2.bf16.msra.mxu0 0
        %4064 = vmatprep.subr.bf16.mxu0 0
        %4065 = vmatpush2.bf16.msra.mxu0 0
        %4066 = vmatprep.subr.bf16.mxu0 0
        %4067 = vmatpush2.bf16.msra.mxu0 0
        %4068 = vmatprep.subr.bf16.mxu0 0
        %4069 = vmatpush2.bf16.msra.mxu0 0
        %4070 = vmatprep.mubr.bf16.mxu0 0
        %4071 = vmatmul.mubr.bf16.gmra.mxu0 %v4036
        %v4072 = vpop.f32.mrf.mxu0
        %v4073 = vadd.f32 0.0, %v4072
        %v4074 = vpop.f32.mrf.mxu0
        %v4075 = vpop.f32.mrf.mxu0
        %v4076 = vpop.f32.mrf.mxu0
        %4077 = vdwg.mxu0
        %v4078 = vadd.f32 %v3987, %v4073
        %s4079 = scalar_lea.vmem [#allocation2], 8
        %v4080 = vld [vmem:[%s4079] ss:$14 sm:$0xff]
        %s4081 = scalar_lea.vmem [#allocation2], 9
        %v4082 = vld [vmem:[%s4081] ss:$14 sm:$0xff]
        %v4083 = vmax.f32 %v4080, %v4082
        %v4084 = vpack.c.bf16 %v4083, %v4083
        %s4085 = scalar_lea.vmem %s5, 160
        %v4086 = vld [vmem:[%s4085] sm:$0xf]
        %v4087 = vld [vmem:[%s4085 + $0x4] sm:$0xf]
        %v4088 = vld [vmem:[%s4085 + $0x8] sm:$0xf]
        %v4089 = vld [vmem:[%s4085 + $0xc] sm:$0xf]
        %v4090 = vld [vmem:[%s4085 + $0x10] sm:$0xf]
        %v4091 = vld [vmem:[%s4085 + $0x14] sm:$0xf]
        %v4092 = vld [vmem:[%s4085 + $0x18] sm:$0xf]
        %v4093 = vld [vmem:[%s4085 + $0x1c] sm:$0xf]
        %v4094 = vld [vmem:[%s4085 + $0x20] sm:$0xf]
        %v4095 = vld [vmem:[%s4085 + $0x24] sm:$0xf]
        %v4106 = vunpack.c.l.b16 %v4086
        %v4107 = vunpack.c.l.b16 %v4087
        %v4108 = vunpack.c.l.b16 %v4088
        %v4109 = vunpack.c.l.b16 %v4089
        %v4110 = vunpack.c.l.b16 %v4090
        %v4111 = vunpack.c.l.b16 %v4091
        %v4112 = vunpack.c.l.b16 %v4092
        %v4113 = vunpack.c.l.b16 %v4093
        %v4114 = vunpack.c.l.b16 %v4094
        %v4115 = vunpack.c.l.b16 %v4095
        %v4116 = vpack.c.b16 %v4107, %v4106
        %v4117 = vpack.c.b16 %v4109, %v4108
        %v4118 = vpack.c.b16 %v4111, %v4110
        %v4119 = vpack.c.b16 %v4113, %v4112
        %v4120 = vpack.c.b16 %v4115, %v4114
        %v4127 = vsel %vm3702, %v4084, 0
        %4129 = vmatprep.subr.bf16.mxu0 0
        %4130 = vmatpush1.bf16.msra.mxu0 0
        %4131 = vmatprep.subr.bf16.mxu0 0
        %4132 = vmatpush1.bf16.msra.mxu0 0
        %4133 = vmatprep.subr.bf16.mxu0 0
        %4134 = vmatpush1.bf16.msra.mxu0 0
        %4135 = vmatprep.subr.bf16.mxu0 0
        %4136 = vmatpush1.bf16.msra.mxu0 %v4120
        %4137 = vmatprep.subr.bf16.mxu0 0
        %4138 = vmatpush1.bf16.msra.mxu0 %v4119
        %4139 = vmatprep.subr.bf16.mxu0 0
        %4140 = vmatpush1.bf16.msra.mxu0 %v4118
        %4141 = vmatprep.subr.bf16.mxu0 0
        %4142 = vmatpush1.bf16.msra.mxu0 %v4117
        %4143 = vmatprep.subr.bf16.mxu0 0
        %4144 = vmatpush1.bf16.msra.mxu0 %v4116
        %4145 = vmatprep.subr.bf16.mxu0 0
        %4146 = vmatpush2.bf16.msra.mxu0 0
        %4147 = vmatprep.subr.bf16.mxu0 0
        %4148 = vmatpush2.bf16.msra.mxu0 0
        %4149 = vmatprep.subr.bf16.mxu0 0
        %4150 = vmatpush2.bf16.msra.mxu0 0
        %4151 = vmatprep.subr.bf16.mxu0 0
        %4152 = vmatpush2.bf16.msra.mxu0 0
        %4153 = vmatprep.subr.bf16.mxu0 0
        %4154 = vmatpush2.bf16.msra.mxu0 0
        %4155 = vmatprep.subr.bf16.mxu0 0
        %4156 = vmatpush2.bf16.msra.mxu0 0
        %4157 = vmatprep.subr.bf16.mxu0 0
        %4158 = vmatpush2.bf16.msra.mxu0 0
        %4159 = vmatprep.subr.bf16.mxu0 0
        %4160 = vmatpush2.bf16.msra.mxu0 0
        %4161 = vmatprep.mubr.bf16.mxu0 0
        %4162 = vmatmul.mubr.bf16.gmra.mxu0 %v4127
        %v4163 = vpop.f32.mrf.mxu0
        %v4164 = vadd.f32 0.0, %v4163
        %v4165 = vpop.f32.mrf.mxu0
        %v4166 = vpop.f32.mrf.mxu0
        %v4167 = vpop.f32.mrf.mxu0
        %4168 = vdwg.mxu0
        %v4169 = vadd.f32 %v4078, %v4164
        %v4170 = vmax.f32 %v4169, 0.0
        %v4171 = vpack.c.bf16 %v4170, %v4170
        %v4172 = vld [vmem:[%s4 + $0xa0] sm:$0xf]
        %v4173 = vld [vmem:[%s4 + $0xa4] sm:$0xf]
        %v4174 = vld [vmem:[%s4 + $0xa8] sm:$0xf]
        %v4175 = vld [vmem:[%s4 + $0xac] sm:$0xf]
        %v4176 = vld [vmem:[%s4 + $0xb0] sm:$0xf]
        %v4177 = vld [vmem:[%s4 + $0xb4] sm:$0xf]
        %v4178 = vld [vmem:[%s4 + $0xb8] sm:$0xf]
        %v4179 = vld [vmem:[%s4 + $0xbc] sm:$0xf]
        %v4180 = vld [vmem:[%s4 + $0xc0] sm:$0xf]
        %v4181 = vld [vmem:[%s4 + $0xc4] sm:$0xf]
        %v4182 = vld [vmem:[%s4 + $0xc8] sm:$0xf]
        %v4183 = vld [vmem:[%s4 + $0xcc] sm:$0xf]
        %v4184 = vld [vmem:[%s4 + $0xd0] sm:$0xf]
        %v4185 = vld [vmem:[%s4 + $0xd4] sm:$0xf]
        %v4186 = vld [vmem:[%s4 + $0xd8] sm:$0xf]
        %v4187 = vld [vmem:[%s4 + $0xdc] sm:$0xf]
        %v4188 = vld [vmem:[%s1 + $0x3] ss:$0 sm:$0xff]
        %v4205 = vunpack.c.l.b16 %v4172
        %v4206 = vunpack.c.l.b16 %v4173
        %v4207 = vunpack.c.l.b16 %v4174
        %v4208 = vunpack.c.l.b16 %v4175
        %v4209 = vunpack.c.l.b16 %v4176
        %v4210 = vunpack.c.l.b16 %v4177
        %v4211 = vunpack.c.l.b16 %v4178
        %v4212 = vunpack.c.l.b16 %v4179
        %v4213 = vunpack.c.l.b16 %v4180
        %v4214 = vunpack.c.l.b16 %v4181
        %v4215 = vunpack.c.l.b16 %v4182
        %v4216 = vunpack.c.l.b16 %v4183
        %v4217 = vunpack.c.l.b16 %v4184
        %v4218 = vunpack.c.l.b16 %v4185
        %v4219 = vunpack.c.l.b16 %v4186
        %v4220 = vunpack.c.l.b16 %v4187
        %v4221 = vpack.c.b16 %v4206, %v4205
        %v4222 = vpack.c.b16 %v4208, %v4207
        %v4223 = vpack.c.b16 %v4210, %v4209
        %v4224 = vpack.c.b16 %v4212, %v4211
        %v4225 = vpack.c.b16 %v4214, %v4213
        %v4226 = vpack.c.b16 %v4216, %v4215
        %v4227 = vpack.c.b16 %v4218, %v4217
        %v4228 = vpack.c.b16 %v4220, %v4219
        %4237 = vmatprep.subr.bf16.mxu0 0
        %4238 = vmatpush1.bf16.msra.mxu0 %v4228
        %4239 = vmatprep.subr.bf16.mxu0 0
        %4240 = vmatpush1.bf16.msra.mxu0 %v4227
        %4241 = vmatprep.subr.bf16.mxu0 0
        %4242 = vmatpush1.bf16.msra.mxu0 %v4226
        %4243 = vmatprep.subr.bf16.mxu0 0
        %4244 = vmatpush1.bf16.msra.mxu0 %v4225
        %4245 = vmatprep.subr.bf16.mxu0 0
        %4246 = vmatpush1.bf16.msra.mxu0 %v4224
        %4247 = vmatprep.subr.bf16.mxu0 0
        %4248 = vmatpush1.bf16.msra.mxu0 %v4223
        %4249 = vmatprep.subr.bf16.mxu0 0
        %4250 = vmatpush1.bf16.msra.mxu0 %v4222
        %4251 = vmatprep.subr.bf16.mxu0 0
        %4252 = vmatpush1.bf16.msra.mxu0 %v4221
        %4253 = vmatprep.subr.bf16.mxu0 0
        %4254 = vmatpush2.bf16.msra.mxu0 0
        %4255 = vmatprep.subr.bf16.mxu0 0
        %4256 = vmatpush2.bf16.msra.mxu0 0
        %4257 = vmatprep.subr.bf16.mxu0 0
        %4258 = vmatpush2.bf16.msra.mxu0 0
        %4259 = vmatprep.subr.bf16.mxu0 0
        %4260 = vmatpush2.bf16.msra.mxu0 0
        %4261 = vmatprep.subr.bf16.mxu0 0
        %4262 = vmatpush2.bf16.msra.mxu0 0
        %4263 = vmatprep.subr.bf16.mxu0 0
        %4264 = vmatpush2.bf16.msra.mxu0 0
        %4265 = vmatprep.subr.bf16.mxu0 0
        %4266 = vmatpush2.bf16.msra.mxu0 0
        %4267 = vmatprep.subr.bf16.mxu0 0
        %4268 = vmatpush2.bf16.msra.mxu0 0
        %4269 = vmatprep.mubr.bf16.mxu0 0
        %4270 = vmatmul.mubr.bf16.gmra.mxu0 %v4171
        %v4271 = vpop.f32.mrf.mxu0
        %v4272 = vadd.f32 %v4188, %v4271
        %v4273 = vpop.f32.mrf.mxu0
        %v4274 = vpop.f32.mrf.mxu0
        %v4275 = vpop.f32.mrf.mxu0
        %4276 = vdwg.mxu0
        %v4277 = vmax.f32 %v4272, 0.0
        %v4278 = vpack.c.bf16 %v4277, %v4277
        %v4279 = vld [vmem:[%s4 + $0xe0] sm:$0xf]
        %v4280 = vld [vmem:[%s4 + $0xe4] sm:$0xf]
        %v4281 = vld [vmem:[%s4 + $0xe8] sm:$0xf]
        %v4282 = vld [vmem:[%s4 + $0xec] sm:$0xf]
        %v4283 = vld [vmem:[%s4 + $0xf0] sm:$0xf]
        %v4284 = vld [vmem:[%s4 + $0xf4] sm:$0xf]
        %v4285 = vld [vmem:[%s4 + $0xf8] sm:$0xf]
        %v4286 = vld [vmem:[%s4 + $0xfc] sm:$0xf]
        %v4287 = vld [vmem:[%s4 + $0x100] sm:$0xf]
        %v4288 = vld [vmem:[%s4 + $0x104] sm:$0xf]
        %v4289 = vld [vmem:[%s4 + $0x108] sm:$0xf]
        %v4290 = vld [vmem:[%s4 + $0x10c] sm:$0xf]
        %v4291 = vld [vmem:[%s4 + $0x110] sm:$0xf]
        %v4292 = vld [vmem:[%s4 + $0x114] sm:$0xf]
        %v4293 = vld [vmem:[%s4 + $0x118] sm:$0xf]
        %v4294 = vld [vmem:[%s4 + $0x11c] sm:$0xf]
        %v4295 = vld [vmem:[%s1 + $0x4] ss:$0 sm:$0xff]
        %v4312 = vunpack.c.l.b16 %v4279
        %v4313 = vunpack.c.l.b16 %v4280
        %v4314 = vunpack.c.l.b16 %v4281
        %v4315 = vunpack.c.l.b16 %v4282
        %v4316 = vunpack.c.l.b16 %v4283
        %v4317 = vunpack.c.l.b16 %v4284
        %v4318 = vunpack.c.l.b16 %v4285
        %v4319 = vunpack.c.l.b16 %v4286
        %v4320 = vunpack.c.l.b16 %v4287
        %v4321 = vunpack.c.l.b16 %v4288
        %v4322 = vunpack.c.l.b16 %v4289
        %v4323 = vunpack.c.l.b16 %v4290
        %v4324 = vunpack.c.l.b16 %v4291
        %v4325 = vunpack.c.l.b16 %v4292
        %v4326 = vunpack.c.l.b16 %v4293
        %v4327 = vunpack.c.l.b16 %v4294
        %v4328 = vpack.c.b16 %v4313, %v4312
        %v4329 = vpack.c.b16 %v4315, %v4314
        %v4330 = vpack.c.b16 %v4317, %v4316
        %v4331 = vpack.c.b16 %v4319, %v4318
        %v4332 = vpack.c.b16 %v4321, %v4320
        %v4333 = vpack.c.b16 %v4323, %v4322
        %v4334 = vpack.c.b16 %v4325, %v4324
        %v4335 = vpack.c.b16 %v4327, %v4326
        %4344 = vmatprep.subr.bf16.mxu0 0
        %4345 = vmatpush1.bf16.msra.mxu0 %v4335
        %4346 = vmatprep.subr.bf16.mxu0 0
        %4347 = vmatpush1.bf16.msra.mxu0 %v4334
        %4348 = vmatprep.subr.bf16.mxu0 0
        %4349 = vmatpush1.bf16.msra.mxu0 %v4333
        %4350 = vmatprep.subr.bf16.mxu0 0
        %4351 = vmatpush1.bf16.msra.mxu0 %v4332
        %4352 = vmatprep.subr.bf16.mxu0 0
        %4353 = vmatpush1.bf16.msra.mxu0 %v4331
        %4354 = vmatprep.subr.bf16.mxu0 0
        %4355 = vmatpush1.bf16.msra.mxu0 %v4330
        %4356 = vmatprep.subr.bf16.mxu0 0
        %4357 = vmatpush1.bf16.msra.mxu0 %v4329
        %4358 = vmatprep.subr.bf16.mxu0 0
        %4359 = vmatpush1.bf16.msra.mxu0 %v4328
        %4360 = vmatprep.subr.bf16.mxu0 0
        %4361 = vmatpush2.bf16.msra.mxu0 0
        %4362 = vmatprep.subr.bf16.mxu0 0
        %4363 = vmatpush2.bf16.msra.mxu0 0
        %4364 = vmatprep.subr.bf16.mxu0 0
        %4365 = vmatpush2.bf16.msra.mxu0 0
        %4366 = vmatprep.subr.bf16.mxu0 0
        %4367 = vmatpush2.bf16.msra.mxu0 0
        %4368 = vmatprep.subr.bf16.mxu0 0
        %4369 = vmatpush2.bf16.msra.mxu0 0
        %4370 = vmatprep.subr.bf16.mxu0 0
        %4371 = vmatpush2.bf16.msra.mxu0 0
        %4372 = vmatprep.subr.bf16.mxu0 0
        %4373 = vmatpush2.bf16.msra.mxu0 0
        %4374 = vmatprep.subr.bf16.mxu0 0
        %4375 = vmatpush2.bf16.msra.mxu0 0
        %4376 = vmatprep.mubr.bf16.mxu0 0
        %4377 = vmatmul.mubr.bf16.gmra.mxu0 %v4278
        %v4378 = vpop.f32.mrf.mxu0
        %v4379 = vadd.f32 %v4295, %v4378
        %v4380 = vpop.f32.mrf.mxu0
        %v4381 = vpop.f32.mrf.mxu0
        %v4382 = vpop.f32.mrf.mxu0
        %4383 = vdwg.mxu0
        %4384 = vst [vmem:[%s247] sm:$0xff] %v4379
        %s4385 = sand.u32 %s159, 1
        %s4386 = scalar_lea.sflag [#allocation4], %s4385
        %s4387 = sand.u32 %s159, 1
        %s4388 = smul.addr %s4387, 8
        %s4389 = scalar_lea.vmem [#allocation3], %s4388
        // Predicated region
        $region45: #{net_forward.1} parent=43 // pred_check
          %p4390 = pneg %p169
        $region46: #{net_forward.1} parent=43 // pred_check_branch
          %4392 = sbr.rel (%p4390) target = $region48
        $region47: #{net_forward.1} parent=43 // pred_region
          %s4394 = ssub.s32 128, 128
          %4395 = vsyncadd %s4386, %s4394
          %s4396 = smul.addr %s20, 128
          %s4397 = scalar_lea.hbm %s6, %s4396
          %s4399 = sshll.u32 %s4389, 4
          %s4400 = int_to_ptr.vmem [resolvable:$true] %s4399
          %4402 = dma.vmem_to_hbm [thread:$0]  %s4400, 128, %s4397, %s4386
        $region48: #{net_forward.1} parent=43 // pred_fallthru
          _
      $region44: #{net_forward.1} parent=5 // pred_fallthru
        _
      %p4403 = scmp.le.s32.totalorder 2, %s15
      // Predicated region
      $region49: #{net_forward.1} parent=5 // pred_check
        %p4404 = pneg %p4403
      $region50: #{net_forward.1} parent=5 // pred_check_branch
        %4406 = sbr.rel (%p4404) target = $region52
      $region51: #{net_forward.1} parent=5 // pred_region
        %s4407 = ssub.s32 %s15, 2
        // Predicated region
        $region53: #{net_forward.1} parent=51 // pred_check
          %p4408 = pneg %p175
        $region54: #{net_forward.1} parent=51 // pred_check_branch
          %4410 = sbr.rel (%p4408) target = $region56
        $region55: #{net_forward.1} parent=51 // pred_region
          %s4411 = sand.u32 %s160, 1
          %s4412 = scalar_lea.sflag [#allocation4], %s4411
          %s4413 = sand.u32 %s160, 1
          %s4414 = smul.addr %s4413, 8
          %s4415 = scalar_lea.vmem [#allocation3], %s4414
          %4416 = dma.done %s4412, 128
        $region56: #{net_forward.1} parent=51 // pred_fallthru
          _
      $region52: #{net_forward.1} parent=5 // pred_fallthru
        _
    $region6: #{net_forward.1} parent=1 // loop_footer
      %s19 = sadd.s32 1, %s15
    $region7: #{net_forward.1} parent=1 // loop_footer_branch
      %14 = sbr.rel target = $region3
    $region8: #{net_forward.1} parent=1 // loop_exit
      _
    %4417 = vsyncpa [#allocation4], 1
    %s4418 = scalar_lea.sflag [#allocation4], 1
    %4419 = vsyncpa %s4418, 1

</llo_original>
